<compile_context>
chip_gen: v7x
topology: tpu7x:2x2x1
jax: 0.10.0
libtpu: 0.0.40
codegen_flags: <defaults>
</compile_context>

<pallas_src>
import functools

import jax
import jax.numpy as jnp
from jax.experimental import pallas as pl
from jax.experimental.pallas import tpu as pltpu


def receptive_field(layer_dilations, kernel_size):
    """Positions before this window cannot influence the last causal output."""
    return 1 + (kernel_size - 1) * sum(int(d) for d in layer_dilations)


def _nextit_kernel(x_ref, convw_ref, convb_ref, lnw_ref, lnb_ref, out_ref,
                   *, layer_dilations, kernel_size, eps, fold_taps):
    """One batch tile (TB rows) per grid step: full residual-block stack."""
    TB, S, C = x_ref.shape
    M = TB * S
    K = kernel_size
    mxu_dtype = convw_ref.dtype

    # (TB, S, C) -> (M, C): free when S is a multiple of 8 (sublane-aligned).
    h = x_ref[...].reshape(M, C).astype(jnp.float32)

    # Time index of every flattened row inside its own sequence, plus one hoisted
    # causal mask per distinct in-range shift (JAX does not CSE broadcast/compare,
    # so emit each exactly once instead of L*(K-1) times).
    t_in_seq = jax.lax.broadcasted_iota(jnp.int32, (M, 1), 0) % S
    shifts_needed = set()
    for d in layer_dilations:
        for j in range(K):
            shift = (K - 1 - j) * d
            if 0 < shift < S:
                shifts_needed.add(shift)
    masks = {s: (t_in_seq >= s) for s in sorted(shifts_needed)}

    def shifted(hf32, shift):
        # rolled[m] = hf32[m - shift]; rows with in-sequence time < shift are zeroed,
        # which kills both cross-sequence leakage and the roll wrap-around.
        if shift == 0:
            return hf32
        rolled = pltpu.roll(hf32, shift, axis=0)
        # Mask/select kept in f32 (v5e has no bf16 VALU); cast happens at append time.
        return jnp.where(masks[shift], rolled, 0.0)

    n_layers = len(layer_dilations)
    # TODO(synk): for large stacks (num_blocks*len(dilations)*2 >= ~8) switch this
    # unrolled loop to lax.fori_loop with dynamic layer indexing to bound vreg live
    # ranges / code size.
    for blk in range(n_layers // 2):              # one ResidualBlock_b per (conv1, conv2)
        residual = h
        for sub in range(2):
            layer = 2 * blk + sub
            d = layer_dilations[layer]
            # Taps whose shift >= S contribute zero: drop them and the matching
            # weight rows (out-of-range taps are always the lowest-j ones).
            j0 = 0
            while j0 < K - 1 and (K - 1 - j0) * d >= S:
                j0 += 1
            w = convw_ref[layer]                   # (K*C, C), bf16
            if fold_taps:
                # Fold remaining taps along the contraction axis -> a single matmul.
                parts = [shifted(h, (K - 1 - j) * d).astype(mxu_dtype)
                         for j in range(j0, K)]
                xcat = parts[0] if len(parts) == 1 else jnp.concatenate(parts, axis=-1)
                y = jnp.dot(xcat, w[j0 * C:, :],
                            preferred_element_type=jnp.float32)
            else:
                # Wide channels: contraction already deep, skip the lane concat and
                # accumulate K per-tap dots into the f32 result instead.
                y = jnp.dot(shifted(h, (K - 1 - j0) * d).astype(mxu_dtype),
                            w[j0 * C:(j0 + 1) * C, :],
                            preferred_element_type=jnp.float32)
                for j in range(j0 + 1, K):
                    y = y + jnp.dot(shifted(h, (K - 1 - j) * d).astype(mxu_dtype),
                                    w[j * C:(j + 1) * C, :],
                                    preferred_element_type=jnp.float32)
            y = y + convb_ref[layer][None, :]
            # LayerNorm over channels (biased variance, eps inside rsqrt) + affine.
            mu = jnp.mean(y, axis=-1, keepdims=True)
            var = jnp.mean((y - mu) ** 2, axis=-1, keepdims=True)
            yn = (y - mu) * jax.lax.rsqrt(var + eps)
            yn = yn * lnw_ref[layer][None, :] + lnb_ref[layer][None, :]
            h = jnp.maximum(yn, 0.0)              # ReLU
        h = h + residual                          # residual add per block

    # hidden = last timestep of every sequence in the tile.
    last = h.reshape(TB, S, C)[:, S - 1, :]
    if len(out_ref.shape) == 2:                   # lane/sublane-dense (TB, C) store
        out_ref[...] = last.astype(out_ref.dtype)
    else:                                         # fallback (TB, 1, C) store
        out_ref[...] = last[:, None, :].astype(out_ref.dtype)


def _vmem_capacity_bytes():
    try:
        return int(pltpu.get_tpu_info().vmem_capacity_bytes)
    except Exception:
        return 64 << 20     # conservative fallback = v7x per-TensorCore VMEM


def _live_set_multiplier(K):
    """f32-slab (S*C*4-byte) equivalents live per batch row inside the kernel."""
    # 2 x input tile (double-buffered) + h + residual + (K-1) shifted bf16 parts
    # + bf16 xcat (K*C wide) + f32 y, plus slack for roll/mask temporaries.
    return 2.0 + 2.0 + 0.5 * (K - 1) + 0.5 * K + 1.0 + 1.0


def _pick_batch_tile(B, S, C, K, vmem_cap):
    """Largest divisor of B that fits the real live set; prefer a sublane-aligned
    output tile and an even grid length >= 2 (v7x: two TensorCores)."""
    budget = vmem_cap // 2                         # headroom for weights/code/pipeline
    per_row = _live_set_multiplier(K) * S * C * 4
    max_tb = max(1, int(budget // per_row))
    divisors = [tb for tb in range(1, B + 1) if B % tb == 0 and tb <= max_tb]
    if not divisors:
        divisors = [1]

    def score(tb):
        g = B // tb
        aligned = (tb % 8 == 0) or (tb == B)       # (8,128) rule for the (TB, C) out block
        even_grid = (B == 1) or (g >= 2 and g % 2 == 0)
        grid_ge2 = (B == 1) or (g >= 2)
        return (aligned, even_grid, grid_ge2, tb)  # lexicographic, then biggest tile

    return max(divisors, key=score)


def nextit_residual_hidden(sess_embed, conv_w, conv_b, ln_w, ln_b,
                           layer_dilations, kernel_size,
                           *, compute_dtype=jnp.bfloat16, eps=1e-8,
                           batch_tile=None, vmem_limit_bytes=None):
    """Runs the residual-block stack in Pallas; returns hidden (B, C)."""
    B, S, C = sess_embed.shape
    L, K, _, _ = conv_w.shape
    layer_dilations = tuple(int(d) for d in layer_dilations)
    kernel_size = int(kernel_size)

    # Only the last timestep is emitted -> restrict to its causal receptive field
    # (rounded up to a sublane multiple).  NOTE: valid only for the last-timestep
    # output; do not reuse this wrapper for an all-timesteps variant.
    recep = receptive_field(layer_dilations, kernel_size)
    s_keep = min(S, max(8, ((recep + 7) // 8) * 8))
    if s_keep < S:
        sess_embed = sess_embed[:, S - s_keep:, :]
        S = s_keep

    vmem_cap = _vmem_capacity_bytes()
    TB = batch_tile if batch_tile is not None else _pick_batch_tile(B, S, C, kernel_size, vmem_cap)
    assert B % TB == 0, "batch_tile must divide the batch size"

    aligned_out = (TB % 8 == 0) or (TB == B)
    fold_taps = C < 128     # wide channels: per-tap accumulating dots, no lane concat

    # Fold the K taps of each layer into a single (K*C, C) contraction; bf16 MXU
    # operands with f32 accumulation inside the dot.
    conv_w_cat = conv_w.reshape(L, K * C, C).astype(compute_dtype)

    if vmem_limit_bytes is None:
        est = int(_live_set_multiplier(kernel_size) * TB * S * C * 4      # tile live set
                  + L * K * C * C * 2 + 3 * L * C * 4                     # single-buffered weights
                  + 4 * TB * C * 4)                                       # output buffers
        vmem_limit_bytes = int(min(max(32 << 20, 2 * est), int(vmem_cap * 0.9)))

    kernel = functools.partial(
        _nextit_kernel,
        layer_dilations=layer_dilations,
        kernel_size=kernel_size,
        eps=float(eps),
        fold_taps=fold_taps,
    )

    if aligned_out:
        out_shape = jax.ShapeDtypeStruct((B, C), sess_embed.dtype)
        out_spec = pl.BlockSpec((TB, C), lambda b: (b, 0))
    else:
        out_shape = jax.ShapeDtypeStruct((B, 1, C), sess_embed.dtype)
        out_spec = pl.BlockSpec((TB, 1, C), lambda b: (b, 0, 0))

    # Constant-index weight/bias/LN blocks: single-buffer them (no wasted VMEM copy).
    const_spec = functools.partial(pl.BlockSpec, pipeline_mode=pl.Buffered(1))

    out = pl.pallas_call(
        kernel,
        out_shape=out_shape,
        grid_spec=pltpu.PrefetchScalarGridSpec(
            num_scalar_prefetch=0,
            grid=(B // TB,),
            in_specs=[
                pl.BlockSpec((TB, S, C), lambda b: (b, 0, 0)),            # batch tile
                const_spec((L, K * C, C), lambda b: (0, 0, 0)),           # folded conv weights
                const_spec((L, C), lambda b: (0, 0)),                     # conv bias
                const_spec((L, C), lambda b: (0, 0)),                     # LN weight
                const_spec((L, C), lambda b: (0, 0)),                     # LN bias
            ],
            out_specs=out_spec,
        ),
        compiler_params=pltpu.CompilerParams(
            dimension_semantics=("parallel",),
            vmem_limit_bytes=vmem_limit_bytes),
    )(sess_embed, conv_w_cat,
      conv_b.astype(jnp.float32), ln_w.astype(jnp.float32), ln_b.astype(jnp.float32))
    return out.reshape(B, C)


def reference_forward(sess_embed, conv_w, conv_b, ln_w, ln_b,
                      layer_dilations, kernel_size, compute_dtype=jnp.float32):
    """Pure-JAX reference of the same math (conv operands cast like the kernel)."""
    h = sess_embed.astype(jnp.float32)
    B, S, C = h.shape
    L = conv_w.shape[0]
    for blk in range(L // 2):
        res = h
        for sub in range(2):
            layer = 2 * blk + sub
            d = int(layer_dilations[layer])
            y = jnp.broadcast_to(conv_b[layer], (B, S, C)).astype(jnp.float32)
            for j in range(kernel_size):
                shift = (kernel_size - 1 - j) * d
                if shift >= S:
                    continue
                if shift == 0:
                    xs = h
                else:
                    xs = jnp.concatenate(
                        [jnp.zeros((B, shift, C), h.dtype), h[:, : S - shift]], axis=1)
                y = y + jnp.einsum('bsc,cd->bsd',
                                   xs.astype(compute_dtype),
                                   conv_w[layer, j].astype(compute_dtype),
                                   preferred_element_type=jnp.float32)
            mu = y.mean(-1, keepdims=True)
            var = ((y - mu) ** 2).mean(-1, keepdims=True)
            yn = (y - mu) * jax.lax.rsqrt(var + 1e-8)
            yn = yn * ln_w[layer] + ln_b[layer]
            h = jnp.maximum(yn, 0.0)
        h = h + res
    return h[:, -1, :]


if __name__ == "__main__":
    B, S, C = 16, 16, 32          # batch, sequence length, item_embed_size
    item_size = 50
    kernel_size = 3
    dilations = [1, 2, 4]
    num_blocks = 1
    layer_dils = []
    for _ in range(num_blocks):
        for d in dilations:       # ResidualBlock_b: conv1 uses d, conv2 uses 2*d
            layer_dils += [d, 2 * d]
    L = len(layer_dils)

    key = jax.random.PRNGKey(0)
    keys = jax.random.split(key, 8)
    std = 1.0 / (C ** 0.5)
    emb_table = jax.random.uniform(keys[0], (item_size, C), jnp.float32, -std, std)
    conv_w = 0.1 * jax.random.normal(keys[1], (L, kernel_size, C, C), jnp.float32)
    conv_b = 0.1 * jax.random.normal(keys[2], (L, C), jnp.float32)
    ln_w = 1.0 + 0.05 * jax.random.normal(keys[3], (L, C), jnp.float32)
    ln_b = 0.05 * jax.random.normal(keys[4], (L, C), jnp.float32)

    seq_items = jax.random.randint(keys[5], (B, S), 1, item_size)
    seq_length = jax.random.randint(keys[6], (B,), 1, S + 1)

    # --- glue (plain JAX): modify_padding (first l items shifted to the end) ---
    t = jnp.arange(S)[None, :]
    offset = S - seq_length[:, None]
    src = t - offset
    padded_ids = jnp.where(
        src >= 0,
        jnp.take_along_axis(seq_items, jnp.clip(src, 0, S - 1), axis=1),
        0,
    )

    # --- receptive-field truncation BEFORE the embedding gather (last timestep only) ---
    recep = receptive_field(layer_dils, kernel_size)
    s_keep = min(S, max(8, ((recep + 7) // 8) * 8))
    padded_ids = padded_ids[:, S - s_keep:]

    # --- glue (plain JAX): embedding lookup ---
    sess_embed = jnp.take(emb_table, padded_ids, axis=0)   # (B, s_keep, C)

    # --- hot path in Pallas: dilated causal convs + LayerNorm + ReLU + residuals ---
    hidden = nextit_residual_hidden(sess_embed, conv_w, conv_b, ln_w, ln_b,
                                    layer_dils, kernel_size)
    hidden = jax.block_until_ready(hidden)
    assert hidden.shape == (B, C)

    # Parity vs a reference with the same bf16 MXU-operand casting (f32 accumulation).
    ref_bf16 = reference_forward(sess_embed, conv_w, conv_b, ln_w, ln_b,
                                 layer_dils, kernel_size, compute_dtype=jnp.bfloat16)
    assert jnp.allclose(hidden, ref_bf16, rtol=5e-3, atol=5e-3), "mismatch vs bf16 JAX reference"

    # Loose sanity bound vs a pure-f32 reference to quantify the bf16-MXU error.
    ref_f32 = reference_forward(sess_embed, conv_w, conv_b, ln_w, ln_b,
                                layer_dils, kernel_size, compute_dtype=jnp.float32)
    assert jnp.allclose(hidden, ref_f32, rtol=1e-1, atol=1e-1), "bf16-MXU error unexpectedly large"

    print("KERNEL_OK")
</pallas_src>

<mosaic_0001>
module attributes {stable_mosaic.version = 11 : i64} {
  func.func @_nextit_kernel(%arg0: i32, %arg1: memref<8x16x32xf32, #tpu.memory_space<vmem>>, %arg2: memref<6x96x32xbf16, #tpu.memory_space<vmem>>, %arg3: memref<6x32xf32, #tpu.memory_space<vmem>>, %arg4: memref<6x32xf32, #tpu.memory_space<vmem>>, %arg5: memref<6x32xf32, #tpu.memory_space<vmem>>, %arg6: memref<8x32xf32, #tpu.memory_space<vmem>>) attributes {dimension_semantics = [#tpu.dimension_semantics<parallel>], iteration_bounds = array<i64: 2>, scalar_prefetch = 0 : i64, scratch_operands = 0 : i64, tpu.core_type = #tpu.core_type<tc>, window_params = [{transform_indices = @transform_0, window_bounds = array<i64: 8, 16, 32>}, {pipeline_mode = #tpu.pipeline_mode<synchronous>, transform_indices = @transform_1, window_bounds = array<i64: 6, 96, 32>}, {pipeline_mode = #tpu.pipeline_mode<synchronous>, transform_indices = @transform_2, window_bounds = array<i64: 6, 32>}, {pipeline_mode = #tpu.pipeline_mode<synchronous>, transform_indices = @transform_3, window_bounds = array<i64: 6, 32>}, {pipeline_mode = #tpu.pipeline_mode<synchronous>, transform_indices = @transform_4, window_bounds = array<i64: 6, 32>}, {transform_indices = @transform_5, window_bounds = array<i64: 8, 32>}]} {
    %c0 = arith.constant 0 : index
    %c0_0 = arith.constant 0 : index
    %c0_1 = arith.constant 0 : index
    %0 = vector.load %arg1[%c0, %c0_0, %c0_1] : memref<8x16x32xf32, #tpu.memory_space<vmem>>, vector<8x16x32xf32>
    %1 = vector.shape_cast %0 : vector<8x16x32xf32> to vector<128x32xf32>
    %2 = tpu.iota {dimensions = array<i32: 0>} : vector<128x1xi32>
    %c16_i32 = arith.constant 16 : i32
    %c0_i32 = arith.constant 0 : i32
    %3 = arith.cmpi eq, %c16_i32, %c0_i32 : i32
    %c1_i32 = arith.constant 1 : i32
    %4 = arith.select %3, %c1_i32, %c16_i32 : i32
    %5 = vector.broadcast %4 : i32 to vector<128x1xi32>
    %6 = arith.remsi %2, %5 : vector<128x1xi32>
    %c0_i32_2 = arith.constant 0 : i32
    %7 = vector.broadcast %c0_i32_2 : i32 to vector<128x1xi32>
    %8 = arith.cmpi ne, %6, %7 : vector<128x1xi32>
    %c0_i32_3 = arith.constant 0 : i32
    %9 = vector.broadcast %c0_i32_3 : i32 to vector<128x1xi32>
    %10 = arith.cmpi slt, %6, %9 : vector<128x1xi32>
    %c0_i32_4 = arith.constant 0 : i32
    %11 = arith.cmpi slt, %4, %c0_i32_4 : i32
    %12 = vector.broadcast %11 : i1 to vector<128x1xi1>
    %13 = vector.broadcast %12 : vector<128x1xi1> to vector<128x1xi1>
    %14 = arith.xori %10, %13 : vector<128x1xi1>
    %15 = arith.andi %14, %8 : vector<128x1xi1>
    %16 = vector.broadcast %4 : i32 to vector<128x1xi32>
    %17 = arith.addi %6, %16 : vector<128x1xi32>
    %18 = arith.select %15, %17, %6 : vector<128x1xi1>, vector<128x1xi32>
    %c1_i32_5 = arith.constant 1 : i32
    %19 = vector.broadcast %c1_i32_5 : i32 to vector<128x1xi32>
    %20 = arith.cmpi sge, %18, %19 : vector<128x1xi32>
    %c2_i32 = arith.constant 2 : i32
    %21 = vector.broadcast %c2_i32 : i32 to vector<128x1xi32>
    %22 = arith.cmpi sge, %18, %21 : vector<128x1xi32>
    %c4_i32 = arith.constant 4 : i32
    %23 = vector.broadcast %c4_i32 : i32 to vector<128x1xi32>
    %24 = arith.cmpi sge, %18, %23 : vector<128x1xi32>
    %c8_i32 = arith.constant 8 : i32
    %25 = vector.broadcast %c8_i32 : i32 to vector<128x1xi32>
    %26 = arith.cmpi sge, %18, %25 : vector<128x1xi32>
    %c0_6 = arith.constant 0 : index
    %c0_7 = arith.constant 0 : index
    %c0_8 = arith.constant 0 : index
    %27 = vector.load %arg2[%c0_6, %c0_7, %c0_8] : memref<6x96x32xbf16, #tpu.memory_space<vmem>>, vector<1x96x32xbf16>
    %28 = vector.shape_cast %27 : vector<1x96x32xbf16> to vector<96x32xbf16>
    %c2_i32_9 = arith.constant 2 : i32
    %29 = tpu.dynamic_rotate %1 by %c2_i32_9 dim 0 : vector<128x32xf32>, i32 -> vector<128x32xf32>
    %cst = arith.constant 0.000000e+00 : f32
    %30 = vector.shape_cast %22 : vector<128x1xi1> to vector<128x1xi1>
    %31 = vector.broadcast %30 : vector<128x1xi1> to vector<128x32xi1>
    %32 = vector.broadcast %cst : f32 to vector<128x32xf32>
    %33 = arith.select %31, %29, %32 : vector<128x32xi1>, vector<128x32xf32>
    %34 = arith.truncf %33 : vector<128x32xf32> to vector<128x32xbf16>
    %c1_i32_10 = arith.constant 1 : i32
    %35 = tpu.dynamic_rotate %1 by %c1_i32_10 dim 0 : vector<128x32xf32>, i32 -> vector<128x32xf32>
    %cst_11 = arith.constant 0.000000e+00 : f32
    %36 = vector.shape_cast %20 : vector<128x1xi1> to vector<128x1xi1>
    %37 = vector.broadcast %36 : vector<128x1xi1> to vector<128x32xi1>
    %38 = vector.broadcast %cst_11 : f32 to vector<128x32xf32>
    %39 = arith.select %37, %35, %38 : vector<128x32xi1>, vector<128x32xf32>
    %40 = arith.truncf %39 : vector<128x32xf32> to vector<128x32xbf16>
    %41 = arith.truncf %1 : vector<128x32xf32> to vector<128x32xbf16>
    %42 = tpu.concatenate %34, %40, %41 in 1 : vector<128x32xbf16>, vector<128x32xbf16>, vector<128x32xbf16> -> vector<128x96xbf16>
    %cst_12 = arith.constant dense<0.000000e+00> : vector<128x32xf32>
    %43 = tpu.matmul %42, %28, %cst_12 {dimension_numbers = #tpu.dot_dimension_numbers<[1], [0], [0], [1], [0, 0, 1, 1], [], []>} : vector<128x96xbf16>, vector<96x32xbf16>, vector<128x32xf32> -> vector<128x32xf32>
    %c0_13 = arith.constant 0 : index
    %c0_14 = arith.constant 0 : index
    %44 = vector.load %arg3[%c0_13, %c0_14] : memref<6x32xf32, #tpu.memory_space<vmem>>, vector<1x32xf32>
    %45 = vector.shape_cast %44 : vector<1x32xf32> to vector<32xf32>
    %46 = vector.shape_cast %45 : vector<32xf32> to vector<1x32xf32>
    %47 = vector.broadcast %46 : vector<1x32xf32> to vector<128x32xf32>
    %48 = arith.addf %43, %47 : vector<128x32xf32>
    %cst_15 = arith.constant dense<0.000000e+00> : vector<128xf32>
    %49 = vector.multi_reduction <add>, %48, %cst_15 [1] : vector<128x32xf32> to vector<128xf32>
    %50 = vector.shape_cast %49 : vector<128xf32> to vector<128x1xf32>
    %cst_16 = arith.constant 3.200000e+01 : f32
    %51 = vector.broadcast %cst_16 : f32 to vector<128x1xf32>
    %52 = arith.divf %50, %51 : vector<128x1xf32>
    %53 = vector.broadcast %52 : vector<128x1xf32> to vector<128x32xf32>
    %54 = arith.subf %48, %53 : vector<128x32xf32>
    %55 = arith.mulf %54, %54 : vector<128x32xf32>
    %cst_17 = arith.constant dense<0.000000e+00> : vector<128xf32>
    %56 = vector.multi_reduction <add>, %55, %cst_17 [1] : vector<128x32xf32> to vector<128xf32>
    %57 = vector.shape_cast %56 : vector<128xf32> to vector<128x1xf32>
    %cst_18 = arith.constant 3.200000e+01 : f32
    %58 = vector.broadcast %cst_18 : f32 to vector<128x1xf32>
    %59 = arith.divf %57, %58 : vector<128x1xf32>
    %60 = vector.broadcast %52 : vector<128x1xf32> to vector<128x32xf32>
    %61 = arith.subf %48, %60 : vector<128x32xf32>
    %cst_19 = arith.constant 9.99999993E-9 : f32
    %62 = vector.broadcast %cst_19 : f32 to vector<128x1xf32>
    %63 = arith.addf %59, %62 : vector<128x1xf32>
    %64 = math.rsqrt %63 : vector<128x1xf32>
    %65 = vector.broadcast %64 : vector<128x1xf32> to vector<128x32xf32>
    %66 = arith.mulf %61, %65 : vector<128x32xf32>
    %c0_20 = arith.constant 0 : index
    %c0_21 = arith.constant 0 : index
    %67 = vector.load %arg4[%c0_20, %c0_21] : memref<6x32xf32, #tpu.memory_space<vmem>>, vector<1x32xf32>
    %68 = vector.shape_cast %67 : vector<1x32xf32> to vector<32xf32>
    %69 = vector.shape_cast %68 : vector<32xf32> to vector<1x32xf32>
    %70 = vector.broadcast %69 : vector<1x32xf32> to vector<128x32xf32>
    %71 = arith.mulf %66, %70 : vector<128x32xf32>
    %c0_22 = arith.constant 0 : index
    %c0_23 = arith.constant 0 : index
    %72 = vector.load %arg5[%c0_22, %c0_23] : memref<6x32xf32, #tpu.memory_space<vmem>>, vector<1x32xf32>
    %73 = vector.shape_cast %72 : vector<1x32xf32> to vector<32xf32>
    %74 = vector.shape_cast %73 : vector<32xf32> to vector<1x32xf32>
    %75 = vector.broadcast %74 : vector<1x32xf32> to vector<128x32xf32>
    %76 = arith.addf %71, %75 : vector<128x32xf32>
    %cst_24 = arith.constant 0.000000e+00 : f32
    %77 = vector.broadcast %cst_24 : f32 to vector<128x32xf32>
    %78 = arith.maximumf %76, %77 : vector<128x32xf32>
    %c1 = arith.constant 1 : index
    %c0_25 = arith.constant 0 : index
    %c0_26 = arith.constant 0 : index
    %79 = vector.load %arg2[%c1, %c0_25, %c0_26] : memref<6x96x32xbf16, #tpu.memory_space<vmem>>, vector<1x96x32xbf16>
    %80 = vector.shape_cast %79 : vector<1x96x32xbf16> to vector<96x32xbf16>
    %c4_i32_27 = arith.constant 4 : i32
    %81 = tpu.dynamic_rotate %78 by %c4_i32_27 dim 0 : vector<128x32xf32>, i32 -> vector<128x32xf32>
    %cst_28 = arith.constant 0.000000e+00 : f32
    %82 = vector.shape_cast %24 : vector<128x1xi1> to vector<128x1xi1>
    %83 = vector.broadcast %82 : vector<128x1xi1> to vector<128x32xi1>
    %84 = vector.broadcast %cst_28 : f32 to vector<128x32xf32>
    %85 = arith.select %83, %81, %84 : vector<128x32xi1>, vector<128x32xf32>
    %86 = arith.truncf %85 : vector<128x32xf32> to vector<128x32xbf16>
    %c2_i32_29 = arith.constant 2 : i32
    %87 = tpu.dynamic_rotate %78 by %c2_i32_29 dim 0 : vector<128x32xf32>, i32 -> vector<128x32xf32>
    %cst_30 = arith.constant 0.000000e+00 : f32
    %88 = vector.shape_cast %22 : vector<128x1xi1> to vector<128x1xi1>
    %89 = vector.broadcast %88 : vector<128x1xi1> to vector<128x32xi1>
    %90 = vector.broadcast %cst_30 : f32 to vector<128x32xf32>
    %91 = arith.select %89, %87, %90 : vector<128x32xi1>, vector<128x32xf32>
    %92 = arith.truncf %91 : vector<128x32xf32> to vector<128x32xbf16>
    %93 = arith.truncf %78 : vector<128x32xf32> to vector<128x32xbf16>
    %94 = tpu.concatenate %86, %92, %93 in 1 : vector<128x32xbf16>, vector<128x32xbf16>, vector<128x32xbf16> -> vector<128x96xbf16>
    %cst_31 = arith.constant dense<0.000000e+00> : vector<128x32xf32>
    %95 = tpu.matmul %94, %80, %cst_31 {dimension_numbers = #tpu.dot_dimension_numbers<[1], [0], [0], [1], [0, 0, 1, 1], [], []>} : vector<128x96xbf16>, vector<96x32xbf16>, vector<128x32xf32> -> vector<128x32xf32>
    %c1_32 = arith.constant 1 : index
    %c0_33 = arith.constant 0 : index
    %96 = vector.load %arg3[%c1_32, %c0_33] : memref<6x32xf32, #tpu.memory_space<vmem>>, vector<1x32xf32>
    %97 = vector.shape_cast %96 : vector<1x32xf32> to vector<32xf32>
    %98 = vector.shape_cast %97 : vector<32xf32> to vector<1x32xf32>
    %99 = vector.broadcast %98 : vector<1x32xf32> to vector<128x32xf32>
    %100 = arith.addf %95, %99 : vector<128x32xf32>
    %cst_34 = arith.constant dense<0.000000e+00> : vector<128xf32>
    %101 = vector.multi_reduction <add>, %100, %cst_34 [1] : vector<128x32xf32> to vector<128xf32>
    %102 = vector.shape_cast %101 : vector<128xf32> to vector<128x1xf32>
    %cst_35 = arith.constant 3.200000e+01 : f32
    %103 = vector.broadcast %cst_35 : f32 to vector<128x1xf32>
    %104 = arith.divf %102, %103 : vector<128x1xf32>
    %105 = vector.broadcast %104 : vector<128x1xf32> to vector<128x32xf32>
    %106 = arith.subf %100, %105 : vector<128x32xf32>
    %107 = arith.mulf %106, %106 : vector<128x32xf32>
    %cst_36 = arith.constant dense<0.000000e+00> : vector<128xf32>
    %108 = vector.multi_reduction <add>, %107, %cst_36 [1] : vector<128x32xf32> to vector<128xf32>
    %109 = vector.shape_cast %108 : vector<128xf32> to vector<128x1xf32>
    %cst_37 = arith.constant 3.200000e+01 : f32
    %110 = vector.broadcast %cst_37 : f32 to vector<128x1xf32>
    %111 = arith.divf %109, %110 : vector<128x1xf32>
    %112 = vector.broadcast %104 : vector<128x1xf32> to vector<128x32xf32>
    %113 = arith.subf %100, %112 : vector<128x32xf32>
    %cst_38 = arith.constant 9.99999993E-9 : f32
    %114 = vector.broadcast %cst_38 : f32 to vector<128x1xf32>
    %115 = arith.addf %111, %114 : vector<128x1xf32>
    %116 = math.rsqrt %115 : vector<128x1xf32>
    %117 = vector.broadcast %116 : vector<128x1xf32> to vector<128x32xf32>
    %118 = arith.mulf %113, %117 : vector<128x32xf32>
    %c1_39 = arith.constant 1 : index
    %c0_40 = arith.constant 0 : index
    %119 = vector.load %arg4[%c1_39, %c0_40] : memref<6x32xf32, #tpu.memory_space<vmem>>, vector<1x32xf32>
    %120 = vector.shape_cast %119 : vector<1x32xf32> to vector<32xf32>
    %121 = vector.shape_cast %120 : vector<32xf32> to vector<1x32xf32>
    %122 = vector.broadcast %121 : vector<1x32xf32> to vector<128x32xf32>
    %123 = arith.mulf %118, %122 : vector<128x32xf32>
    %c1_41 = arith.constant 1 : index
    %c0_42 = arith.constant 0 : index
    %124 = vector.load %arg5[%c1_41, %c0_42] : memref<6x32xf32, #tpu.memory_space<vmem>>, vector<1x32xf32>
    %125 = vector.shape_cast %124 : vector<1x32xf32> to vector<32xf32>
    %126 = vector.shape_cast %125 : vector<32xf32> to vector<1x32xf32>
    %127 = vector.broadcast %126 : vector<1x32xf32> to vector<128x32xf32>
    %128 = arith.addf %123, %127 : vector<128x32xf32>
    %cst_43 = arith.constant 0.000000e+00 : f32
    %129 = vector.broadcast %cst_43 : f32 to vector<128x32xf32>
    %130 = arith.maximumf %128, %129 : vector<128x32xf32>
    %131 = arith.addf %130, %1 : vector<128x32xf32>
    %c2 = arith.constant 2 : index
    %c0_44 = arith.constant 0 : index
    %c0_45 = arith.constant 0 : index
    %132 = vector.load %arg2[%c2, %c0_44, %c0_45] : memref<6x96x32xbf16, #tpu.memory_space<vmem>>, vector<1x96x32xbf16>
    %133 = vector.shape_cast %132 : vector<1x96x32xbf16> to vector<96x32xbf16>
    %c4_i32_46 = arith.constant 4 : i32
    %134 = tpu.dynamic_rotate %131 by %c4_i32_46 dim 0 : vector<128x32xf32>, i32 -> vector<128x32xf32>
    %cst_47 = arith.constant 0.000000e+00 : f32
    %135 = vector.shape_cast %24 : vector<128x1xi1> to vector<128x1xi1>
    %136 = vector.broadcast %135 : vector<128x1xi1> to vector<128x32xi1>
    %137 = vector.broadcast %cst_47 : f32 to vector<128x32xf32>
    %138 = arith.select %136, %134, %137 : vector<128x32xi1>, vector<128x32xf32>
    %139 = arith.truncf %138 : vector<128x32xf32> to vector<128x32xbf16>
    %c2_i32_48 = arith.constant 2 : i32
    %140 = tpu.dynamic_rotate %131 by %c2_i32_48 dim 0 : vector<128x32xf32>, i32 -> vector<128x32xf32>
    %cst_49 = arith.constant 0.000000e+00 : f32
    %141 = vector.shape_cast %22 : vector<128x1xi1> to vector<128x1xi1>
    %142 = vector.broadcast %141 : vector<128x1xi1> to vector<128x32xi1>
    %143 = vector.broadcast %cst_49 : f32 to vector<128x32xf32>
    %144 = arith.select %142, %140, %143 : vector<128x32xi1>, vector<128x32xf32>
    %145 = arith.truncf %144 : vector<128x32xf32> to vector<128x32xbf16>
    %146 = arith.truncf %131 : vector<128x32xf32> to vector<128x32xbf16>
    %147 = tpu.concatenate %139, %145, %146 in 1 : vector<128x32xbf16>, vector<128x32xbf16>, vector<128x32xbf16> -> vector<128x96xbf16>
    %cst_50 = arith.constant dense<0.000000e+00> : vector<128x32xf32>
    %148 = tpu.matmul %147, %133, %cst_50 {dimension_numbers = #tpu.dot_dimension_numbers<[1], [0], [0], [1], [0, 0, 1, 1], [], []>} : vector<128x96xbf16>, vector<96x32xbf16>, vector<128x32xf32> -> vector<128x32xf32>
    %c2_51 = arith.constant 2 : index
    %c0_52 = arith.constant 0 : index
    %149 = vector.load %arg3[%c2_51, %c0_52] : memref<6x32xf32, #tpu.memory_space<vmem>>, vector<1x32xf32>
    %150 = vector.shape_cast %149 : vector<1x32xf32> to vector<32xf32>
    %151 = vector.shape_cast %150 : vector<32xf32> to vector<1x32xf32>
    %152 = vector.broadcast %151 : vector<1x32xf32> to vector<128x32xf32>
    %153 = arith.addf %148, %152 : vector<128x32xf32>
    %cst_53 = arith.constant dense<0.000000e+00> : vector<128xf32>
    %154 = vector.multi_reduction <add>, %153, %cst_53 [1] : vector<128x32xf32> to vector<128xf32>
    %155 = vector.shape_cast %154 : vector<128xf32> to vector<128x1xf32>
    %cst_54 = arith.constant 3.200000e+01 : f32
    %156 = vector.broadcast %cst_54 : f32 to vector<128x1xf32>
    %157 = arith.divf %155, %156 : vector<128x1xf32>
    %158 = vector.broadcast %157 : vector<128x1xf32> to vector<128x32xf32>
    %159 = arith.subf %153, %158 : vector<128x32xf32>
    %160 = arith.mulf %159, %159 : vector<128x32xf32>
    %cst_55 = arith.constant dense<0.000000e+00> : vector<128xf32>
    %161 = vector.multi_reduction <add>, %160, %cst_55 [1] : vector<128x32xf32> to vector<128xf32>
    %162 = vector.shape_cast %161 : vector<128xf32> to vector<128x1xf32>
    %cst_56 = arith.constant 3.200000e+01 : f32
    %163 = vector.broadcast %cst_56 : f32 to vector<128x1xf32>
    %164 = arith.divf %162, %163 : vector<128x1xf32>
    %165 = vector.broadcast %157 : vector<128x1xf32> to vector<128x32xf32>
    %166 = arith.subf %153, %165 : vector<128x32xf32>
    %cst_57 = arith.constant 9.99999993E-9 : f32
    %167 = vector.broadcast %cst_57 : f32 to vector<128x1xf32>
    %168 = arith.addf %164, %167 : vector<128x1xf32>
    %169 = math.rsqrt %168 : vector<128x1xf32>
    %170 = vector.broadcast %169 : vector<128x1xf32> to vector<128x32xf32>
    %171 = arith.mulf %166, %170 : vector<128x32xf32>
    %c2_58 = arith.constant 2 : index
    %c0_59 = arith.constant 0 : index
    %172 = vector.load %arg4[%c2_58, %c0_59] : memref<6x32xf32, #tpu.memory_space<vmem>>, vector<1x32xf32>
    %173 = vector.shape_cast %172 : vector<1x32xf32> to vector<32xf32>
    %174 = vector.shape_cast %173 : vector<32xf32> to vector<1x32xf32>
    %175 = vector.broadcast %174 : vector<1x32xf32> to vector<128x32xf32>
    %176 = arith.mulf %171, %175 : vector<128x32xf32>
    %c2_60 = arith.constant 2 : index
    %c0_61 = arith.constant 0 : index
    %177 = vector.load %arg5[%c2_60, %c0_61] : memref<6x32xf32, #tpu.memory_space<vmem>>, vector<1x32xf32>
    %178 = vector.shape_cast %177 : vector<1x32xf32> to vector<32xf32>
    %179 = vector.shape_cast %178 : vector<32xf32> to vector<1x32xf32>
    %180 = vector.broadcast %179 : vector<1x32xf32> to vector<128x32xf32>
    %181 = arith.addf %176, %180 : vector<128x32xf32>
    %cst_62 = arith.constant 0.000000e+00 : f32
    %182 = vector.broadcast %cst_62 : f32 to vector<128x32xf32>
    %183 = arith.maximumf %181, %182 : vector<128x32xf32>
    %c3 = arith.constant 3 : index
    %c0_63 = arith.constant 0 : index
    %c0_64 = arith.constant 0 : index
    %184 = vector.load %arg2[%c3, %c0_63, %c0_64] : memref<6x96x32xbf16, #tpu.memory_space<vmem>>, vector<1x96x32xbf16>
    %185 = vector.shape_cast %184 : vector<1x96x32xbf16> to vector<96x32xbf16>
    %c8_i32_65 = arith.constant 8 : i32
    %186 = tpu.dynamic_rotate %183 by %c8_i32_65 dim 0 : vector<128x32xf32>, i32 -> vector<128x32xf32>
    %cst_66 = arith.constant 0.000000e+00 : f32
    %187 = vector.shape_cast %26 : vector<128x1xi1> to vector<128x1xi1>
    %188 = vector.broadcast %187 : vector<128x1xi1> to vector<128x32xi1>
    %189 = vector.broadcast %cst_66 : f32 to vector<128x32xf32>
    %190 = arith.select %188, %186, %189 : vector<128x32xi1>, vector<128x32xf32>
    %191 = arith.truncf %190 : vector<128x32xf32> to vector<128x32xbf16>
    %c4_i32_67 = arith.constant 4 : i32
    %192 = tpu.dynamic_rotate %183 by %c4_i32_67 dim 0 : vector<128x32xf32>, i32 -> vector<128x32xf32>
    %cst_68 = arith.constant 0.000000e+00 : f32
    %193 = vector.shape_cast %24 : vector<128x1xi1> to vector<128x1xi1>
    %194 = vector.broadcast %193 : vector<128x1xi1> to vector<128x32xi1>
    %195 = vector.broadcast %cst_68 : f32 to vector<128x32xf32>
    %196 = arith.select %194, %192, %195 : vector<128x32xi1>, vector<128x32xf32>
    %197 = arith.truncf %196 : vector<128x32xf32> to vector<128x32xbf16>
    %198 = arith.truncf %183 : vector<128x32xf32> to vector<128x32xbf16>
    %199 = tpu.concatenate %191, %197, %198 in 1 : vector<128x32xbf16>, vector<128x32xbf16>, vector<128x32xbf16> -> vector<128x96xbf16>
    %cst_69 = arith.constant dense<0.000000e+00> : vector<128x32xf32>
    %200 = tpu.matmul %199, %185, %cst_69 {dimension_numbers = #tpu.dot_dimension_numbers<[1], [0], [0], [1], [0, 0, 1, 1], [], []>} : vector<128x96xbf16>, vector<96x32xbf16>, vector<128x32xf32> -> vector<128x32xf32>
    %c3_70 = arith.constant 3 : index
    %c0_71 = arith.constant 0 : index
    %201 = vector.load %arg3[%c3_70, %c0_71] : memref<6x32xf32, #tpu.memory_space<vmem>>, vector<1x32xf32>
    %202 = vector.shape_cast %201 : vector<1x32xf32> to vector<32xf32>
    %203 = vector.shape_cast %202 : vector<32xf32> to vector<1x32xf32>
    %204 = vector.broadcast %203 : vector<1x32xf32> to vector<128x32xf32>
    %205 = arith.addf %200, %204 : vector<128x32xf32>
    %cst_72 = arith.constant dense<0.000000e+00> : vector<128xf32>
    %206 = vector.multi_reduction <add>, %205, %cst_72 [1] : vector<128x32xf32> to vector<128xf32>
    %207 = vector.shape_cast %206 : vector<128xf32> to vector<128x1xf32>
    %cst_73 = arith.constant 3.200000e+01 : f32
    %208 = vector.broadcast %cst_73 : f32 to vector<128x1xf32>
    %209 = arith.divf %207, %208 : vector<128x1xf32>
    %210 = vector.broadcast %209 : vector<128x1xf32> to vector<128x32xf32>
    %211 = arith.subf %205, %210 : vector<128x32xf32>
    %212 = arith.mulf %211, %211 : vector<128x32xf32>
    %cst_74 = arith.constant dense<0.000000e+00> : vector<128xf32>
    %213 = vector.multi_reduction <add>, %212, %cst_74 [1] : vector<128x32xf32> to vector<128xf32>
    %214 = vector.shape_cast %213 : vector<128xf32> to vector<128x1xf32>
    %cst_75 = arith.constant 3.200000e+01 : f32
    %215 = vector.broadcast %cst_75 : f32 to vector<128x1xf32>
    %216 = arith.divf %214, %215 : vector<128x1xf32>
    %217 = vector.broadcast %209 : vector<128x1xf32> to vector<128x32xf32>
    %218 = arith.subf %205, %217 : vector<128x32xf32>
    %cst_76 = arith.constant 9.99999993E-9 : f32
    %219 = vector.broadcast %cst_76 : f32 to vector<128x1xf32>
    %220 = arith.addf %216, %219 : vector<128x1xf32>
    %221 = math.rsqrt %220 : vector<128x1xf32>
    %222 = vector.broadcast %221 : vector<128x1xf32> to vector<128x32xf32>
    %223 = arith.mulf %218, %222 : vector<128x32xf32>
    %c3_77 = arith.constant 3 : index
    %c0_78 = arith.constant 0 : index
    %224 = vector.load %arg4[%c3_77, %c0_78] : memref<6x32xf32, #tpu.memory_space<vmem>>, vector<1x32xf32>
    %225 = vector.shape_cast %224 : vector<1x32xf32> to vector<32xf32>
    %226 = vector.shape_cast %225 : vector<32xf32> to vector<1x32xf32>
    %227 = vector.broadcast %226 : vector<1x32xf32> to vector<128x32xf32>
    %228 = arith.mulf %223, %227 : vector<128x32xf32>
    %c3_79 = arith.constant 3 : index
    %c0_80 = arith.constant 0 : index
    %229 = vector.load %arg5[%c3_79, %c0_80] : memref<6x32xf32, #tpu.memory_space<vmem>>, vector<1x32xf32>
    %230 = vector.shape_cast %229 : vector<1x32xf32> to vector<32xf32>
    %231 = vector.shape_cast %230 : vector<32xf32> to vector<1x32xf32>
    %232 = vector.broadcast %231 : vector<1x32xf32> to vector<128x32xf32>
    %233 = arith.addf %228, %232 : vector<128x32xf32>
    %cst_81 = arith.constant 0.000000e+00 : f32
    %234 = vector.broadcast %cst_81 : f32 to vector<128x32xf32>
    %235 = arith.maximumf %233, %234 : vector<128x32xf32>
    %236 = arith.addf %235, %131 : vector<128x32xf32>
    %c4 = arith.constant 4 : index
    %c0_82 = arith.constant 0 : index
    %c0_83 = arith.constant 0 : index
    %237 = vector.load %arg2[%c4, %c0_82, %c0_83] : memref<6x96x32xbf16, #tpu.memory_space<vmem>>, vector<1x96x32xbf16>
    %238 = vector.shape_cast %237 : vector<1x96x32xbf16> to vector<96x32xbf16>
    %c8_i32_84 = arith.constant 8 : i32
    %239 = tpu.dynamic_rotate %236 by %c8_i32_84 dim 0 : vector<128x32xf32>, i32 -> vector<128x32xf32>
    %cst_85 = arith.constant 0.000000e+00 : f32
    %240 = vector.shape_cast %26 : vector<128x1xi1> to vector<128x1xi1>
    %241 = vector.broadcast %240 : vector<128x1xi1> to vector<128x32xi1>
    %242 = vector.broadcast %cst_85 : f32 to vector<128x32xf32>
    %243 = arith.select %241, %239, %242 : vector<128x32xi1>, vector<128x32xf32>
    %244 = arith.truncf %243 : vector<128x32xf32> to vector<128x32xbf16>
    %c4_i32_86 = arith.constant 4 : i32
    %245 = tpu.dynamic_rotate %236 by %c4_i32_86 dim 0 : vector<128x32xf32>, i32 -> vector<128x32xf32>
    %cst_87 = arith.constant 0.000000e+00 : f32
    %246 = vector.shape_cast %24 : vector<128x1xi1> to vector<128x1xi1>
    %247 = vector.broadcast %246 : vector<128x1xi1> to vector<128x32xi1>
    %248 = vector.broadcast %cst_87 : f32 to vector<128x32xf32>
    %249 = arith.select %247, %245, %248 : vector<128x32xi1>, vector<128x32xf32>
    %250 = arith.truncf %249 : vector<128x32xf32> to vector<128x32xbf16>
    %251 = arith.truncf %236 : vector<128x32xf32> to vector<128x32xbf16>
    %252 = tpu.concatenate %244, %250, %251 in 1 : vector<128x32xbf16>, vector<128x32xbf16>, vector<128x32xbf16> -> vector<128x96xbf16>
    %cst_88 = arith.constant dense<0.000000e+00> : vector<128x32xf32>
    %253 = tpu.matmul %252, %238, %cst_88 {dimension_numbers = #tpu.dot_dimension_numbers<[1], [0], [0], [1], [0, 0, 1, 1], [], []>} : vector<128x96xbf16>, vector<96x32xbf16>, vector<128x32xf32> -> vector<128x32xf32>
    %c4_89 = arith.constant 4 : index
    %c0_90 = arith.constant 0 : index
    %254 = vector.load %arg3[%c4_89, %c0_90] : memref<6x32xf32, #tpu.memory_space<vmem>>, vector<1x32xf32>
    %255 = vector.shape_cast %254 : vector<1x32xf32> to vector<32xf32>
    %256 = vector.shape_cast %255 : vector<32xf32> to vector<1x32xf32>
    %257 = vector.broadcast %256 : vector<1x32xf32> to vector<128x32xf32>
    %258 = arith.addf %253, %257 : vector<128x32xf32>
    %cst_91 = arith.constant dense<0.000000e+00> : vector<128xf32>
    %259 = vector.multi_reduction <add>, %258, %cst_91 [1] : vector<128x32xf32> to vector<128xf32>
    %260 = vector.shape_cast %259 : vector<128xf32> to vector<128x1xf32>
    %cst_92 = arith.constant 3.200000e+01 : f32
    %261 = vector.broadcast %cst_92 : f32 to vector<128x1xf32>
    %262 = arith.divf %260, %261 : vector<128x1xf32>
    %263 = vector.broadcast %262 : vector<128x1xf32> to vector<128x32xf32>
    %264 = arith.subf %258, %263 : vector<128x32xf32>
    %265 = arith.mulf %264, %264 : vector<128x32xf32>
    %cst_93 = arith.constant dense<0.000000e+00> : vector<128xf32>
    %266 = vector.multi_reduction <add>, %265, %cst_93 [1] : vector<128x32xf32> to vector<128xf32>
    %267 = vector.shape_cast %266 : vector<128xf32> to vector<128x1xf32>
    %cst_94 = arith.constant 3.200000e+01 : f32
    %268 = vector.broadcast %cst_94 : f32 to vector<128x1xf32>
    %269 = arith.divf %267, %268 : vector<128x1xf32>
    %270 = vector.broadcast %262 : vector<128x1xf32> to vector<128x32xf32>
    %271 = arith.subf %258, %270 : vector<128x32xf32>
    %cst_95 = arith.constant 9.99999993E-9 : f32
    %272 = vector.broadcast %cst_95 : f32 to vector<128x1xf32>
    %273 = arith.addf %269, %272 : vector<128x1xf32>
    %274 = math.rsqrt %273 : vector<128x1xf32>
    %275 = vector.broadcast %274 : vector<128x1xf32> to vector<128x32xf32>
    %276 = arith.mulf %271, %275 : vector<128x32xf32>
    %c4_96 = arith.constant 4 : index
    %c0_97 = arith.constant 0 : index
    %277 = vector.load %arg4[%c4_96, %c0_97] : memref<6x32xf32, #tpu.memory_space<vmem>>, vector<1x32xf32>
    %278 = vector.shape_cast %277 : vector<1x32xf32> to vector<32xf32>
    %279 = vector.shape_cast %278 : vector<32xf32> to vector<1x32xf32>
    %280 = vector.broadcast %279 : vector<1x32xf32> to vector<128x32xf32>
    %281 = arith.mulf %276, %280 : vector<128x32xf32>
    %c4_98 = arith.constant 4 : index
    %c0_99 = arith.constant 0 : index
    %282 = vector.load %arg5[%c4_98, %c0_99] : memref<6x32xf32, #tpu.memory_space<vmem>>, vector<1x32xf32>
    %283 = vector.shape_cast %282 : vector<1x32xf32> to vector<32xf32>
    %284 = vector.shape_cast %283 : vector<32xf32> to vector<1x32xf32>
    %285 = vector.broadcast %284 : vector<1x32xf32> to vector<128x32xf32>
    %286 = arith.addf %281, %285 : vector<128x32xf32>
    %cst_100 = arith.constant 0.000000e+00 : f32
    %287 = vector.broadcast %cst_100 : f32 to vector<128x32xf32>
    %288 = arith.maximumf %286, %287 : vector<128x32xf32>
    %c5 = arith.constant 5 : index
    %c0_101 = arith.constant 0 : index
    %c0_102 = arith.constant 0 : index
    %289 = vector.load %arg2[%c5, %c0_101, %c0_102] : memref<6x96x32xbf16, #tpu.memory_space<vmem>>, vector<1x96x32xbf16>
    %290 = vector.shape_cast %289 : vector<1x96x32xbf16> to vector<96x32xbf16>
    %c8_i32_103 = arith.constant 8 : i32
    %291 = tpu.dynamic_rotate %288 by %c8_i32_103 dim 0 : vector<128x32xf32>, i32 -> vector<128x32xf32>
    %cst_104 = arith.constant 0.000000e+00 : f32
    %292 = vector.shape_cast %26 : vector<128x1xi1> to vector<128x1xi1>
    %293 = vector.broadcast %292 : vector<128x1xi1> to vector<128x32xi1>
    %294 = vector.broadcast %cst_104 : f32 to vector<128x32xf32>
    %295 = arith.select %293, %291, %294 : vector<128x32xi1>, vector<128x32xf32>
    %296 = arith.truncf %295 : vector<128x32xf32> to vector<128x32xbf16>
    %297 = arith.truncf %288 : vector<128x32xf32> to vector<128x32xbf16>
    %298 = tpu.concatenate %296, %297 in 1 : vector<128x32xbf16>, vector<128x32xbf16> -> vector<128x64xbf16>
    %299 = vector.extract_strided_slice %290 {offsets = [32, 0], sizes = [64, 32], strides = [1, 1]} : vector<96x32xbf16> to vector<64x32xbf16>
    %cst_105 = arith.constant dense<0.000000e+00> : vector<128x32xf32>
    %300 = tpu.matmul %298, %299, %cst_105 {dimension_numbers = #tpu.dot_dimension_numbers<[1], [0], [0], [1], [0, 0, 1, 1], [], []>} : vector<128x64xbf16>, vector<64x32xbf16>, vector<128x32xf32> -> vector<128x32xf32>
    %c5_106 = arith.constant 5 : index
    %c0_107 = arith.constant 0 : index
    %301 = vector.load %arg3[%c5_106, %c0_107] : memref<6x32xf32, #tpu.memory_space<vmem>>, vector<1x32xf32>
    %302 = vector.shape_cast %301 : vector<1x32xf32> to vector<32xf32>
    %303 = vector.shape_cast %302 : vector<32xf32> to vector<1x32xf32>
    %304 = vector.broadcast %303 : vector<1x32xf32> to vector<128x32xf32>
    %305 = arith.addf %300, %304 : vector<128x32xf32>
    %cst_108 = arith.constant dense<0.000000e+00> : vector<128xf32>
    %306 = vector.multi_reduction <add>, %305, %cst_108 [1] : vector<128x32xf32> to vector<128xf32>
    %307 = vector.shape_cast %306 : vector<128xf32> to vector<128x1xf32>
    %cst_109 = arith.constant 3.200000e+01 : f32
    %308 = vector.broadcast %cst_109 : f32 to vector<128x1xf32>
    %309 = arith.divf %307, %308 : vector<128x1xf32>
    %310 = vector.broadcast %309 : vector<128x1xf32> to vector<128x32xf32>
    %311 = arith.subf %305, %310 : vector<128x32xf32>
    %312 = arith.mulf %311, %311 : vector<128x32xf32>
    %cst_110 = arith.constant dense<0.000000e+00> : vector<128xf32>
    %313 = vector.multi_reduction <add>, %312, %cst_110 [1] : vector<128x32xf32> to vector<128xf32>
    %314 = vector.shape_cast %313 : vector<128xf32> to vector<128x1xf32>
    %cst_111 = arith.constant 3.200000e+01 : f32
    %315 = vector.broadcast %cst_111 : f32 to vector<128x1xf32>
    %316 = arith.divf %314, %315 : vector<128x1xf32>
    %317 = vector.broadcast %309 : vector<128x1xf32> to vector<128x32xf32>
    %318 = arith.subf %305, %317 : vector<128x32xf32>
    %cst_112 = arith.constant 9.99999993E-9 : f32
    %319 = vector.broadcast %cst_112 : f32 to vector<128x1xf32>
    %320 = arith.addf %316, %319 : vector<128x1xf32>
    %321 = math.rsqrt %320 : vector<128x1xf32>
    %322 = vector.broadcast %321 : vector<128x1xf32> to vector<128x32xf32>
    %323 = arith.mulf %318, %322 : vector<128x32xf32>
    %c5_113 = arith.constant 5 : index
    %c0_114 = arith.constant 0 : index
    %324 = vector.load %arg4[%c5_113, %c0_114] : memref<6x32xf32, #tpu.memory_space<vmem>>, vector<1x32xf32>
    %325 = vector.shape_cast %324 : vector<1x32xf32> to vector<32xf32>
    %326 = vector.shape_cast %325 : vector<32xf32> to vector<1x32xf32>
    %327 = vector.broadcast %326 : vector<1x32xf32> to vector<128x32xf32>
    %328 = arith.mulf %323, %327 : vector<128x32xf32>
    %c5_115 = arith.constant 5 : index
    %c0_116 = arith.constant 0 : index
    %329 = vector.load %arg5[%c5_115, %c0_116] : memref<6x32xf32, #tpu.memory_space<vmem>>, vector<1x32xf32>
    %330 = vector.shape_cast %329 : vector<1x32xf32> to vector<32xf32>
    %331 = vector.shape_cast %330 : vector<32xf32> to vector<1x32xf32>
    %332 = vector.broadcast %331 : vector<1x32xf32> to vector<128x32xf32>
    %333 = arith.addf %328, %332 : vector<128x32xf32>
    %cst_117 = arith.constant 0.000000e+00 : f32
    %334 = vector.broadcast %cst_117 : f32 to vector<128x32xf32>
    %335 = arith.maximumf %333, %334 : vector<128x32xf32>
    %336 = arith.addf %335, %236 : vector<128x32xf32>
    %337 = vector.shape_cast %336 : vector<128x32xf32> to vector<8x16x32xf32>
    %338 = vector.extract_strided_slice %337 {offsets = [0, 15, 0], sizes = [8, 1, 32], strides = [1, 1, 1]} : vector<8x16x32xf32> to vector<8x1x32xf32>
    %339 = vector.shape_cast %338 : vector<8x1x32xf32> to vector<8x32xf32>
    %c0_118 = arith.constant 0 : index
    %c0_119 = arith.constant 0 : index
    %340 = vector.load %arg6[%c0_118, %c0_119] : memref<8x32xf32, #tpu.memory_space<vmem>>, vector<8x32xf32>
    tpu.vector_store %arg6[%c0_118, %c0_119], %339 {strides = array<i32>} : memref<8x32xf32, #tpu.memory_space<vmem>>, vector<8x32xf32>,
    return
  }
  func.func @transform_0(%arg0: i32) -> (i32, i32, i32) {
    %c0_i32 = arith.constant 0 : i32
    %c0_i32_0 = arith.constant 0 : i32
    %c0_i32_1 = arith.constant 0 : i32
    return %arg0, %c0_i32, %c0_i32_0 : i32, i32, i32
  }
  func.func @transform_1(%arg0: i32) -> (i32, i32, i32) {
    %c0_i32 = arith.constant 0 : i32
    %c0_i32_0 = arith.constant 0 : i32
    %c0_i32_1 = arith.constant 0 : i32
    %c0_i32_2 = arith.constant 0 : i32
    return %c0_i32, %c0_i32_0, %c0_i32_1 : i32, i32, i32
  }
  func.func @transform_2(%arg0: i32) -> (i32, i32) {
    %c0_i32 = arith.constant 0 : i32
    %c0_i32_0 = arith.constant 0 : i32
    %c0_i32_1 = arith.constant 0 : i32
    return %c0_i32, %c0_i32_0 : i32, i32
  }
  func.func @transform_3(%arg0: i32) -> (i32, i32) {
    %c0_i32 = arith.constant 0 : i32
    %c0_i32_0 = arith.constant 0 : i32
    %c0_i32_1 = arith.constant 0 : i32
    return %c0_i32, %c0_i32_0 : i32, i32
  }
  func.func @transform_4(%arg0: i32) -> (i32, i32) {
    %c0_i32 = arith.constant 0 : i32
    %c0_i32_0 = arith.constant 0 : i32
    %c0_i32_1 = arith.constant 0 : i32
    return %c0_i32, %c0_i32_0 : i32, i32
  }
  func.func @transform_5(%arg0: i32) -> (i32, i32) {
    %c0_i32 = arith.constant 0 : i32
    %c0_i32_0 = arith.constant 0 : i32
    return %arg0, %c0_i32 : i32, i32
  }
}

</mosaic_0001>

<llo_original>
// kernel: tpu_custom_call.1
$region0: #{tpu_custom_call.1}
  #allocation0 [shape = 'u32[]', space=smem, size = 0x4, offset = 0x4, fixed_abs, tag = 'smem constant byte address 0x4 - core index']
  #allocation1 [shape = 'u32[144,128]{1,0:T(1,128)}', space=vmem, size = 0x12000, scoped, tag = 'internal scratch']
  %s0 = inlined_call_operand.vmem [shape: f32[16,16,32], index: 0, kind: input, shape index: {}]
  %s1 = inlined_call_operand.vmem [shape: bf16[6,96,32], index: 1, kind: input, shape index: {}]
  %s2 = inlined_call_operand.vmem [shape: f32[6,32], index: 2, kind: input, shape index: {}]
  %s3 = inlined_call_operand.vmem [shape: f32[6,32], index: 3, kind: input, shape index: {}]
  %s4 = inlined_call_operand.vmem [shape: f32[6,32], index: 4, kind: input, shape index: {}]
  %s5 = inlined_call_operand.hbm [shape: f32[16,32], index: 5, kind: output, shape index: {}]
  %s6 = sld [smem:[#allocation0]]
  $region53: #{tpu_custom_call.1} parent=0
    _
  %s8 = ssub.s32 1, %s6
  %s9 = scalar_select 0, %s8, %s6
  $region1: #{tpu_custom_call.1} parent=0
    #allocation2 [shape = 'u8[8192]{0}', space=vmem, size = 0x2000, scoped, tag = 'output window, operand 0']
    #allocation3 [shape = 's32[2]{0}', space=sflag, size = 0x8, scoped, tag = 'scoped memory for tpu_custom_call.1']
    %10 = vsyncpa [#allocation3], 0
    %s11 = scalar_lea.sflag [#allocation3], 1
    %12 = vsyncpa %s11, 0
    loop: start=0, step=1, limit=4
    $region2: #{tpu_custom_call.1} parent=1 // loop_pre_header
      _
    $region3: #{tpu_custom_call.1} parent=1 // loop_header
      %s14 = sphi 0, %s18
      %p15 = scmp.ge.s32.totalorder %s14, 4
      %s24 = sphi 0, %s26
      %s27 = sphi 0, %s24
      %s28 = sphi 0, %s27
      %s44 = sphi 0, %s28
      %s48 = sphi 0, %s48
      %s50 = sphi 0, %s48
      %s51 = sphi 0, %s50
      %s65 = sphi 0, %s51
      %s69 = sphi 0, %s69
      %s71 = sphi 0, %s69
      %s72 = sphi 0, %s71
      %s86 = sphi 0, %s72
      %s90 = sphi 0, %s90
      %s92 = sphi 0, %s90
      %s93 = sphi 0, %s92
      %s107 = sphi 0, %s93
      %s111 = sphi 0, %s111
      %s113 = sphi 0, %s111
      %s114 = sphi 0, %s113
      %s128 = sphi 0, %s114
      %s134 = sphi 0, %s136
      %s137 = sphi 0, %s134
      %s138 = sphi 0, %s137
      %s154 = sphi 0, %s138
    $region4: #{tpu_custom_call.1} parent=1 // loop_header_branch
      %17 = sbr.rel (%p15) target = $region8
    $region5: #{tpu_custom_call.1} parent=1 // loop_body
      %s19 = ssub.s32 %s14, 1
      %s20 = ssub.s32 %s14, 2
      %s21 = sadd.s32 %s14, 1
      %s22 = ssub.s32 %s14, %s21
      %p23 = scmp.eq.s32.totalorder %s22, 0
      %s25 = sadd.s32 %s24, 1
      %s26 = scalar_select %p23, %s24, %s25
      %p29 = pneg %p23
      %p30 = scmp.eq.s32.totalorder %s14, 1
      %p31 = por %p29, %p30
      %p32 = scmp.ne.s32.totalorder %s24, %s27
      %p33 = scmp.eq.s32.totalorder %s14, 0
      %p34 = por %p32, %p33
      %p35 = scmp.ne.s32.totalorder %s24, %s27
      %p36 = scmp.eq.s32.totalorder %s19, 1
      %p37 = por %p35, %p36
      %p38 = scmp.ne.s32.totalorder %s27, %s28
      %p39 = scmp.eq.s32.totalorder %s19, 0
      %p40 = por %p38, %p39
      %p41 = scmp.ne.s32.totalorder %s27, %s28
      %p42 = scmp.eq.s32.totalorder %s20, 1
      %p43 = por %p41, %p42
      %p45 = scmp.ne.s32.totalorder %s28, %s44
      %p46 = scmp.eq.s32.totalorder %s20, 0
      %p47 = por %p45, %p46
      %s49 = sadd.s32 %s48, 1
      %p52 = scmp.eq.s32.totalorder %s14, 1
      %p53 = scmp.ne.s32.totalorder %s48, %s50
      %p54 = scmp.eq.s32.totalorder %s14, 0
      %p55 = por %p53, %p54
      %p56 = scmp.ne.s32.totalorder %s48, %s50
      %p57 = scmp.eq.s32.totalorder %s19, 1
      %p58 = por %p56, %p57
      %p59 = scmp.ne.s32.totalorder %s50, %s51
      %p60 = scmp.eq.s32.totalorder %s19, 0
      %p61 = por %p59, %p60
      %p62 = scmp.ne.s32.totalorder %s50, %s51
      %p63 = scmp.eq.s32.totalorder %s20, 1
      %p64 = por %p62, %p63
      %p66 = scmp.ne.s32.totalorder %s51, %s65
      %p67 = scmp.eq.s32.totalorder %s20, 0
      %p68 = por %p66, %p67
      %s70 = sadd.s32 %s69, 1
      %p73 = scmp.eq.s32.totalorder %s14, 1
      %p74 = scmp.ne.s32.totalorder %s69, %s71
      %p75 = scmp.eq.s32.totalorder %s14, 0
      %p76 = por %p74, %p75
      %p77 = scmp.ne.s32.totalorder %s69, %s71
      %p78 = scmp.eq.s32.totalorder %s19, 1
      %p79 = por %p77, %p78
      %p80 = scmp.ne.s32.totalorder %s71, %s72
      %p81 = scmp.eq.s32.totalorder %s19, 0
      %p82 = por %p80, %p81
      %p83 = scmp.ne.s32.totalorder %s71, %s72
      %p84 = scmp.eq.s32.totalorder %s20, 1
      %p85 = por %p83, %p84
      %p87 = scmp.ne.s32.totalorder %s72, %s86
      %p88 = scmp.eq.s32.totalorder %s20, 0
      %p89 = por %p87, %p88
      %s91 = sadd.s32 %s90, 1
      %p94 = scmp.eq.s32.totalorder %s14, 1
      %p95 = scmp.ne.s32.totalorder %s90, %s92
      %p96 = scmp.eq.s32.totalorder %s14, 0
      %p97 = por %p95, %p96
      %p98 = scmp.ne.s32.totalorder %s90, %s92
      %p99 = scmp.eq.s32.totalorder %s19, 1
      %p100 = por %p98, %p99
      %p101 = scmp.ne.s32.totalorder %s92, %s93
      %p102 = scmp.eq.s32.totalorder %s19, 0
      %p103 = por %p101, %p102
      %p104 = scmp.ne.s32.totalorder %s92, %s93
      %p105 = scmp.eq.s32.totalorder %s20, 1
      %p106 = por %p104, %p105
      %p108 = scmp.ne.s32.totalorder %s93, %s107
      %p109 = scmp.eq.s32.totalorder %s20, 0
      %p110 = por %p108, %p109
      %s112 = sadd.s32 %s111, 1
      %p115 = scmp.eq.s32.totalorder %s14, 1
      %p116 = scmp.ne.s32.totalorder %s111, %s113
      %p117 = scmp.eq.s32.totalorder %s14, 0
      %p118 = por %p116, %p117
      %p119 = scmp.ne.s32.totalorder %s111, %s113
      %p120 = scmp.eq.s32.totalorder %s19, 1
      %p121 = por %p119, %p120
      %p122 = scmp.ne.s32.totalorder %s113, %s114
      %p123 = scmp.eq.s32.totalorder %s19, 0
      %p124 = por %p122, %p123
      %p125 = scmp.ne.s32.totalorder %s113, %s114
      %p126 = scmp.eq.s32.totalorder %s20, 1
      %p127 = por %p125, %p126
      %p129 = scmp.ne.s32.totalorder %s114, %s128
      %p130 = scmp.eq.s32.totalorder %s20, 0
      %p131 = por %p129, %p130
      %s132 = ssub.s32 %s14, %s21
      %p133 = scmp.eq.s32.totalorder %s132, 0
      %s135 = sadd.s32 %s134, 1
      %s136 = scalar_select %p133, %s134, %s135
      %p139 = pneg %p133
      %p140 = scmp.eq.s32.totalorder %s14, 1
      %p141 = por %p139, %p140
      %p142 = scmp.ne.s32.totalorder %s134, %s137
      %p143 = scmp.eq.s32.totalorder %s14, 0
      %p144 = por %p142, %p143
      %p145 = scmp.ne.s32.totalorder %s134, %s137
      %p146 = scmp.eq.s32.totalorder %s19, 1
      %p147 = por %p145, %p146
      %p148 = scmp.ne.s32.totalorder %s137, %s138
      %p149 = scmp.eq.s32.totalorder %s19, 0
      %p150 = por %p148, %p149
      %p151 = scmp.ne.s32.totalorder %s137, %s138
      %p152 = scmp.eq.s32.totalorder %s20, 1
      %p153 = por %p151, %p152
      %p155 = scmp.ne.s32.totalorder %s138, %s154
      %p156 = scmp.eq.s32.totalorder %s20, 0
      %p157 = por %p155, %p156
      %p158 = scmp.le.s32.totalorder 1, %s14
      %p159 = scmp.lt.s32.totalorder %s14, 3
      %p160 = pnand %p158, %p159
      %p161 = pneg %p160
      // Predicated region
      $region9: #{tpu_custom_call.1} parent=5 // pred_check
        _
      $region10: #{tpu_custom_call.1} parent=5 // pred_check_branch
        %163 = sbr.rel (%p160) target = $region12
      $region11: #{tpu_custom_call.1} parent=5 // pred_region
        %s164 = ssub.s32 %s14, 1
        // Predicated region
        $region13: #{tpu_custom_call.1} parent=11 // pred_check
          %p165 = pneg %p61
        $region14: #{tpu_custom_call.1} parent=11 // pred_check_branch
          %167 = sbr.rel (%p165) target = $region16
        $region15: #{tpu_custom_call.1} parent=11 // pred_region
          _
        $region16: #{tpu_custom_call.1} parent=11 // pred_fallthru
          _
        // Predicated region
        $region17: #{tpu_custom_call.1} parent=11 // pred_check
          %p168 = pneg %p82
        $region18: #{tpu_custom_call.1} parent=11 // pred_check_branch
          %170 = sbr.rel (%p168) target = $region20
        $region19: #{tpu_custom_call.1} parent=11 // pred_region
          _
        $region20: #{tpu_custom_call.1} parent=11 // pred_fallthru
          _
        // Predicated region
        $region21: #{tpu_custom_call.1} parent=11 // pred_check
          %p171 = pneg %p103
        $region22: #{tpu_custom_call.1} parent=11 // pred_check_branch
          %173 = sbr.rel (%p171) target = $region24
        $region23: #{tpu_custom_call.1} parent=11 // pred_region
          _
        $region24: #{tpu_custom_call.1} parent=11 // pred_fallthru
          _
        // Predicated region
        $region25: #{tpu_custom_call.1} parent=11 // pred_check
          %p174 = pneg %p124
        $region26: #{tpu_custom_call.1} parent=11 // pred_check_branch
          %176 = sbr.rel (%p174) target = $region28
        $region27: #{tpu_custom_call.1} parent=11 // pred_region
          _
        $region28: #{tpu_custom_call.1} parent=11 // pred_fallthru
          _
      $region12: #{tpu_custom_call.1} parent=5 // pred_fallthru
        _
      %p177 = scmp.lt.s32.totalorder %s14, 2
      // Predicated region
      $region29: #{tpu_custom_call.1} parent=5 // pred_check
        %p178 = pneg %p177
      $region30: #{tpu_custom_call.1} parent=5 // pred_check_branch
        %180 = sbr.rel (%p178) target = $region32
      $region31: #{tpu_custom_call.1} parent=5 // pred_region
        // Predicated region
        $region33: #{tpu_custom_call.1} parent=31 // pred_check
          %p181 = pneg %p34
        $region34: #{tpu_custom_call.1} parent=31 // pred_check_branch
          %183 = sbr.rel (%p181) target = $region36
        $region35: #{tpu_custom_call.1} parent=31 // pred_region
          %s184 = smul.u32 8, %s14
          %p185 = scmp.lt.s32.totalorder %s184, 15
          %s186 = scalar_select %p185, %s184, 15
          %s187 = smul.addr %s186, 2
          %s188 = smul.addr %s187, 8
          %s189 = scalar_lea.vmem %s0, %s188
          %s190 = smul.u32 8, %s14
        $region36: #{tpu_custom_call.1} parent=31 // pred_fallthru
          _
      $region32: #{tpu_custom_call.1} parent=5 // pred_fallthru
        _
      %p191 = scmp.le.s32.totalorder 1, %s14
      %p192 = scmp.lt.s32.totalorder %s14, 3
      %p193 = pnand %p191, %p192
      %p194 = pneg %p193
      // Predicated region
      $region37: #{tpu_custom_call.1} parent=5 // pred_check
        _
      $region38: #{tpu_custom_call.1} parent=5 // pred_check_branch
        %196 = sbr.rel (%p193) target = $region40
      $region39: #{tpu_custom_call.1} parent=5 // pred_region
        %s197 = ssub.s32 %s14, 1
        %s198 = smul.u32 8, %s19
        %p199 = scmp.lt.s32.totalorder %s198, 15
        %s200 = scalar_select %p199, %s198, 15
        %s201 = smul.addr %s200, 2
        %s202 = smul.addr %s201, 8
        %s203 = scalar_lea.vmem %s0, %s202
        %p204 = pneg %p40
        %p205 = pneg %p37
        %p206 = pneg %p61
        %p207 = pneg %p58
        %p208 = pneg %p82
        %p209 = pneg %p79
        %p210 = pneg %p103
        %p211 = pneg %p100
        %p212 = pneg %p124
        %p213 = pneg %p121
        %p214 = pneg %p150
        %p215 = pneg %p147
        %s216 = sand.u32 %s137, 1
        %s217 = scalar_lea.sflag [#allocation3], %s216
        %s218 = sand.u32 %s137, 1
        %s219 = smul.addr %s218, 8
        %s220 = scalar_lea.vmem [#allocation2], %s219
        %s221 = smul.u32 8, %s19
        %p222 = scmp.lt.s32.totalorder %s221, 15
        %s223 = scalar_select %p222, %s221, 15
        %s224 = smul.addr %s223, 2
        %s225 = smul.addr %s224, 8
        %s226 = scalar_lea.vmem %s0, %s225
        %s227 = smul.u32 8, %s19
        %v229 = vld [vmem:[%s226] sm:$0xff]
        %v230 = vld [vmem:[%s226 + $0x8] sm:$0xff]
        %v231 = vld [vmem:[%s226 + $0x10] sm:$0xff]
        %v232 = vld [vmem:[%s226 + $0x18] sm:$0xff]
        %v233 = vld [vmem:[%s226 + $0x20] sm:$0xff]
        %v234 = vld [vmem:[%s226 + $0x28] sm:$0xff]
        %v235 = vld [vmem:[%s226 + $0x30] sm:$0xff]
        %v236 = vld [vmem:[%s226 + $0x38] sm:$0xff]
        %v237 = vld [vmem:[%s226 + $0x40] sm:$0xff]
        %v238 = vld [vmem:[%s226 + $0x48] sm:$0xff]
        %v239 = vld [vmem:[%s226 + $0x50] sm:$0xff]
        %v240 = vld [vmem:[%s226 + $0x58] sm:$0xff]
        %v241 = vld [vmem:[%s226 + $0x60] sm:$0xff]
        %v242 = vld [vmem:[%s226 + $0x68] sm:$0xff]
        %v243 = vld [vmem:[%s226 + $0x70] sm:$0xff]
        %v244 = vld [vmem:[%s226 + $0x78] sm:$0xff]
        %v245 = vlaneseq
        %v246 = vshrl.u32 %v245, 7
        %v247 = vadd.s32 %v246, 8
        %v248 = vadd.s32 %v246, 16
        %v249 = vadd.s32 %v246, 24
        %v250 = vadd.s32 %v246, 32
        %v251 = vadd.s32 %v246, 40
        %v252 = vadd.s32 %v246, 48
        %v253 = vadd.s32 %v246, 56
        %v254 = vadd.s32 %v246, 64
        %v255 = vadd.s32 %v246, 72
        %v256 = vadd.s32 %v246, 80
        %v257 = vadd.s32 %v246, 88
        %v258 = vadd.s32 %v246, 96
        %v259 = vadd.s32 %v246, 104
        %v260 = vadd.s32 %v246, 112
        %v261 = vadd.s32 %v246, 120
        %vm262 = vcmp.lt.s32.totalorder %v246, 0
        %v263 = vsub.s32 0, %v246
        %v264 = vsel %vm262, %v263, %v246
        %v265 = vshrl.u32 %v264, 4
        %v266 = vand.u32 %v264, 15
        %v267 = vsub.s32 0, %v266
        %v268 = vsel %vm262, %v267, %v266
        %vm269 = vcmp.lt.s32.totalorder %v247, 0
        %v270 = vsub.s32 0, %v247
        %v271 = vsel %vm269, %v270, %v247
        %v272 = vshrl.u32 %v271, 4
        %v273 = vand.u32 %v271, 15
        %v274 = vsub.s32 0, %v273
        %v275 = vsel %vm269, %v274, %v273
        %vm276 = vcmp.lt.s32.totalorder %v248, 0
        %v277 = vsub.s32 0, %v248
        %v278 = vsel %vm276, %v277, %v248
        %v279 = vshrl.u32 %v278, 4
        %v280 = vand.u32 %v278, 15
        %v281 = vsub.s32 0, %v280
        %v282 = vsel %vm276, %v281, %v280
        %vm283 = vcmp.lt.s32.totalorder %v249, 0
        %v284 = vsub.s32 0, %v249
        %v285 = vsel %vm283, %v284, %v249
        %v286 = vshrl.u32 %v285, 4
        %v287 = vand.u32 %v285, 15
        %v288 = vsub.s32 0, %v287
        %v289 = vsel %vm283, %v288, %v287
        %vm290 = vcmp.lt.s32.totalorder %v250, 0
        %v291 = vsub.s32 0, %v250
        %v292 = vsel %vm290, %v291, %v250
        %v293 = vshrl.u32 %v292, 4
        %v294 = vand.u32 %v292, 15
        %v295 = vsub.s32 0, %v294
        %v296 = vsel %vm290, %v295, %v294
        %vm297 = vcmp.lt.s32.totalorder %v251, 0
        %v298 = vsub.s32 0, %v251
        %v299 = vsel %vm297, %v298, %v251
        %v300 = vshrl.u32 %v299, 4
        %v301 = vand.u32 %v299, 15
        %v302 = vsub.s32 0, %v301
        %v303 = vsel %vm297, %v302, %v301
        %vm304 = vcmp.lt.s32.totalorder %v252, 0
        %v305 = vsub.s32 0, %v252
        %v306 = vsel %vm304, %v305, %v252
        %v307 = vshrl.u32 %v306, 4
        %v308 = vand.u32 %v306, 15
        %v309 = vsub.s32 0, %v308
        %v310 = vsel %vm304, %v309, %v308
        %vm311 = vcmp.lt.s32.totalorder %v253, 0
        %v312 = vsub.s32 0, %v253
        %v313 = vsel %vm311, %v312, %v253
        %v314 = vshrl.u32 %v313, 4
        %v315 = vand.u32 %v313, 15
        %v316 = vsub.s32 0, %v315
        %v317 = vsel %vm311, %v316, %v315
        %vm318 = vcmp.lt.s32.totalorder %v254, 0
        %v319 = vsub.s32 0, %v254
        %v320 = vsel %vm318, %v319, %v254
        %v321 = vshrl.u32 %v320, 4
        %v322 = vand.u32 %v320, 15
        %v323 = vsub.s32 0, %v322
        %v324 = vsel %vm318, %v323, %v322
        %vm325 = vcmp.lt.s32.totalorder %v255, 0
        %v326 = vsub.s32 0, %v255
        %v327 = vsel %vm325, %v326, %v255
        %v328 = vshrl.u32 %v327, 4
        %v329 = vand.u32 %v327, 15
        %v330 = vsub.s32 0, %v329
        %v331 = vsel %vm325, %v330, %v329
        %vm332 = vcmp.lt.s32.totalorder %v256, 0
        %v333 = vsub.s32 0, %v256
        %v334 = vsel %vm332, %v333, %v256
        %v335 = vshrl.u32 %v334, 4
        %v336 = vand.u32 %v334, 15
        %v337 = vsub.s32 0, %v336
        %v338 = vsel %vm332, %v337, %v336
        %vm339 = vcmp.lt.s32.totalorder %v257, 0
        %v340 = vsub.s32 0, %v257
        %v341 = vsel %vm339, %v340, %v257
        %v342 = vshrl.u32 %v341, 4
        %v343 = vand.u32 %v341, 15
        %v344 = vsub.s32 0, %v343
        %v345 = vsel %vm339, %v344, %v343
        %vm346 = vcmp.lt.s32.totalorder %v258, 0
        %v347 = vsub.s32 0, %v258
        %v348 = vsel %vm346, %v347, %v258
        %v349 = vshrl.u32 %v348, 4
        %v350 = vand.u32 %v348, 15
        %v351 = vsub.s32 0, %v350
        %v352 = vsel %vm346, %v351, %v350
        %vm353 = vcmp.lt.s32.totalorder %v259, 0
        %v354 = vsub.s32 0, %v259
        %v355 = vsel %vm353, %v354, %v259
        %v356 = vshrl.u32 %v355, 4
        %v357 = vand.u32 %v355, 15
        %v358 = vsub.s32 0, %v357
        %v359 = vsel %vm353, %v358, %v357
        %vm360 = vcmp.lt.s32.totalorder %v260, 0
        %v361 = vsub.s32 0, %v260
        %v362 = vsel %vm360, %v361, %v260
        %v363 = vshrl.u32 %v362, 4
        %v364 = vand.u32 %v362, 15
        %v365 = vsub.s32 0, %v364
        %v366 = vsel %vm360, %v365, %v364
        %vm367 = vcmp.lt.s32.totalorder %v261, 0
        %v368 = vsub.s32 0, %v261
        %v369 = vsel %vm367, %v368, %v261
        %v370 = vshrl.u32 %v369, 4
        %v371 = vand.u32 %v369, 15
        %v372 = vsub.s32 0, %v371
        %v373 = vsel %vm367, %v372, %v371
        %vm374 = vcmp.ne.s32.totalorder %v268, 0
        %vm375 = vcmp.ne.s32.totalorder %v275, 0
        %vm376 = vcmp.ne.s32.totalorder %v282, 0
        %vm377 = vcmp.ne.s32.totalorder %v289, 0
        %vm378 = vcmp.ne.s32.totalorder %v296, 0
        %vm379 = vcmp.ne.s32.totalorder %v303, 0
        %vm380 = vcmp.ne.s32.totalorder %v310, 0
        %vm381 = vcmp.ne.s32.totalorder %v317, 0
        %vm382 = vcmp.ne.s32.totalorder %v324, 0
        %vm383 = vcmp.ne.s32.totalorder %v331, 0
        %vm384 = vcmp.ne.s32.totalorder %v338, 0
        %vm385 = vcmp.ne.s32.totalorder %v345, 0
        %vm386 = vcmp.ne.s32.totalorder %v352, 0
        %vm387 = vcmp.ne.s32.totalorder %v359, 0
        %vm388 = vcmp.ne.s32.totalorder %v366, 0
        %vm389 = vcmp.ne.s32.totalorder %v373, 0
        %vm390 = vcmp.lt.s32.totalorder %v268, 0
        %vm391 = vcmp.lt.s32.totalorder %v275, 0
        %vm392 = vcmp.lt.s32.totalorder %v282, 0
        %vm393 = vcmp.lt.s32.totalorder %v289, 0
        %vm394 = vcmp.lt.s32.totalorder %v296, 0
        %vm395 = vcmp.lt.s32.totalorder %v303, 0
        %vm396 = vcmp.lt.s32.totalorder %v310, 0
        %vm397 = vcmp.lt.s32.totalorder %v317, 0
        %vm398 = vcmp.lt.s32.totalorder %v324, 0
        %vm399 = vcmp.lt.s32.totalorder %v331, 0
        %vm400 = vcmp.lt.s32.totalorder %v338, 0
        %vm401 = vcmp.lt.s32.totalorder %v345, 0
        %vm402 = vcmp.lt.s32.totalorder %v352, 0
        %vm403 = vcmp.lt.s32.totalorder %v359, 0
        %vm404 = vcmp.lt.s32.totalorder %v366, 0
        %vm405 = vcmp.lt.s32.totalorder %v373, 0
        %vm406 = vmand %vm390, %vm374
        %vm407 = vmand %vm391, %vm375
        %vm408 = vmand %vm392, %vm376
        %vm409 = vmand %vm393, %vm377
        %vm410 = vmand %vm394, %vm378
        %vm411 = vmand %vm395, %vm379
        %vm412 = vmand %vm396, %vm380
        %vm413 = vmand %vm397, %vm381
        %vm414 = vmand %vm398, %vm382
        %vm415 = vmand %vm399, %vm383
        %vm416 = vmand %vm400, %vm384
        %vm417 = vmand %vm401, %vm385
        %vm418 = vmand %vm402, %vm386
        %vm419 = vmand %vm403, %vm387
        %vm420 = vmand %vm404, %vm388
        %vm421 = vmand %vm405, %vm389
        %v422 = vadd.s32 %v268, 16
        %v423 = vadd.s32 %v275, 16
        %v424 = vadd.s32 %v282, 16
        %v425 = vadd.s32 %v289, 16
        %v426 = vadd.s32 %v296, 16
        %v427 = vadd.s32 %v303, 16
        %v428 = vadd.s32 %v310, 16
        %v429 = vadd.s32 %v317, 16
        %v430 = vadd.s32 %v324, 16
        %v431 = vadd.s32 %v331, 16
        %v432 = vadd.s32 %v338, 16
        %v433 = vadd.s32 %v345, 16
        %v434 = vadd.s32 %v352, 16
        %v435 = vadd.s32 %v359, 16
        %v436 = vadd.s32 %v366, 16
        %v437 = vadd.s32 %v373, 16
        %v438 = vsel %vm406, %v422, %v268
        %v439 = vsel %vm407, %v423, %v275
        %v440 = vsel %vm408, %v424, %v282
        %v441 = vsel %vm409, %v425, %v289
        %v442 = vsel %vm410, %v426, %v296
        %v443 = vsel %vm411, %v427, %v303
        %v444 = vsel %vm412, %v428, %v310
        %v445 = vsel %vm413, %v429, %v317
        %v446 = vsel %vm414, %v430, %v324
        %v447 = vsel %vm415, %v431, %v331
        %v448 = vsel %vm416, %v432, %v338
        %v449 = vsel %vm417, %v433, %v345
        %v450 = vsel %vm418, %v434, %v352
        %v451 = vsel %vm419, %v435, %v359
        %v452 = vsel %vm420, %v436, %v366
        %v453 = vsel %vm421, %v437, %v373
        %vm454 = vcmp.ge.s32.totalorder %v438, 1
        %vm455 = vcmp.ge.s32.totalorder %v439, 1
        %vm456 = vcmp.ge.s32.totalorder %v440, 1
        %vm457 = vcmp.ge.s32.totalorder %v441, 1
        %vm458 = vcmp.ge.s32.totalorder %v442, 1
        %vm459 = vcmp.ge.s32.totalorder %v443, 1
        %vm460 = vcmp.ge.s32.totalorder %v444, 1
        %vm461 = vcmp.ge.s32.totalorder %v445, 1
        %vm462 = vcmp.ge.s32.totalorder %v446, 1
        %vm463 = vcmp.ge.s32.totalorder %v447, 1
        %vm464 = vcmp.ge.s32.totalorder %v448, 1
        %vm465 = vcmp.ge.s32.totalorder %v449, 1
        %vm466 = vcmp.ge.s32.totalorder %v450, 1
        %vm467 = vcmp.ge.s32.totalorder %v451, 1
        %vm468 = vcmp.ge.s32.totalorder %v452, 1
        %vm469 = vcmp.ge.s32.totalorder %v453, 1
        %vm470 = vcmp.ge.s32.totalorder %v438, 2
        %vm471 = vcmp.ge.s32.totalorder %v439, 2
        %vm472 = vcmp.ge.s32.totalorder %v440, 2
        %vm473 = vcmp.ge.s32.totalorder %v441, 2
        %vm474 = vcmp.ge.s32.totalorder %v442, 2
        %vm475 = vcmp.ge.s32.totalorder %v443, 2
        %vm476 = vcmp.ge.s32.totalorder %v444, 2
        %vm477 = vcmp.ge.s32.totalorder %v445, 2
        %vm478 = vcmp.ge.s32.totalorder %v446, 2
        %vm479 = vcmp.ge.s32.totalorder %v447, 2
        %vm480 = vcmp.ge.s32.totalorder %v448, 2
        %vm481 = vcmp.ge.s32.totalorder %v449, 2
        %vm482 = vcmp.ge.s32.totalorder %v450, 2
        %vm483 = vcmp.ge.s32.totalorder %v451, 2
        %vm484 = vcmp.ge.s32.totalorder %v452, 2
        %vm485 = vcmp.ge.s32.totalorder %v453, 2
        %vm486 = vcmp.ge.s32.totalorder %v438, 4
        %vm487 = vcmp.ge.s32.totalorder %v439, 4
        %vm488 = vcmp.ge.s32.totalorder %v440, 4
        %vm489 = vcmp.ge.s32.totalorder %v441, 4
        %vm490 = vcmp.ge.s32.totalorder %v442, 4
        %vm491 = vcmp.ge.s32.totalorder %v443, 4
        %vm492 = vcmp.ge.s32.totalorder %v444, 4
        %vm493 = vcmp.ge.s32.totalorder %v445, 4
        %vm494 = vcmp.ge.s32.totalorder %v446, 4
        %vm495 = vcmp.ge.s32.totalorder %v447, 4
        %vm496 = vcmp.ge.s32.totalorder %v448, 4
        %vm497 = vcmp.ge.s32.totalorder %v449, 4
        %vm498 = vcmp.ge.s32.totalorder %v450, 4
        %vm499 = vcmp.ge.s32.totalorder %v451, 4
        %vm500 = vcmp.ge.s32.totalorder %v452, 4
        %vm501 = vcmp.ge.s32.totalorder %v453, 4
        %vm502 = vcmp.ge.s32.totalorder %v438, 8
        %vm503 = vcmp.ge.s32.totalorder %v439, 8
        %vm504 = vcmp.ge.s32.totalorder %v440, 8
        %vm505 = vcmp.ge.s32.totalorder %v441, 8
        %vm506 = vcmp.ge.s32.totalorder %v442, 8
        %vm507 = vcmp.ge.s32.totalorder %v443, 8
        %vm508 = vcmp.ge.s32.totalorder %v444, 8
        %vm509 = vcmp.ge.s32.totalorder %v445, 8
        %vm510 = vcmp.ge.s32.totalorder %v446, 8
        %vm511 = vcmp.ge.s32.totalorder %v447, 8
        %vm512 = vcmp.ge.s32.totalorder %v448, 8
        %vm513 = vcmp.ge.s32.totalorder %v449, 8
        %vm514 = vcmp.ge.s32.totalorder %v450, 8
        %vm515 = vcmp.ge.s32.totalorder %v451, 8
        %vm516 = vcmp.ge.s32.totalorder %v452, 8
        %vm517 = vcmp.ge.s32.totalorder %v453, 8
        %v518 = vld [vmem:[%s1] sm:$0xf]
        %v519 = vld [vmem:[%s1 + $0x4] sm:$0xf]
        %v520 = vld [vmem:[%s1 + $0x8] sm:$0xf]
        %v521 = vld [vmem:[%s1 + $0xc] sm:$0xf]
        %v522 = vld [vmem:[%s1 + $0x10] sm:$0xf]
        %v523 = vld [vmem:[%s1 + $0x14] sm:$0xf]
        %v524 = vld [vmem:[%s1 + $0x18] sm:$0xf]
        %v525 = vld [vmem:[%s1 + $0x1c] sm:$0xf]
        %v526 = vld [vmem:[%s1 + $0x20] sm:$0xf]
        %v527 = vld [vmem:[%s1 + $0x24] sm:$0xf]
        %v528 = vld [vmem:[%s1 + $0x28] sm:$0xf]
        %v529 = vld [vmem:[%s1 + $0x2c] sm:$0xf]
        %v530 = vrot.slane %v229, 6
        %v531 = vrot.slane %v230, 6
        %v532 = vrot.slane %v231, 6
        %v533 = vrot.slane %v232, 6
        %v534 = vrot.slane %v233, 6
        %v535 = vrot.slane %v234, 6
        %v536 = vrot.slane %v235, 6
        %v537 = vrot.slane %v236, 6
        %v538 = vrot.slane %v237, 6
        %v539 = vrot.slane %v238, 6
        %v540 = vrot.slane %v239, 6
        %v541 = vrot.slane %v240, 6
        %v542 = vrot.slane %v241, 6
        %v543 = vrot.slane %v242, 6
        %v544 = vrot.slane %v243, 6
        %v545 = vrot.slane %v244, 6
        %vm546 = vcmp.lt.s32.totalorder %v246, 2
        %v547 = vsel %vm546, %v544, %v545
        %v548 = vsel %vm546, %v543, %v544
        %v549 = vsel %vm546, %v542, %v543
        %v550 = vsel %vm546, %v541, %v542
        %v551 = vsel %vm546, %v540, %v541
        %v552 = vsel %vm546, %v539, %v540
        %v553 = vsel %vm546, %v538, %v539
        %v554 = vsel %vm546, %v537, %v538
        %v555 = vsel %vm546, %v536, %v537
        %v556 = vsel %vm546, %v535, %v536
        %v557 = vsel %vm546, %v534, %v535
        %v558 = vsel %vm546, %v533, %v534
        %v559 = vsel %vm546, %v532, %v533
        %v560 = vsel %vm546, %v531, %v532
        %v561 = vsel %vm546, %v530, %v531
        %v562 = vsel %vm546, %v545, %v530
        %v563 = vsel %vm470, 1, 0
        %v564 = vsel %vm471, 1, 0
        %v565 = vsel %vm472, 1, 0
        %v566 = vsel %vm473, 1, 0
        %v567 = vsel %vm474, 1, 0
        %v568 = vsel %vm475, 1, 0
        %v569 = vsel %vm476, 1, 0
        %v570 = vsel %vm477, 1, 0
        %v571 = vsel %vm478, 1, 0
        %v572 = vsel %vm479, 1, 0
        %v573 = vsel %vm480, 1, 0
        %v574 = vsel %vm481, 1, 0
        %v575 = vsel %vm482, 1, 0
        %v576 = vsel %vm483, 1, 0
        %v577 = vsel %vm484, 1, 0
        %v578 = vsel %vm485, 1, 0
        %vm579 = vcmp.eq.s32.totalorder %v563, 1
        %vm580 = vcmp.eq.s32.totalorder %v564, 1
        %vm581 = vcmp.eq.s32.totalorder %v565, 1
        %vm582 = vcmp.eq.s32.totalorder %v566, 1
        %vm583 = vcmp.eq.s32.totalorder %v567, 1
        %vm584 = vcmp.eq.s32.totalorder %v568, 1
        %vm585 = vcmp.eq.s32.totalorder %v569, 1
        %vm586 = vcmp.eq.s32.totalorder %v570, 1
        %vm587 = vcmp.eq.s32.totalorder %v571, 1
        %vm588 = vcmp.eq.s32.totalorder %v572, 1
        %vm589 = vcmp.eq.s32.totalorder %v573, 1
        %vm590 = vcmp.eq.s32.totalorder %v574, 1
        %vm591 = vcmp.eq.s32.totalorder %v575, 1
        %vm592 = vcmp.eq.s32.totalorder %v576, 1
        %vm593 = vcmp.eq.s32.totalorder %v577, 1
        %vm594 = vcmp.eq.s32.totalorder %v578, 1
        %v595 = vsel %vm579, %v562, 0.0
        %v596 = vsel %vm580, %v561, 0.0
        %v597 = vsel %vm581, %v560, 0.0
        %v598 = vsel %vm582, %v559, 0.0
        %v599 = vsel %vm583, %v558, 0.0
        %v600 = vsel %vm584, %v557, 0.0
        %v601 = vsel %vm585, %v556, 0.0
        %v602 = vsel %vm586, %v555, 0.0
        %v603 = vsel %vm587, %v554, 0.0
        %v604 = vsel %vm588, %v553, 0.0
        %v605 = vsel %vm589, %v552, 0.0
        %v606 = vsel %vm590, %v551, 0.0
        %v607 = vsel %vm591, %v550, 0.0
        %v608 = vsel %vm592, %v549, 0.0
        %v609 = vsel %vm593, %v548, 0.0
        %v610 = vsel %vm594, %v547, 0.0
        %v611 = vpack.c.bf16 %v596, %v595
        %v612 = vpack.c.bf16 %v598, %v597
        %v613 = vpack.c.bf16 %v600, %v599
        %v614 = vpack.c.bf16 %v602, %v601
        %v615 = vpack.c.bf16 %v604, %v603
        %v616 = vpack.c.bf16 %v606, %v605
        %v617 = vpack.c.bf16 %v608, %v607
        %v618 = vpack.c.bf16 %v610, %v609
        %v619 = vrot.slane %v229, 7
        %v620 = vrot.slane %v230, 7
        %v621 = vrot.slane %v231, 7
        %v622 = vrot.slane %v232, 7
        %v623 = vrot.slane %v233, 7
        %v624 = vrot.slane %v234, 7
        %v625 = vrot.slane %v235, 7
        %v626 = vrot.slane %v236, 7
        %v627 = vrot.slane %v237, 7
        %v628 = vrot.slane %v238, 7
        %v629 = vrot.slane %v239, 7
        %v630 = vrot.slane %v240, 7
        %v631 = vrot.slane %v241, 7
        %v632 = vrot.slane %v242, 7
        %v633 = vrot.slane %v243, 7
        %v634 = vrot.slane %v244, 7
        %vm635 = vcmp.lt.s32.totalorder %v246, 1
        %v636 = vsel %vm635, %v633, %v634
        %v637 = vsel %vm635, %v632, %v633
        %v638 = vsel %vm635, %v631, %v632
        %v639 = vsel %vm635, %v630, %v631
        %v640 = vsel %vm635, %v629, %v630
        %v641 = vsel %vm635, %v628, %v629
        %v642 = vsel %vm635, %v627, %v628
        %v643 = vsel %vm635, %v626, %v627
        %v644 = vsel %vm635, %v625, %v626
        %v645 = vsel %vm635, %v624, %v625
        %v646 = vsel %vm635, %v623, %v624
        %v647 = vsel %vm635, %v622, %v623
        %v648 = vsel %vm635, %v621, %v622
        %v649 = vsel %vm635, %v620, %v621
        %v650 = vsel %vm635, %v619, %v620
        %v651 = vsel %vm635, %v634, %v619
        %v652 = vsel %vm454, 1, 0
        %v653 = vsel %vm455, 1, 0
        %v654 = vsel %vm456, 1, 0
        %v655 = vsel %vm457, 1, 0
        %v656 = vsel %vm458, 1, 0
        %v657 = vsel %vm459, 1, 0
        %v658 = vsel %vm460, 1, 0
        %v659 = vsel %vm461, 1, 0
        %v660 = vsel %vm462, 1, 0
        %v661 = vsel %vm463, 1, 0
        %v662 = vsel %vm464, 1, 0
        %v663 = vsel %vm465, 1, 0
        %v664 = vsel %vm466, 1, 0
        %v665 = vsel %vm467, 1, 0
        %v666 = vsel %vm468, 1, 0
        %v667 = vsel %vm469, 1, 0
        %vm668 = vcmp.eq.s32.totalorder %v652, 1
        %vm669 = vcmp.eq.s32.totalorder %v653, 1
        %vm670 = vcmp.eq.s32.totalorder %v654, 1
        %vm671 = vcmp.eq.s32.totalorder %v655, 1
        %vm672 = vcmp.eq.s32.totalorder %v656, 1
        %vm673 = vcmp.eq.s32.totalorder %v657, 1
        %vm674 = vcmp.eq.s32.totalorder %v658, 1
        %vm675 = vcmp.eq.s32.totalorder %v659, 1
        %vm676 = vcmp.eq.s32.totalorder %v660, 1
        %vm677 = vcmp.eq.s32.totalorder %v661, 1
        %vm678 = vcmp.eq.s32.totalorder %v662, 1
        %vm679 = vcmp.eq.s32.totalorder %v663, 1
        %vm680 = vcmp.eq.s32.totalorder %v664, 1
        %vm681 = vcmp.eq.s32.totalorder %v665, 1
        %vm682 = vcmp.eq.s32.totalorder %v666, 1
        %vm683 = vcmp.eq.s32.totalorder %v667, 1
        %v684 = vsel %vm668, %v651, 0.0
        %v685 = vsel %vm669, %v650, 0.0
        %v686 = vsel %vm670, %v649, 0.0
        %v687 = vsel %vm671, %v648, 0.0
        %v688 = vsel %vm672, %v647, 0.0
        %v689 = vsel %vm673, %v646, 0.0
        %v690 = vsel %vm674, %v645, 0.0
        %v691 = vsel %vm675, %v644, 0.0
        %v692 = vsel %vm676, %v643, 0.0
        %v693 = vsel %vm677, %v642, 0.0
        %v694 = vsel %vm678, %v641, 0.0
        %v695 = vsel %vm679, %v640, 0.0
        %v696 = vsel %vm680, %v639, 0.0
        %v697 = vsel %vm681, %v638, 0.0
        %v698 = vsel %vm682, %v637, 0.0
        %v699 = vsel %vm683, %v636, 0.0
        %v700 = vpack.c.bf16 %v685, %v684
        %v701 = vpack.c.bf16 %v687, %v686
        %v702 = vpack.c.bf16 %v689, %v688
        %v703 = vpack.c.bf16 %v691, %v690
        %v704 = vpack.c.bf16 %v693, %v692
        %v705 = vpack.c.bf16 %v695, %v694
        %v706 = vpack.c.bf16 %v697, %v696
        %v707 = vpack.c.bf16 %v699, %v698
        %v708 = vpack.c.bf16 %v230, %v229
        %v709 = vpack.c.bf16 %v232, %v231
        %v710 = vpack.c.bf16 %v234, %v233
        %v711 = vpack.c.bf16 %v236, %v235
        %v712 = vpack.c.bf16 %v238, %v237
        %v713 = vpack.c.bf16 %v240, %v239
        %v714 = vpack.c.bf16 %v242, %v241
        %v715 = vpack.c.bf16 %v244, %v243
        %724 = vrot.lane.b32.xlu0 %v700, 32
        %v725 = vpop.permute.xlu0 %724
        %726 = vrot.lane.b32.xlu0 %v701, 32
        %v727 = vpop.permute.xlu0 %726
        %728 = vrot.lane.b32.xlu0 %v702, 32
        %v729 = vpop.permute.xlu0 %728
        %730 = vrot.lane.b32.xlu0 %v703, 32
        %v731 = vpop.permute.xlu0 %730
        %732 = vrot.lane.b32.xlu0 %v704, 32
        %v733 = vpop.permute.xlu0 %732
        %734 = vrot.lane.b32.xlu0 %v705, 32
        %v735 = vpop.permute.xlu0 %734
        %736 = vrot.lane.b32.xlu0 %v706, 32
        %v737 = vpop.permute.xlu0 %736
        %738 = vrot.lane.b32.xlu0 %v707, 32
        %v739 = vpop.permute.xlu0 %738
        %748 = vrot.lane.b32.xlu0 %v708, 64
        %v749 = vpop.permute.xlu0 %748
        %750 = vrot.lane.b32.xlu0 %v709, 64
        %v751 = vpop.permute.xlu0 %750
        %752 = vrot.lane.b32.xlu0 %v710, 64
        %v753 = vpop.permute.xlu0 %752
        %754 = vrot.lane.b32.xlu0 %v711, 64
        %v755 = vpop.permute.xlu0 %754
        %756 = vrot.lane.b32.xlu0 %v712, 64
        %v757 = vpop.permute.xlu0 %756
        %758 = vrot.lane.b32.xlu0 %v713, 64
        %v759 = vpop.permute.xlu0 %758
        %760 = vrot.lane.b32.xlu0 %v714, 64
        %v761 = vpop.permute.xlu0 %760
        %762 = vrot.lane.b32.xlu0 %v715, 64
        %v763 = vpop.permute.xlu0 %762
        %vm764 = vcmask 261120
        %v767 = vsel %vm764, %v611, %v725
        %v770 = vsel %vm764, %v612, %v727
        %v773 = vsel %vm764, %v613, %v729
        %v776 = vsel %vm764, %v614, %v731
        %v779 = vsel %vm764, %v615, %v733
        %v782 = vsel %vm764, %v616, %v735
        %v785 = vsel %vm764, %v617, %v737
        %v788 = vsel %vm764, %v618, %v739
        %vm789 = vcmask 523264
        %v791 = vsel %vm789, %v767, %v749
        %v793 = vsel %vm789, %v770, %v751
        %v795 = vsel %vm789, %v773, %v753
        %v797 = vsel %vm789, %v776, %v755
        %v799 = vsel %vm789, %v779, %v757
        %v801 = vsel %vm789, %v782, %v759
        %v803 = vsel %vm789, %v785, %v761
        %v805 = vsel %vm789, %v788, %v763
        %v806 = vld [vmem:[%s2] sm:$0x1]
        %v807 = vlaneseq
        %v808 = vshrl.u32 %v807, 7
        %v809 = vsub.s32 0, %v808
        %v810 = vrot.slane %v806, %v809
        %v823 = vunpack.c.l.b16 %v518
        %v824 = vunpack.c.l.b16 %v519
        %v825 = vunpack.c.l.b16 %v520
        %v826 = vunpack.c.l.b16 %v521
        %v827 = vunpack.c.l.b16 %v522
        %v828 = vunpack.c.l.b16 %v523
        %v829 = vunpack.c.l.b16 %v524
        %v830 = vunpack.c.l.b16 %v525
        %v831 = vunpack.c.l.b16 %v526
        %v832 = vunpack.c.l.b16 %v527
        %v833 = vunpack.c.l.b16 %v528
        %v834 = vunpack.c.l.b16 %v529
        %v835 = vpack.c.b16 %v824, %v823
        %v836 = vpack.c.b16 %v826, %v825
        %v837 = vpack.c.b16 %v828, %v827
        %v838 = vpack.c.b16 %v830, %v829
        %v839 = vpack.c.b16 %v832, %v831
        %v840 = vpack.c.b16 %v834, %v833
        %vm847 = vcmask 785408
        %v848 = vsel %vm847, %v791, 0
        %v850 = vsel %vm847, %v793, 0
        %v852 = vsel %vm847, %v795, 0
        %v854 = vsel %vm847, %v797, 0
        %v856 = vsel %vm847, %v799, 0
        %v858 = vsel %vm847, %v801, 0
        %v860 = vsel %vm847, %v803, 0
        %v862 = vsel %vm847, %v805, 0
        %864 = vmatprep.subr.bf16.mxu0 0
        %865 = vmatpush1.bf16.msra.mxu0 %v835
        %866 = vmatprep.subr.bf16.mxu0 0
        %867 = vmatpush1.bf16.msra.mxu0 %v836
        %868 = vmatprep.subr.bf16.mxu0 0
        %869 = vmatpush1.bf16.msra.mxu0 %v837
        %870 = vmatprep.subr.bf16.mxu0 0
        %871 = vmatpush1.bf16.msra.mxu0 %v838
        %872 = vmatprep.subr.bf16.mxu0 0
        %873 = vmatpush1.bf16.msra.mxu0 %v839
        %874 = vmatprep.subr.bf16.mxu0 0
        %875 = vmatpush1.bf16.msra.mxu0 %v840
        %876 = vmatprep.subr.bf16.mxu0 0
        %877 = vmatpush1.bf16.msra.mxu0 0
        %878 = vmatprep.subr.bf16.mxu0 0
        %879 = vmatpush1.bf16.msra.mxu0 0
        %880 = vmatprep.subr.bf16.mxu0 0
        %881 = vmatpush1.bf16.msra.mxu0 0
        %882 = vmatprep.subr.bf16.mxu0 0
        %883 = vmatpush1.bf16.msra.mxu0 0
        %884 = vmatprep.subr.bf16.mxu0 0
        %885 = vmatpush1.bf16.msra.mxu0 0
        %886 = vmatprep.subr.bf16.mxu0 0
        %887 = vmatpush1.bf16.msra.mxu0 0
        %888 = vmatprep.subr.bf16.mxu0 0
        %889 = vmatpush1.bf16.msra.mxu0 0
        %890 = vmatprep.subr.bf16.mxu0 0
        %891 = vmatpush1.bf16.msra.mxu0 0
        %892 = vmatprep.subr.bf16.mxu0 0
        %893 = vmatpush1.bf16.msra.mxu0 0
        %894 = vmatprep.subr.bf16.mxu0 0
        %895 = vmatpush1.bf16.msra.mxu0 0
        %896 = vmatprep.mubr.bf16.mxu0 0
        %897 = vmatmul.mubr.bf16.gmra.mrb[0].mxu0 %v848
        %v898 = vpop.f32.mrb[0].mxu0
        %v899 = vadd.f32 %v810, %v898
        %v900 = vpop.f32.mrb[0].mxu0
        %v901 = vpop.f32.mrb[0].mxu0
        %v902 = vadd.f32 %v810, %v901
        %v903 = vpop.f32.mrb[0].mxu0
        %904 = vmatprep.mubr.bf16.mxu0 0
        %905 = vmatmul.mubr.bf16.gmra.mrb[0].mxu0 %v850
        %v906 = vpop.f32.mrb[0].mxu0
        %v907 = vadd.f32 %v810, %v906
        %v908 = vpop.f32.mrb[0].mxu0
        %v909 = vpop.f32.mrb[0].mxu0
        %v910 = vadd.f32 %v810, %v909
        %v911 = vpop.f32.mrb[0].mxu0
        %912 = vmatprep.mubr.bf16.mxu0 0
        %913 = vmatmul.mubr.bf16.gmra.mrb[0].mxu0 %v852
        %v914 = vpop.f32.mrb[0].mxu0
        %v915 = vadd.f32 %v810, %v914
        %v916 = vpop.f32.mrb[0].mxu0
        %v917 = vpop.f32.mrb[0].mxu0
        %v918 = vadd.f32 %v810, %v917
        %v919 = vpop.f32.mrb[0].mxu0
        %920 = vmatprep.mubr.bf16.mxu0 0
        %921 = vmatmul.mubr.bf16.gmra.mrb[0].mxu0 %v854
        %v922 = vpop.f32.mrb[0].mxu0
        %v923 = vadd.f32 %v810, %v922
        %v924 = vpop.f32.mrb[0].mxu0
        %v925 = vpop.f32.mrb[0].mxu0
        %v926 = vadd.f32 %v810, %v925
        %v927 = vpop.f32.mrb[0].mxu0
        %928 = vmatprep.mubr.bf16.mxu0 0
        %929 = vmatmul.mubr.bf16.gmra.mrb[0].mxu0 %v856
        %v930 = vpop.f32.mrb[0].mxu0
        %v931 = vadd.f32 %v810, %v930
        %v932 = vpop.f32.mrb[0].mxu0
        %v933 = vpop.f32.mrb[0].mxu0
        %v934 = vadd.f32 %v810, %v933
        %v935 = vpop.f32.mrb[0].mxu0
        %936 = vmatprep.mubr.bf16.mxu0 0
        %937 = vmatmul.mubr.bf16.gmra.mrb[0].mxu0 %v858
        %v938 = vpop.f32.mrb[0].mxu0
        %v939 = vadd.f32 %v810, %v938
        %v940 = vpop.f32.mrb[0].mxu0
        %v941 = vpop.f32.mrb[0].mxu0
        %v942 = vadd.f32 %v810, %v941
        %v943 = vpop.f32.mrb[0].mxu0
        %944 = vmatprep.mubr.bf16.mxu0 0
        %945 = vmatmul.mubr.bf16.gmra.mrb[0].mxu0 %v860
        %v946 = vpop.f32.mrb[0].mxu0
        %v947 = vadd.f32 %v810, %v946
        %v948 = vpop.f32.mrb[0].mxu0
        %v949 = vpop.f32.mrb[0].mxu0
        %v950 = vadd.f32 %v810, %v949
        %v951 = vpop.f32.mrb[0].mxu0
        %952 = vmatprep.mubr.bf16.mxu0 0
        %953 = vmatmul.mubr.bf16.gmra.mrb[0].mxu0 %v862
        %v954 = vpop.f32.mrb[0].mxu0
        %v955 = vadd.f32 %v810, %v954
        %v956 = vpop.f32.mrb[0].mxu0
        %v957 = vpop.f32.mrb[0].mxu0
        %v958 = vadd.f32 %v810, %v957
        %v959 = vpop.f32.mrb[0].mxu0
        %960 = vdwg.mxu0
        %v961 = vsel %vm764, %v899, 0.0
        %962 = vadd.xlane.f32.xlu0 %v961
        %v963 = vpop.xlane.xlu0 %962
        %v964 = vsel %vm764, %v902, 0.0
        %965 = vadd.xlane.f32.xlu0 %v964
        %v966 = vpop.xlane.xlu0 %965
        %v967 = vsel %vm764, %v907, 0.0
        %968 = vadd.xlane.f32.xlu0 %v967
        %v969 = vpop.xlane.xlu0 %968
        %v970 = vsel %vm764, %v910, 0.0
        %971 = vadd.xlane.f32.xlu0 %v970
        %v972 = vpop.xlane.xlu0 %971
        %v973 = vsel %vm764, %v915, 0.0
        %974 = vadd.xlane.f32.xlu0 %v973
        %v975 = vpop.xlane.xlu0 %974
        %v976 = vsel %vm764, %v918, 0.0
        %977 = vadd.xlane.f32.xlu0 %v976
        %v978 = vpop.xlane.xlu0 %977
        %v979 = vsel %vm764, %v923, 0.0
        %980 = vadd.xlane.f32.xlu0 %v979
        %v981 = vpop.xlane.xlu0 %980
        %v982 = vsel %vm764, %v926, 0.0
        %983 = vadd.xlane.f32.xlu0 %v982
        %v984 = vpop.xlane.xlu0 %983
        %v985 = vsel %vm764, %v931, 0.0
        %986 = vadd.xlane.f32.xlu0 %v985
        %v987 = vpop.xlane.xlu0 %986
        %v988 = vsel %vm764, %v934, 0.0
        %989 = vadd.xlane.f32.xlu0 %v988
        %v990 = vpop.xlane.xlu0 %989
        %v991 = vsel %vm764, %v939, 0.0
        %992 = vadd.xlane.f32.xlu0 %v991
        %v993 = vpop.xlane.xlu0 %992
        %v994 = vsel %vm764, %v942, 0.0
        %995 = vadd.xlane.f32.xlu0 %v994
        %v996 = vpop.xlane.xlu0 %995
        %v997 = vsel %vm764, %v947, 0.0
        %998 = vadd.xlane.f32.xlu0 %v997
        %v999 = vpop.xlane.xlu0 %998
        %v1000 = vsel %vm764, %v950, 0.0
        %1001 = vadd.xlane.f32.xlu0 %v1000
        %v1002 = vpop.xlane.xlu0 %1001
        %v1003 = vsel %vm764, %v955, 0.0
        %1004 = vadd.xlane.f32.xlu0 %v1003
        %v1005 = vpop.xlane.xlu0 %1004
        %v1006 = vsel %vm764, %v958, 0.0
        %1007 = vadd.xlane.f32.xlu0 %v1006
        %v1008 = vpop.xlane.xlu0 %1007
        %v1009 = vrcp.pop 32.0
        %v1010 = vmul.f32 %v963, %v1009
        %v1011 = vmul.f32 %v966, %v1009
        %v1012 = vmul.f32 %v969, %v1009
        %v1013 = vmul.f32 %v972, %v1009
        %v1014 = vmul.f32 %v975, %v1009
        %v1015 = vmul.f32 %v978, %v1009
        %v1016 = vmul.f32 %v981, %v1009
        %v1017 = vmul.f32 %v984, %v1009
        %v1018 = vmul.f32 %v987, %v1009
        %v1019 = vmul.f32 %v990, %v1009
        %v1020 = vmul.f32 %v993, %v1009
        %v1021 = vmul.f32 %v996, %v1009
        %v1022 = vmul.f32 %v999, %v1009
        %v1023 = vmul.f32 %v1002, %v1009
        %v1024 = vmul.f32 %v1005, %v1009
        %v1025 = vmul.f32 %v1008, %v1009
        %v1026 = vsub.f32 %v899, %v1010
        %v1027 = vsub.f32 %v902, %v1011
        %v1028 = vsub.f32 %v907, %v1012
        %v1029 = vsub.f32 %v910, %v1013
        %v1030 = vsub.f32 %v915, %v1014
        %v1031 = vsub.f32 %v918, %v1015
        %v1032 = vsub.f32 %v923, %v1016
        %v1033 = vsub.f32 %v926, %v1017
        %v1034 = vsub.f32 %v931, %v1018
        %v1035 = vsub.f32 %v934, %v1019
        %v1036 = vsub.f32 %v939, %v1020
        %v1037 = vsub.f32 %v942, %v1021
        %v1038 = vsub.f32 %v947, %v1022
        %v1039 = vsub.f32 %v950, %v1023
        %v1040 = vsub.f32 %v955, %v1024
        %v1041 = vsub.f32 %v958, %v1025
        %v1042 = vmul.f32 %v1026, %v1026
        %v1043 = vmul.f32 %v1027, %v1027
        %v1044 = vmul.f32 %v1028, %v1028
        %v1045 = vmul.f32 %v1029, %v1029
        %v1046 = vmul.f32 %v1030, %v1030
        %v1047 = vmul.f32 %v1031, %v1031
        %v1048 = vmul.f32 %v1032, %v1032
        %v1049 = vmul.f32 %v1033, %v1033
        %v1050 = vmul.f32 %v1034, %v1034
        %v1051 = vmul.f32 %v1035, %v1035
        %v1052 = vmul.f32 %v1036, %v1036
        %v1053 = vmul.f32 %v1037, %v1037
        %v1054 = vmul.f32 %v1038, %v1038
        %v1055 = vmul.f32 %v1039, %v1039
        %v1056 = vmul.f32 %v1040, %v1040
        %v1057 = vmul.f32 %v1041, %v1041
        %v1058 = vsel %vm764, %v1042, 0.0
        %1059 = vadd.xlane.f32.xlu0 %v1058
        %v1060 = vpop.xlane.xlu0 %1059
        %v1061 = vsel %vm764, %v1043, 0.0
        %1062 = vadd.xlane.f32.xlu0 %v1061
        %v1063 = vpop.xlane.xlu0 %1062
        %v1064 = vsel %vm764, %v1044, 0.0
        %1065 = vadd.xlane.f32.xlu0 %v1064
        %v1066 = vpop.xlane.xlu0 %1065
        %v1067 = vsel %vm764, %v1045, 0.0
        %1068 = vadd.xlane.f32.xlu0 %v1067
        %v1069 = vpop.xlane.xlu0 %1068
        %v1070 = vsel %vm764, %v1046, 0.0
        %1071 = vadd.xlane.f32.xlu0 %v1070
        %v1072 = vpop.xlane.xlu0 %1071
        %v1073 = vsel %vm764, %v1047, 0.0
        %1074 = vadd.xlane.f32.xlu0 %v1073
        %v1075 = vpop.xlane.xlu0 %1074
        %v1076 = vsel %vm764, %v1048, 0.0
        %1077 = vadd.xlane.f32.xlu0 %v1076
        %v1078 = vpop.xlane.xlu0 %1077
        %v1079 = vsel %vm764, %v1049, 0.0
        %1080 = vadd.xlane.f32.xlu0 %v1079
        %v1081 = vpop.xlane.xlu0 %1080
        %v1082 = vsel %vm764, %v1050, 0.0
        %1083 = vadd.xlane.f32.xlu0 %v1082
        %v1084 = vpop.xlane.xlu0 %1083
        %v1085 = vsel %vm764, %v1051, 0.0
        %1086 = vadd.xlane.f32.xlu0 %v1085
        %v1087 = vpop.xlane.xlu0 %1086
        %v1088 = vsel %vm764, %v1052, 0.0
        %1089 = vadd.xlane.f32.xlu0 %v1088
        %v1090 = vpop.xlane.xlu0 %1089
        %v1091 = vsel %vm764, %v1053, 0.0
        %1092 = vadd.xlane.f32.xlu0 %v1091
        %v1093 = vpop.xlane.xlu0 %1092
        %v1094 = vsel %vm764, %v1054, 0.0
        %1095 = vadd.xlane.f32.xlu0 %v1094
        %v1096 = vpop.xlane.xlu0 %1095
        %v1097 = vsel %vm764, %v1055, 0.0
        %1098 = vadd.xlane.f32.xlu0 %v1097
        %v1099 = vpop.xlane.xlu0 %1098
        %v1100 = vsel %vm764, %v1056, 0.0
        %1101 = vadd.xlane.f32.xlu0 %v1100
        %v1102 = vpop.xlane.xlu0 %1101
        %v1103 = vsel %vm764, %v1057, 0.0
        %1104 = vadd.xlane.f32.xlu0 %v1103
        %v1105 = vpop.xlane.xlu0 %1104
        %v1106 = vmul.f32 %v1060, %v1009
        %v1107 = vmul.f32 %v1063, %v1009
        %v1108 = vmul.f32 %v1066, %v1009
        %v1109 = vmul.f32 %v1069, %v1009
        %v1110 = vmul.f32 %v1072, %v1009
        %v1111 = vmul.f32 %v1075, %v1009
        %v1112 = vmul.f32 %v1078, %v1009
        %v1113 = vmul.f32 %v1081, %v1009
        %v1114 = vmul.f32 %v1084, %v1009
        %v1115 = vmul.f32 %v1087, %v1009
        %v1116 = vmul.f32 %v1090, %v1009
        %v1117 = vmul.f32 %v1093, %v1009
        %v1118 = vmul.f32 %v1096, %v1009
        %v1119 = vmul.f32 %v1099, %v1009
        %v1120 = vmul.f32 %v1102, %v1009
        %v1121 = vmul.f32 %v1105, %v1009
        %v1122 = vadd.f32 %v1106, 1e-08
        %v1123 = vadd.f32 %v1107, 1e-08
        %v1124 = vadd.f32 %v1108, 1e-08
        %v1125 = vadd.f32 %v1109, 1e-08
        %v1126 = vadd.f32 %v1110, 1e-08
        %v1127 = vadd.f32 %v1111, 1e-08
        %v1128 = vadd.f32 %v1112, 1e-08
        %v1129 = vadd.f32 %v1113, 1e-08
        %v1130 = vadd.f32 %v1114, 1e-08
        %v1131 = vadd.f32 %v1115, 1e-08
        %v1132 = vadd.f32 %v1116, 1e-08
        %v1133 = vadd.f32 %v1117, 1e-08
        %v1134 = vadd.f32 %v1118, 1e-08
        %v1135 = vadd.f32 %v1119, 1e-08
        %v1136 = vadd.f32 %v1120, 1e-08
        %v1137 = vadd.f32 %v1121, 1e-08
        %v1138 = vrsqrt.pop %v1122
        %v1139 = vrsqrt.pop %v1123
        %v1140 = vrsqrt.pop %v1124
        %v1141 = vrsqrt.pop %v1125
        %v1142 = vrsqrt.pop %v1126
        %v1143 = vrsqrt.pop %v1127
        %v1144 = vrsqrt.pop %v1128
        %v1145 = vrsqrt.pop %v1129
        %v1146 = vrsqrt.pop %v1130
        %v1147 = vrsqrt.pop %v1131
        %v1148 = vrsqrt.pop %v1132
        %v1149 = vrsqrt.pop %v1133
        %v1150 = vrsqrt.pop %v1134
        %v1151 = vrsqrt.pop %v1135
        %v1152 = vrsqrt.pop %v1136
        %v1153 = vrsqrt.pop %v1137
        %v1154 = vmul.f32 %v1026, %v1138
        %v1155 = vmul.f32 %v1027, %v1139
        %v1156 = vmul.f32 %v1028, %v1140
        %v1157 = vmul.f32 %v1029, %v1141
        %v1158 = vmul.f32 %v1030, %v1142
        %v1159 = vmul.f32 %v1031, %v1143
        %v1160 = vmul.f32 %v1032, %v1144
        %v1161 = vmul.f32 %v1033, %v1145
        %v1162 = vmul.f32 %v1034, %v1146
        %v1163 = vmul.f32 %v1035, %v1147
        %v1164 = vmul.f32 %v1036, %v1148
        %v1165 = vmul.f32 %v1037, %v1149
        %v1166 = vmul.f32 %v1038, %v1150
        %v1167 = vmul.f32 %v1039, %v1151
        %v1168 = vmul.f32 %v1040, %v1152
        %v1169 = vmul.f32 %v1041, %v1153
        %v1170 = vld [vmem:[%s3] sm:$0x1]
        %v1171 = vlaneseq
        %v1172 = vshrl.u32 %v1171, 7
        %v1173 = vsub.s32 0, %v1172
        %v1174 = vrot.slane %v1170, %v1173
        %v1175 = vmul.f32 %v1154, %v1174
        %v1176 = vmul.f32 %v1155, %v1174
        %v1177 = vmul.f32 %v1156, %v1174
        %v1178 = vmul.f32 %v1157, %v1174
        %v1179 = vmul.f32 %v1158, %v1174
        %v1180 = vmul.f32 %v1159, %v1174
        %v1181 = vmul.f32 %v1160, %v1174
        %v1182 = vmul.f32 %v1161, %v1174
        %v1183 = vmul.f32 %v1162, %v1174
        %v1184 = vmul.f32 %v1163, %v1174
        %v1185 = vmul.f32 %v1164, %v1174
        %v1186 = vmul.f32 %v1165, %v1174
        %v1187 = vmul.f32 %v1166, %v1174
        %v1188 = vmul.f32 %v1167, %v1174
        %v1189 = vmul.f32 %v1168, %v1174
        %v1190 = vmul.f32 %v1169, %v1174
        %v1191 = vld [vmem:[%s4] sm:$0x1]
        %v1192 = vlaneseq
        %v1193 = vshrl.u32 %v1192, 7
        %v1194 = vsub.s32 0, %v1193
        %v1195 = vrot.slane %v1191, %v1194
        %v1196 = vadd.f32 %v1175, %v1195
        %v1197 = vadd.f32 %v1176, %v1195
        %v1198 = vadd.f32 %v1177, %v1195
        %v1199 = vadd.f32 %v1178, %v1195
        %v1200 = vadd.f32 %v1179, %v1195
        %v1201 = vadd.f32 %v1180, %v1195
        %v1202 = vadd.f32 %v1181, %v1195
        %v1203 = vadd.f32 %v1182, %v1195
        %v1204 = vadd.f32 %v1183, %v1195
        %v1205 = vadd.f32 %v1184, %v1195
        %v1206 = vadd.f32 %v1185, %v1195
        %v1207 = vadd.f32 %v1186, %v1195
        %v1208 = vadd.f32 %v1187, %v1195
        %v1209 = vadd.f32 %v1188, %v1195
        %v1210 = vadd.f32 %v1189, %v1195
        %v1211 = vadd.f32 %v1190, %v1195
        %v1212 = vmax.f32 %v1196, 0.0
        %v1213 = vmax.f32 %v1197, 0.0
        %v1214 = vmax.f32 %v1198, 0.0
        %v1215 = vmax.f32 %v1199, 0.0
        %v1216 = vmax.f32 %v1200, 0.0
        %v1217 = vmax.f32 %v1201, 0.0
        %v1218 = vmax.f32 %v1202, 0.0
        %v1219 = vmax.f32 %v1203, 0.0
        %v1220 = vmax.f32 %v1204, 0.0
        %v1221 = vmax.f32 %v1205, 0.0
        %v1222 = vmax.f32 %v1206, 0.0
        %v1223 = vmax.f32 %v1207, 0.0
        %v1224 = vmax.f32 %v1208, 0.0
        %v1225 = vmax.f32 %v1209, 0.0
        %v1226 = vmax.f32 %v1210, 0.0
        %v1227 = vmax.f32 %v1211, 0.0
        %s1228 = scalar_lea.vmem %s1, 48
        %v1229 = vld [vmem:[%s1228] sm:$0xf]
        %v1230 = vld [vmem:[%s1228 + $0x4] sm:$0xf]
        %v1231 = vld [vmem:[%s1228 + $0x8] sm:$0xf]
        %v1232 = vld [vmem:[%s1228 + $0xc] sm:$0xf]
        %v1233 = vld [vmem:[%s1228 + $0x10] sm:$0xf]
        %v1234 = vld [vmem:[%s1228 + $0x14] sm:$0xf]
        %v1235 = vld [vmem:[%s1228 + $0x18] sm:$0xf]
        %v1236 = vld [vmem:[%s1228 + $0x1c] sm:$0xf]
        %v1237 = vld [vmem:[%s1228 + $0x20] sm:$0xf]
        %v1238 = vld [vmem:[%s1228 + $0x24] sm:$0xf]
        %v1239 = vld [vmem:[%s1228 + $0x28] sm:$0xf]
        %v1240 = vld [vmem:[%s1228 + $0x2c] sm:$0xf]
        %v1241 = vrot.slane %v1212, 4
        %v1242 = vrot.slane %v1213, 4
        %v1243 = vrot.slane %v1214, 4
        %v1244 = vrot.slane %v1215, 4
        %v1245 = vrot.slane %v1216, 4
        %v1246 = vrot.slane %v1217, 4
        %v1247 = vrot.slane %v1218, 4
        %v1248 = vrot.slane %v1219, 4
        %v1249 = vrot.slane %v1220, 4
        %v1250 = vrot.slane %v1221, 4
        %v1251 = vrot.slane %v1222, 4
        %v1252 = vrot.slane %v1223, 4
        %v1253 = vrot.slane %v1224, 4
        %v1254 = vrot.slane %v1225, 4
        %v1255 = vrot.slane %v1226, 4
        %v1256 = vrot.slane %v1227, 4
        %vm1257 = vcmp.lt.s32.totalorder %v246, 4
        %v1258 = vsel %vm1257, %v1255, %v1256
        %v1259 = vsel %vm1257, %v1254, %v1255
        %v1260 = vsel %vm1257, %v1253, %v1254
        %v1261 = vsel %vm1257, %v1252, %v1253
        %v1262 = vsel %vm1257, %v1251, %v1252
        %v1263 = vsel %vm1257, %v1250, %v1251
        %v1264 = vsel %vm1257, %v1249, %v1250
        %v1265 = vsel %vm1257, %v1248, %v1249
        %v1266 = vsel %vm1257, %v1247, %v1248
        %v1267 = vsel %vm1257, %v1246, %v1247
        %v1268 = vsel %vm1257, %v1245, %v1246
        %v1269 = vsel %vm1257, %v1244, %v1245
        %v1270 = vsel %vm1257, %v1243, %v1244
        %v1271 = vsel %vm1257, %v1242, %v1243
        %v1272 = vsel %vm1257, %v1241, %v1242
        %v1273 = vsel %vm1257, %v1256, %v1241
        %v1274 = vsel %vm486, 1, 0
        %v1275 = vsel %vm487, 1, 0
        %v1276 = vsel %vm488, 1, 0
        %v1277 = vsel %vm489, 1, 0
        %v1278 = vsel %vm490, 1, 0
        %v1279 = vsel %vm491, 1, 0
        %v1280 = vsel %vm492, 1, 0
        %v1281 = vsel %vm493, 1, 0
        %v1282 = vsel %vm494, 1, 0
        %v1283 = vsel %vm495, 1, 0
        %v1284 = vsel %vm496, 1, 0
        %v1285 = vsel %vm497, 1, 0
        %v1286 = vsel %vm498, 1, 0
        %v1287 = vsel %vm499, 1, 0
        %v1288 = vsel %vm500, 1, 0
        %v1289 = vsel %vm501, 1, 0
        %vm1290 = vcmp.eq.s32.totalorder %v1274, 1
        %vm1291 = vcmp.eq.s32.totalorder %v1275, 1
        %vm1292 = vcmp.eq.s32.totalorder %v1276, 1
        %vm1293 = vcmp.eq.s32.totalorder %v1277, 1
        %vm1294 = vcmp.eq.s32.totalorder %v1278, 1
        %vm1295 = vcmp.eq.s32.totalorder %v1279, 1
        %vm1296 = vcmp.eq.s32.totalorder %v1280, 1
        %vm1297 = vcmp.eq.s32.totalorder %v1281, 1
        %vm1298 = vcmp.eq.s32.totalorder %v1282, 1
        %vm1299 = vcmp.eq.s32.totalorder %v1283, 1
        %vm1300 = vcmp.eq.s32.totalorder %v1284, 1
        %vm1301 = vcmp.eq.s32.totalorder %v1285, 1
        %vm1302 = vcmp.eq.s32.totalorder %v1286, 1
        %vm1303 = vcmp.eq.s32.totalorder %v1287, 1
        %vm1304 = vcmp.eq.s32.totalorder %v1288, 1
        %vm1305 = vcmp.eq.s32.totalorder %v1289, 1
        %v1306 = vsel %vm1290, %v1273, 0.0
        %v1307 = vsel %vm1291, %v1272, 0.0
        %v1308 = vsel %vm1292, %v1271, 0.0
        %v1309 = vsel %vm1293, %v1270, 0.0
        %v1310 = vsel %vm1294, %v1269, 0.0
        %v1311 = vsel %vm1295, %v1268, 0.0
        %v1312 = vsel %vm1296, %v1267, 0.0
        %v1313 = vsel %vm1297, %v1266, 0.0
        %v1314 = vsel %vm1298, %v1265, 0.0
        %v1315 = vsel %vm1299, %v1264, 0.0
        %v1316 = vsel %vm1300, %v1263, 0.0
        %v1317 = vsel %vm1301, %v1262, 0.0
        %v1318 = vsel %vm1302, %v1261, 0.0
        %v1319 = vsel %vm1303, %v1260, 0.0
        %v1320 = vsel %vm1304, %v1259, 0.0
        %v1321 = vsel %vm1305, %v1258, 0.0
        %v1322 = vpack.c.bf16 %v1307, %v1306
        %v1323 = vpack.c.bf16 %v1309, %v1308
        %v1324 = vpack.c.bf16 %v1311, %v1310
        %v1325 = vpack.c.bf16 %v1313, %v1312
        %v1326 = vpack.c.bf16 %v1315, %v1314
        %v1327 = vpack.c.bf16 %v1317, %v1316
        %v1328 = vpack.c.bf16 %v1319, %v1318
        %v1329 = vpack.c.bf16 %v1321, %v1320
        %v1330 = vrot.slane %v1212, 6
        %v1331 = vrot.slane %v1213, 6
        %v1332 = vrot.slane %v1214, 6
        %v1333 = vrot.slane %v1215, 6
        %v1334 = vrot.slane %v1216, 6
        %v1335 = vrot.slane %v1217, 6
        %v1336 = vrot.slane %v1218, 6
        %v1337 = vrot.slane %v1219, 6
        %v1338 = vrot.slane %v1220, 6
        %v1339 = vrot.slane %v1221, 6
        %v1340 = vrot.slane %v1222, 6
        %v1341 = vrot.slane %v1223, 6
        %v1342 = vrot.slane %v1224, 6
        %v1343 = vrot.slane %v1225, 6
        %v1344 = vrot.slane %v1226, 6
        %v1345 = vrot.slane %v1227, 6
        %v1346 = vsel %vm546, %v1344, %v1345
        %v1347 = vsel %vm546, %v1343, %v1344
        %v1348 = vsel %vm546, %v1342, %v1343
        %v1349 = vsel %vm546, %v1341, %v1342
        %v1350 = vsel %vm546, %v1340, %v1341
        %v1351 = vsel %vm546, %v1339, %v1340
        %v1352 = vsel %vm546, %v1338, %v1339
        %v1353 = vsel %vm546, %v1337, %v1338
        %v1354 = vsel %vm546, %v1336, %v1337
        %v1355 = vsel %vm546, %v1335, %v1336
        %v1356 = vsel %vm546, %v1334, %v1335
        %v1357 = vsel %vm546, %v1333, %v1334
        %v1358 = vsel %vm546, %v1332, %v1333
        %v1359 = vsel %vm546, %v1331, %v1332
        %v1360 = vsel %vm546, %v1330, %v1331
        %v1361 = vsel %vm546, %v1345, %v1330
        %v1362 = vsel %vm579, %v1361, 0.0
        %v1363 = vsel %vm580, %v1360, 0.0
        %v1364 = vsel %vm581, %v1359, 0.0
        %v1365 = vsel %vm582, %v1358, 0.0
        %v1366 = vsel %vm583, %v1357, 0.0
        %v1367 = vsel %vm584, %v1356, 0.0
        %v1368 = vsel %vm585, %v1355, 0.0
        %v1369 = vsel %vm586, %v1354, 0.0
        %v1370 = vsel %vm587, %v1353, 0.0
        %v1371 = vsel %vm588, %v1352, 0.0
        %v1372 = vsel %vm589, %v1351, 0.0
        %v1373 = vsel %vm590, %v1350, 0.0
        %v1374 = vsel %vm591, %v1349, 0.0
        %v1375 = vsel %vm592, %v1348, 0.0
        %v1376 = vsel %vm593, %v1347, 0.0
        %v1377 = vsel %vm594, %v1346, 0.0
        %v1378 = vpack.c.bf16 %v1363, %v1362
        %v1379 = vpack.c.bf16 %v1365, %v1364
        %v1380 = vpack.c.bf16 %v1367, %v1366
        %v1381 = vpack.c.bf16 %v1369, %v1368
        %v1382 = vpack.c.bf16 %v1371, %v1370
        %v1383 = vpack.c.bf16 %v1373, %v1372
        %v1384 = vpack.c.bf16 %v1375, %v1374
        %v1385 = vpack.c.bf16 %v1377, %v1376
        %v1386 = vpack.c.bf16 %v1213, %v1212
        %v1387 = vpack.c.bf16 %v1215, %v1214
        %v1388 = vpack.c.bf16 %v1217, %v1216
        %v1389 = vpack.c.bf16 %v1219, %v1218
        %v1390 = vpack.c.bf16 %v1221, %v1220
        %v1391 = vpack.c.bf16 %v1223, %v1222
        %v1392 = vpack.c.bf16 %v1225, %v1224
        %v1393 = vpack.c.bf16 %v1227, %v1226
        %1402 = vrot.lane.b32.xlu0 %v1378, 32
        %v1403 = vpop.permute.xlu0 %1402
        %1404 = vrot.lane.b32.xlu0 %v1379, 32
        %v1405 = vpop.permute.xlu0 %1404
        %1406 = vrot.lane.b32.xlu0 %v1380, 32
        %v1407 = vpop.permute.xlu0 %1406
        %1408 = vrot.lane.b32.xlu0 %v1381, 32
        %v1409 = vpop.permute.xlu0 %1408
        %1410 = vrot.lane.b32.xlu0 %v1382, 32
        %v1411 = vpop.permute.xlu0 %1410
        %1412 = vrot.lane.b32.xlu0 %v1383, 32
        %v1413 = vpop.permute.xlu0 %1412
        %1414 = vrot.lane.b32.xlu0 %v1384, 32
        %v1415 = vpop.permute.xlu0 %1414
        %1416 = vrot.lane.b32.xlu0 %v1385, 32
        %v1417 = vpop.permute.xlu0 %1416
        %1426 = vrot.lane.b32.xlu0 %v1386, 64
        %v1427 = vpop.permute.xlu0 %1426
        %1428 = vrot.lane.b32.xlu0 %v1387, 64
        %v1429 = vpop.permute.xlu0 %1428
        %1430 = vrot.lane.b32.xlu0 %v1388, 64
        %v1431 = vpop.permute.xlu0 %1430
        %1432 = vrot.lane.b32.xlu0 %v1389, 64
        %v1433 = vpop.permute.xlu0 %1432
        %1434 = vrot.lane.b32.xlu0 %v1390, 64
        %v1435 = vpop.permute.xlu0 %1434
        %1436 = vrot.lane.b32.xlu0 %v1391, 64
        %v1437 = vpop.permute.xlu0 %1436
        %1438 = vrot.lane.b32.xlu0 %v1392, 64
        %v1439 = vpop.permute.xlu0 %1438
        %1440 = vrot.lane.b32.xlu0 %v1393, 64
        %v1441 = vpop.permute.xlu0 %1440
        %v1444 = vsel %vm764, %v1322, %v1403
        %v1447 = vsel %vm764, %v1323, %v1405
        %v1450 = vsel %vm764, %v1324, %v1407
        %v1453 = vsel %vm764, %v1325, %v1409
        %v1456 = vsel %vm764, %v1326, %v1411
        %v1459 = vsel %vm764, %v1327, %v1413
        %v1462 = vsel %vm764, %v1328, %v1415
        %v1465 = vsel %vm764, %v1329, %v1417
        %v1467 = vsel %vm789, %v1444, %v1427
        %v1469 = vsel %vm789, %v1447, %v1429
        %v1471 = vsel %vm789, %v1450, %v1431
        %v1473 = vsel %vm789, %v1453, %v1433
        %v1475 = vsel %vm789, %v1456, %v1435
        %v1477 = vsel %vm789, %v1459, %v1437
        %v1479 = vsel %vm789, %v1462, %v1439
        %v1481 = vsel %vm789, %v1465, %v1441
        %v1482 = vld [vmem:[%s2 + $0x1] sm:$0x1]
        %v1483 = vlaneseq
        %v1484 = vshrl.u32 %v1483, 7
        %v1485 = vsub.s32 0, %v1484
        %v1486 = vrot.slane %v1482, %v1485
        %v1499 = vunpack.c.l.b16 %v1229
        %v1500 = vunpack.c.l.b16 %v1230
        %v1501 = vunpack.c.l.b16 %v1231
        %v1502 = vunpack.c.l.b16 %v1232
        %v1503 = vunpack.c.l.b16 %v1233
        %v1504 = vunpack.c.l.b16 %v1234
        %v1505 = vunpack.c.l.b16 %v1235
        %v1506 = vunpack.c.l.b16 %v1236
        %v1507 = vunpack.c.l.b16 %v1237
        %v1508 = vunpack.c.l.b16 %v1238
        %v1509 = vunpack.c.l.b16 %v1239
        %v1510 = vunpack.c.l.b16 %v1240
        %v1511 = vpack.c.b16 %v1500, %v1499
        %v1512 = vpack.c.b16 %v1502, %v1501
        %v1513 = vpack.c.b16 %v1504, %v1503
        %v1514 = vpack.c.b16 %v1506, %v1505
        %v1515 = vpack.c.b16 %v1508, %v1507
        %v1516 = vpack.c.b16 %v1510, %v1509
        %v1523 = vsel %vm847, %v1467, 0
        %v1525 = vsel %vm847, %v1469, 0
        %v1527 = vsel %vm847, %v1471, 0
        %v1529 = vsel %vm847, %v1473, 0
        %v1531 = vsel %vm847, %v1475, 0
        %v1533 = vsel %vm847, %v1477, 0
        %v1535 = vsel %vm847, %v1479, 0
        %v1537 = vsel %vm847, %v1481, 0
        %1539 = vmatprep.subr.bf16.mxu0 0
        %1540 = vmatpush1.bf16.msra.mxu0 %v1511
        %1541 = vmatprep.subr.bf16.mxu0 0
        %1542 = vmatpush1.bf16.msra.mxu0 %v1512
        %1543 = vmatprep.subr.bf16.mxu0 0
        %1544 = vmatpush1.bf16.msra.mxu0 %v1513
        %1545 = vmatprep.subr.bf16.mxu0 0
        %1546 = vmatpush1.bf16.msra.mxu0 %v1514
        %1547 = vmatprep.subr.bf16.mxu0 0
        %1548 = vmatpush1.bf16.msra.mxu0 %v1515
        %1549 = vmatprep.subr.bf16.mxu0 0
        %1550 = vmatpush1.bf16.msra.mxu0 %v1516
        %1551 = vmatprep.subr.bf16.mxu0 0
        %1552 = vmatpush1.bf16.msra.mxu0 0
        %1553 = vmatprep.subr.bf16.mxu0 0
        %1554 = vmatpush1.bf16.msra.mxu0 0
        %1555 = vmatprep.subr.bf16.mxu0 0
        %1556 = vmatpush1.bf16.msra.mxu0 0
        %1557 = vmatprep.subr.bf16.mxu0 0
        %1558 = vmatpush1.bf16.msra.mxu0 0
        %1559 = vmatprep.subr.bf16.mxu0 0
        %1560 = vmatpush1.bf16.msra.mxu0 0
        %1561 = vmatprep.subr.bf16.mxu0 0
        %1562 = vmatpush1.bf16.msra.mxu0 0
        %1563 = vmatprep.subr.bf16.mxu0 0
        %1564 = vmatpush1.bf16.msra.mxu0 0
        %1565 = vmatprep.subr.bf16.mxu0 0
        %1566 = vmatpush1.bf16.msra.mxu0 0
        %1567 = vmatprep.subr.bf16.mxu0 0
        %1568 = vmatpush1.bf16.msra.mxu0 0
        %1569 = vmatprep.subr.bf16.mxu0 0
        %1570 = vmatpush1.bf16.msra.mxu0 0
        %1571 = vmatprep.mubr.bf16.mxu0 0
        %1572 = vmatmul.mubr.bf16.gmra.mrb[0].mxu0 %v1523
        %v1573 = vpop.f32.mrb[0].mxu0
        %v1574 = vadd.f32 %v1486, %v1573
        %v1575 = vpop.f32.mrb[0].mxu0
        %v1576 = vpop.f32.mrb[0].mxu0
        %v1577 = vadd.f32 %v1486, %v1576
        %v1578 = vpop.f32.mrb[0].mxu0
        %1579 = vmatprep.mubr.bf16.mxu0 0
        %1580 = vmatmul.mubr.bf16.gmra.mrb[0].mxu0 %v1525
        %v1581 = vpop.f32.mrb[0].mxu0
        %v1582 = vadd.f32 %v1486, %v1581
        %v1583 = vpop.f32.mrb[0].mxu0
        %v1584 = vpop.f32.mrb[0].mxu0
        %v1585 = vadd.f32 %v1486, %v1584
        %v1586 = vpop.f32.mrb[0].mxu0
        %1587 = vmatprep.mubr.bf16.mxu0 0
        %1588 = vmatmul.mubr.bf16.gmra.mrb[0].mxu0 %v1527
        %v1589 = vpop.f32.mrb[0].mxu0
        %v1590 = vadd.f32 %v1486, %v1589
        %v1591 = vpop.f32.mrb[0].mxu0
        %v1592 = vpop.f32.mrb[0].mxu0
        %v1593 = vadd.f32 %v1486, %v1592
        %v1594 = vpop.f32.mrb[0].mxu0
        %1595 = vmatprep.mubr.bf16.mxu0 0
        %1596 = vmatmul.mubr.bf16.gmra.mrb[0].mxu0 %v1529
        %v1597 = vpop.f32.mrb[0].mxu0
        %v1598 = vadd.f32 %v1486, %v1597
        %v1599 = vpop.f32.mrb[0].mxu0
        %v1600 = vpop.f32.mrb[0].mxu0
        %v1601 = vadd.f32 %v1486, %v1600
        %v1602 = vpop.f32.mrb[0].mxu0
        %1603 = vmatprep.mubr.bf16.mxu0 0
        %1604 = vmatmul.mubr.bf16.gmra.mrb[0].mxu0 %v1531
        %v1605 = vpop.f32.mrb[0].mxu0
        %v1606 = vadd.f32 %v1486, %v1605
        %v1607 = vpop.f32.mrb[0].mxu0
        %v1608 = vpop.f32.mrb[0].mxu0
        %v1609 = vadd.f32 %v1486, %v1608
        %v1610 = vpop.f32.mrb[0].mxu0
        %1611 = vmatprep.mubr.bf16.mxu0 0
        %1612 = vmatmul.mubr.bf16.gmra.mrb[0].mxu0 %v1533
        %v1613 = vpop.f32.mrb[0].mxu0
        %v1614 = vadd.f32 %v1486, %v1613
        %v1615 = vpop.f32.mrb[0].mxu0
        %v1616 = vpop.f32.mrb[0].mxu0
        %v1617 = vadd.f32 %v1486, %v1616
        %v1618 = vpop.f32.mrb[0].mxu0
        %1619 = vmatprep.mubr.bf16.mxu0 0
        %1620 = vmatmul.mubr.bf16.gmra.mrb[0].mxu0 %v1535
        %v1621 = vpop.f32.mrb[0].mxu0
        %v1622 = vadd.f32 %v1486, %v1621
        %v1623 = vpop.f32.mrb[0].mxu0
        %v1624 = vpop.f32.mrb[0].mxu0
        %v1625 = vadd.f32 %v1486, %v1624
        %v1626 = vpop.f32.mrb[0].mxu0
        %1627 = vmatprep.mubr.bf16.mxu0 0
        %1628 = vmatmul.mubr.bf16.gmra.mrb[0].mxu0 %v1537
        %v1629 = vpop.f32.mrb[0].mxu0
        %v1630 = vadd.f32 %v1486, %v1629
        %v1631 = vpop.f32.mrb[0].mxu0
        %v1632 = vpop.f32.mrb[0].mxu0
        %v1633 = vadd.f32 %v1486, %v1632
        %v1634 = vpop.f32.mrb[0].mxu0
        %1635 = vdwg.mxu0
        %v1636 = vsel %vm764, %v1574, 0.0
        %1637 = vadd.xlane.f32.xlu0 %v1636
        %v1638 = vpop.xlane.xlu0 %1637
        %v1639 = vsel %vm764, %v1577, 0.0
        %1640 = vadd.xlane.f32.xlu0 %v1639
        %v1641 = vpop.xlane.xlu0 %1640
        %v1642 = vsel %vm764, %v1582, 0.0
        %1643 = vadd.xlane.f32.xlu0 %v1642
        %v1644 = vpop.xlane.xlu0 %1643
        %v1645 = vsel %vm764, %v1585, 0.0
        %1646 = vadd.xlane.f32.xlu0 %v1645
        %v1647 = vpop.xlane.xlu0 %1646
        %v1648 = vsel %vm764, %v1590, 0.0
        %1649 = vadd.xlane.f32.xlu0 %v1648
        %v1650 = vpop.xlane.xlu0 %1649
        %v1651 = vsel %vm764, %v1593, 0.0
        %1652 = vadd.xlane.f32.xlu0 %v1651
        %v1653 = vpop.xlane.xlu0 %1652
        %v1654 = vsel %vm764, %v1598, 0.0
        %1655 = vadd.xlane.f32.xlu0 %v1654
        %v1656 = vpop.xlane.xlu0 %1655
        %v1657 = vsel %vm764, %v1601, 0.0
        %1658 = vadd.xlane.f32.xlu0 %v1657
        %v1659 = vpop.xlane.xlu0 %1658
        %v1660 = vsel %vm764, %v1606, 0.0
        %1661 = vadd.xlane.f32.xlu0 %v1660
        %v1662 = vpop.xlane.xlu0 %1661
        %v1663 = vsel %vm764, %v1609, 0.0
        %1664 = vadd.xlane.f32.xlu0 %v1663
        %v1665 = vpop.xlane.xlu0 %1664
        %v1666 = vsel %vm764, %v1614, 0.0
        %1667 = vadd.xlane.f32.xlu0 %v1666
        %v1668 = vpop.xlane.xlu0 %1667
        %v1669 = vsel %vm764, %v1617, 0.0
        %1670 = vadd.xlane.f32.xlu0 %v1669
        %v1671 = vpop.xlane.xlu0 %1670
        %v1672 = vsel %vm764, %v1622, 0.0
        %1673 = vadd.xlane.f32.xlu0 %v1672
        %v1674 = vpop.xlane.xlu0 %1673
        %v1675 = vsel %vm764, %v1625, 0.0
        %1676 = vadd.xlane.f32.xlu0 %v1675
        %v1677 = vpop.xlane.xlu0 %1676
        %v1678 = vsel %vm764, %v1630, 0.0
        %1679 = vadd.xlane.f32.xlu0 %v1678
        %v1680 = vpop.xlane.xlu0 %1679
        %v1681 = vsel %vm764, %v1633, 0.0
        %1682 = vadd.xlane.f32.xlu0 %v1681
        %v1683 = vpop.xlane.xlu0 %1682
        %v1684 = vmul.f32 %v1638, %v1009
        %v1685 = vmul.f32 %v1641, %v1009
        %v1686 = vmul.f32 %v1644, %v1009
        %v1687 = vmul.f32 %v1647, %v1009
        %v1688 = vmul.f32 %v1650, %v1009
        %v1689 = vmul.f32 %v1653, %v1009
        %v1690 = vmul.f32 %v1656, %v1009
        %v1691 = vmul.f32 %v1659, %v1009
        %v1692 = vmul.f32 %v1662, %v1009
        %v1693 = vmul.f32 %v1665, %v1009
        %v1694 = vmul.f32 %v1668, %v1009
        %v1695 = vmul.f32 %v1671, %v1009
        %v1696 = vmul.f32 %v1674, %v1009
        %v1697 = vmul.f32 %v1677, %v1009
        %v1698 = vmul.f32 %v1680, %v1009
        %v1699 = vmul.f32 %v1683, %v1009
        %v1700 = vsub.f32 %v1574, %v1684
        %v1701 = vsub.f32 %v1577, %v1685
        %v1702 = vsub.f32 %v1582, %v1686
        %v1703 = vsub.f32 %v1585, %v1687
        %v1704 = vsub.f32 %v1590, %v1688
        %v1705 = vsub.f32 %v1593, %v1689
        %v1706 = vsub.f32 %v1598, %v1690
        %v1707 = vsub.f32 %v1601, %v1691
        %v1708 = vsub.f32 %v1606, %v1692
        %v1709 = vsub.f32 %v1609, %v1693
        %v1710 = vsub.f32 %v1614, %v1694
        %v1711 = vsub.f32 %v1617, %v1695
        %v1712 = vsub.f32 %v1622, %v1696
        %v1713 = vsub.f32 %v1625, %v1697
        %v1714 = vsub.f32 %v1630, %v1698
        %v1715 = vsub.f32 %v1633, %v1699
        %v1716 = vmul.f32 %v1700, %v1700
        %v1717 = vmul.f32 %v1701, %v1701
        %v1718 = vmul.f32 %v1702, %v1702
        %v1719 = vmul.f32 %v1703, %v1703
        %v1720 = vmul.f32 %v1704, %v1704
        %v1721 = vmul.f32 %v1705, %v1705
        %v1722 = vmul.f32 %v1706, %v1706
        %v1723 = vmul.f32 %v1707, %v1707
        %v1724 = vmul.f32 %v1708, %v1708
        %v1725 = vmul.f32 %v1709, %v1709
        %v1726 = vmul.f32 %v1710, %v1710
        %v1727 = vmul.f32 %v1711, %v1711
        %v1728 = vmul.f32 %v1712, %v1712
        %v1729 = vmul.f32 %v1713, %v1713
        %v1730 = vmul.f32 %v1714, %v1714
        %v1731 = vmul.f32 %v1715, %v1715
        %v1732 = vsel %vm764, %v1716, 0.0
        %1733 = vadd.xlane.f32.xlu0 %v1732
        %v1734 = vpop.xlane.xlu0 %1733
        %v1735 = vsel %vm764, %v1717, 0.0
        %1736 = vadd.xlane.f32.xlu0 %v1735
        %v1737 = vpop.xlane.xlu0 %1736
        %v1738 = vsel %vm764, %v1718, 0.0
        %1739 = vadd.xlane.f32.xlu0 %v1738
        %v1740 = vpop.xlane.xlu0 %1739
        %v1741 = vsel %vm764, %v1719, 0.0
        %1742 = vadd.xlane.f32.xlu0 %v1741
        %v1743 = vpop.xlane.xlu0 %1742
        %v1744 = vsel %vm764, %v1720, 0.0
        %1745 = vadd.xlane.f32.xlu0 %v1744
        %v1746 = vpop.xlane.xlu0 %1745
        %v1747 = vsel %vm764, %v1721, 0.0
        %1748 = vadd.xlane.f32.xlu0 %v1747
        %v1749 = vpop.xlane.xlu0 %1748
        %v1750 = vsel %vm764, %v1722, 0.0
        %1751 = vadd.xlane.f32.xlu0 %v1750
        %v1752 = vpop.xlane.xlu0 %1751
        %v1753 = vsel %vm764, %v1723, 0.0
        %1754 = vadd.xlane.f32.xlu0 %v1753
        %v1755 = vpop.xlane.xlu0 %1754
        %v1756 = vsel %vm764, %v1724, 0.0
        %1757 = vadd.xlane.f32.xlu0 %v1756
        %v1758 = vpop.xlane.xlu0 %1757
        %v1759 = vsel %vm764, %v1725, 0.0
        %1760 = vadd.xlane.f32.xlu0 %v1759
        %v1761 = vpop.xlane.xlu0 %1760
        %v1762 = vsel %vm764, %v1726, 0.0
        %1763 = vadd.xlane.f32.xlu0 %v1762
        %v1764 = vpop.xlane.xlu0 %1763
        %v1765 = vsel %vm764, %v1727, 0.0
        %1766 = vadd.xlane.f32.xlu0 %v1765
        %v1767 = vpop.xlane.xlu0 %1766
        %v1768 = vsel %vm764, %v1728, 0.0
        %1769 = vadd.xlane.f32.xlu0 %v1768
        %v1770 = vpop.xlane.xlu0 %1769
        %v1771 = vsel %vm764, %v1729, 0.0
        %1772 = vadd.xlane.f32.xlu0 %v1771
        %v1773 = vpop.xlane.xlu0 %1772
        %v1774 = vsel %vm764, %v1730, 0.0
        %1775 = vadd.xlane.f32.xlu0 %v1774
        %v1776 = vpop.xlane.xlu0 %1775
        %v1777 = vsel %vm764, %v1731, 0.0
        %1778 = vadd.xlane.f32.xlu0 %v1777
        %v1779 = vpop.xlane.xlu0 %1778
        %v1780 = vmul.f32 %v1734, %v1009
        %v1781 = vmul.f32 %v1737, %v1009
        %v1782 = vmul.f32 %v1740, %v1009
        %v1783 = vmul.f32 %v1743, %v1009
        %v1784 = vmul.f32 %v1746, %v1009
        %v1785 = vmul.f32 %v1749, %v1009
        %v1786 = vmul.f32 %v1752, %v1009
        %v1787 = vmul.f32 %v1755, %v1009
        %v1788 = vmul.f32 %v1758, %v1009
        %v1789 = vmul.f32 %v1761, %v1009
        %v1790 = vmul.f32 %v1764, %v1009
        %v1791 = vmul.f32 %v1767, %v1009
        %v1792 = vmul.f32 %v1770, %v1009
        %v1793 = vmul.f32 %v1773, %v1009
        %v1794 = vmul.f32 %v1776, %v1009
        %v1795 = vmul.f32 %v1779, %v1009
        %v1796 = vadd.f32 %v1780, 1e-08
        %v1797 = vadd.f32 %v1781, 1e-08
        %v1798 = vadd.f32 %v1782, 1e-08
        %v1799 = vadd.f32 %v1783, 1e-08
        %v1800 = vadd.f32 %v1784, 1e-08
        %v1801 = vadd.f32 %v1785, 1e-08
        %v1802 = vadd.f32 %v1786, 1e-08
        %v1803 = vadd.f32 %v1787, 1e-08
        %v1804 = vadd.f32 %v1788, 1e-08
        %v1805 = vadd.f32 %v1789, 1e-08
        %v1806 = vadd.f32 %v1790, 1e-08
        %v1807 = vadd.f32 %v1791, 1e-08
        %v1808 = vadd.f32 %v1792, 1e-08
        %v1809 = vadd.f32 %v1793, 1e-08
        %v1810 = vadd.f32 %v1794, 1e-08
        %v1811 = vadd.f32 %v1795, 1e-08
        %v1812 = vrsqrt.pop %v1796
        %v1813 = vrsqrt.pop %v1797
        %v1814 = vrsqrt.pop %v1798
        %v1815 = vrsqrt.pop %v1799
        %v1816 = vrsqrt.pop %v1800
        %v1817 = vrsqrt.pop %v1801
        %v1818 = vrsqrt.pop %v1802
        %v1819 = vrsqrt.pop %v1803
        %v1820 = vrsqrt.pop %v1804
        %v1821 = vrsqrt.pop %v1805
        %v1822 = vrsqrt.pop %v1806
        %v1823 = vrsqrt.pop %v1807
        %v1824 = vrsqrt.pop %v1808
        %v1825 = vrsqrt.pop %v1809
        %v1826 = vrsqrt.pop %v1810
        %v1827 = vrsqrt.pop %v1811
        %v1828 = vmul.f32 %v1700, %v1812
        %v1829 = vmul.f32 %v1701, %v1813
        %v1830 = vmul.f32 %v1702, %v1814
        %v1831 = vmul.f32 %v1703, %v1815
        %v1832 = vmul.f32 %v1704, %v1816
        %v1833 = vmul.f32 %v1705, %v1817
        %v1834 = vmul.f32 %v1706, %v1818
        %v1835 = vmul.f32 %v1707, %v1819
        %v1836 = vmul.f32 %v1708, %v1820
        %v1837 = vmul.f32 %v1709, %v1821
        %v1838 = vmul.f32 %v1710, %v1822
        %v1839 = vmul.f32 %v1711, %v1823
        %v1840 = vmul.f32 %v1712, %v1824
        %v1841 = vmul.f32 %v1713, %v1825
        %v1842 = vmul.f32 %v1714, %v1826
        %v1843 = vmul.f32 %v1715, %v1827
        %v1844 = vld [vmem:[%s3 + $0x1] sm:$0x1]
        %v1845 = vlaneseq
        %v1846 = vshrl.u32 %v1845, 7
        %v1847 = vsub.s32 0, %v1846
        %v1848 = vrot.slane %v1844, %v1847
        %v1849 = vmul.f32 %v1828, %v1848
        %v1850 = vmul.f32 %v1829, %v1848
        %v1851 = vmul.f32 %v1830, %v1848
        %v1852 = vmul.f32 %v1831, %v1848
        %v1853 = vmul.f32 %v1832, %v1848
        %v1854 = vmul.f32 %v1833, %v1848
        %v1855 = vmul.f32 %v1834, %v1848
        %v1856 = vmul.f32 %v1835, %v1848
        %v1857 = vmul.f32 %v1836, %v1848
        %v1858 = vmul.f32 %v1837, %v1848
        %v1859 = vmul.f32 %v1838, %v1848
        %v1860 = vmul.f32 %v1839, %v1848
        %v1861 = vmul.f32 %v1840, %v1848
        %v1862 = vmul.f32 %v1841, %v1848
        %v1863 = vmul.f32 %v1842, %v1848
        %v1864 = vmul.f32 %v1843, %v1848
        %v1865 = vld [vmem:[%s4 + $0x1] sm:$0x1]
        %v1866 = vlaneseq
        %v1867 = vshrl.u32 %v1866, 7
        %v1868 = vsub.s32 0, %v1867
        %v1869 = vrot.slane %v1865, %v1868
        %v1870 = vadd.f32 %v1849, %v1869
        %v1871 = vadd.f32 %v1850, %v1869
        %v1872 = vadd.f32 %v1851, %v1869
        %v1873 = vadd.f32 %v1852, %v1869
        %v1874 = vadd.f32 %v1853, %v1869
        %v1875 = vadd.f32 %v1854, %v1869
        %v1876 = vadd.f32 %v1855, %v1869
        %v1877 = vadd.f32 %v1856, %v1869
        %v1878 = vadd.f32 %v1857, %v1869
        %v1879 = vadd.f32 %v1858, %v1869
        %v1880 = vadd.f32 %v1859, %v1869
        %v1881 = vadd.f32 %v1860, %v1869
        %v1882 = vadd.f32 %v1861, %v1869
        %v1883 = vadd.f32 %v1862, %v1869
        %v1884 = vadd.f32 %v1863, %v1869
        %v1885 = vadd.f32 %v1864, %v1869
        %v1886 = vmax.f32 %v1870, 0.0
        %v1887 = vmax.f32 %v1871, 0.0
        %v1888 = vmax.f32 %v1872, 0.0
        %v1889 = vmax.f32 %v1873, 0.0
        %v1890 = vmax.f32 %v1874, 0.0
        %v1891 = vmax.f32 %v1875, 0.0
        %v1892 = vmax.f32 %v1876, 0.0
        %v1893 = vmax.f32 %v1877, 0.0
        %v1894 = vmax.f32 %v1878, 0.0
        %v1895 = vmax.f32 %v1879, 0.0
        %v1896 = vmax.f32 %v1880, 0.0
        %v1897 = vmax.f32 %v1881, 0.0
        %v1898 = vmax.f32 %v1882, 0.0
        %v1899 = vmax.f32 %v1883, 0.0
        %v1900 = vmax.f32 %v1884, 0.0
        %v1901 = vmax.f32 %v1885, 0.0
        %v1902 = vadd.f32 %v1886, %v229
        %v1903 = vadd.f32 %v1887, %v230
        %v1904 = vadd.f32 %v1888, %v231
        %v1905 = vadd.f32 %v1889, %v232
        %v1906 = vadd.f32 %v1890, %v233
        %v1907 = vadd.f32 %v1891, %v234
        %v1908 = vadd.f32 %v1892, %v235
        %v1909 = vadd.f32 %v1893, %v236
        %v1910 = vadd.f32 %v1894, %v237
        %v1911 = vadd.f32 %v1895, %v238
        %v1912 = vadd.f32 %v1896, %v239
        %v1913 = vadd.f32 %v1897, %v240
        %v1914 = vadd.f32 %v1898, %v241
        %v1915 = vadd.f32 %v1899, %v242
        %v1916 = vadd.f32 %v1900, %v243
        %v1917 = vadd.f32 %v1901, %v244
        %s1918 = scalar_lea.vmem %s1, 96
        %v1919 = vld [vmem:[%s1918] sm:$0xf]
        %v1920 = vld [vmem:[%s1918 + $0x4] sm:$0xf]
        %v1921 = vld [vmem:[%s1918 + $0x8] sm:$0xf]
        %v1922 = vld [vmem:[%s1918 + $0xc] sm:$0xf]
        %v1923 = vld [vmem:[%s1918 + $0x10] sm:$0xf]
        %v1924 = vld [vmem:[%s1918 + $0x14] sm:$0xf]
        %v1925 = vld [vmem:[%s1918 + $0x18] sm:$0xf]
        %v1926 = vld [vmem:[%s1918 + $0x1c] sm:$0xf]
        %v1927 = vld [vmem:[%s1918 + $0x20] sm:$0xf]
        %v1928 = vld [vmem:[%s1918 + $0x24] sm:$0xf]
        %v1929 = vld [vmem:[%s1918 + $0x28] sm:$0xf]
        %v1930 = vld [vmem:[%s1918 + $0x2c] sm:$0xf]
        %v1931 = vrot.slane %v1902, 4
        %v1932 = vrot.slane %v1903, 4
        %v1933 = vrot.slane %v1904, 4
        %v1934 = vrot.slane %v1905, 4
        %v1935 = vrot.slane %v1906, 4
        %v1936 = vrot.slane %v1907, 4
        %v1937 = vrot.slane %v1908, 4
        %v1938 = vrot.slane %v1909, 4
        %v1939 = vrot.slane %v1910, 4
        %v1940 = vrot.slane %v1911, 4
        %v1941 = vrot.slane %v1912, 4
        %v1942 = vrot.slane %v1913, 4
        %v1943 = vrot.slane %v1914, 4
        %v1944 = vrot.slane %v1915, 4
        %v1945 = vrot.slane %v1916, 4
        %v1946 = vrot.slane %v1917, 4
        %v1947 = vsel %vm1257, %v1945, %v1946
        %v1948 = vsel %vm1257, %v1944, %v1945
        %v1949 = vsel %vm1257, %v1943, %v1944
        %v1950 = vsel %vm1257, %v1942, %v1943
        %v1951 = vsel %vm1257, %v1941, %v1942
        %v1952 = vsel %vm1257, %v1940, %v1941
        %v1953 = vsel %vm1257, %v1939, %v1940
        %v1954 = vsel %vm1257, %v1938, %v1939
        %v1955 = vsel %vm1257, %v1937, %v1938
        %v1956 = vsel %vm1257, %v1936, %v1937
        %v1957 = vsel %vm1257, %v1935, %v1936
        %v1958 = vsel %vm1257, %v1934, %v1935
        %v1959 = vsel %vm1257, %v1933, %v1934
        %v1960 = vsel %vm1257, %v1932, %v1933
        %v1961 = vsel %vm1257, %v1931, %v1932
        %v1962 = vsel %vm1257, %v1946, %v1931
        %v1963 = vsel %vm1290, %v1962, 0.0
        %v1964 = vsel %vm1291, %v1961, 0.0
        %v1965 = vsel %vm1292, %v1960, 0.0
        %v1966 = vsel %vm1293, %v1959, 0.0
        %v1967 = vsel %vm1294, %v1958, 0.0
        %v1968 = vsel %vm1295, %v1957, 0.0
        %v1969 = vsel %vm1296, %v1956, 0.0
        %v1970 = vsel %vm1297, %v1955, 0.0
        %v1971 = vsel %vm1298, %v1954, 0.0
        %v1972 = vsel %vm1299, %v1953, 0.0
        %v1973 = vsel %vm1300, %v1952, 0.0
        %v1974 = vsel %vm1301, %v1951, 0.0
        %v1975 = vsel %vm1302, %v1950, 0.0
        %v1976 = vsel %vm1303, %v1949, 0.0
        %v1977 = vsel %vm1304, %v1948, 0.0
        %v1978 = vsel %vm1305, %v1947, 0.0
        %v1979 = vpack.c.bf16 %v1964, %v1963
        %v1980 = vpack.c.bf16 %v1966, %v1965
        %v1981 = vpack.c.bf16 %v1968, %v1967
        %v1982 = vpack.c.bf16 %v1970, %v1969
        %v1983 = vpack.c.bf16 %v1972, %v1971
        %v1984 = vpack.c.bf16 %v1974, %v1973
        %v1985 = vpack.c.bf16 %v1976, %v1975
        %v1986 = vpack.c.bf16 %v1978, %v1977
        %v1987 = vrot.slane %v1902, 6
        %v1988 = vrot.slane %v1903, 6
        %v1989 = vrot.slane %v1904, 6
        %v1990 = vrot.slane %v1905, 6
        %v1991 = vrot.slane %v1906, 6
        %v1992 = vrot.slane %v1907, 6
        %v1993 = vrot.slane %v1908, 6
        %v1994 = vrot.slane %v1909, 6
        %v1995 = vrot.slane %v1910, 6
        %v1996 = vrot.slane %v1911, 6
        %v1997 = vrot.slane %v1912, 6
        %v1998 = vrot.slane %v1913, 6
        %v1999 = vrot.slane %v1914, 6
        %v2000 = vrot.slane %v1915, 6
        %v2001 = vrot.slane %v1916, 6
        %v2002 = vrot.slane %v1917, 6
        %v2003 = vsel %vm546, %v2001, %v2002
        %v2004 = vsel %vm546, %v2000, %v2001
        %v2005 = vsel %vm546, %v1999, %v2000
        %v2006 = vsel %vm546, %v1998, %v1999
        %v2007 = vsel %vm546, %v1997, %v1998
        %v2008 = vsel %vm546, %v1996, %v1997
        %v2009 = vsel %vm546, %v1995, %v1996
        %v2010 = vsel %vm546, %v1994, %v1995
        %v2011 = vsel %vm546, %v1993, %v1994
        %v2012 = vsel %vm546, %v1992, %v1993
        %v2013 = vsel %vm546, %v1991, %v1992
        %v2014 = vsel %vm546, %v1990, %v1991
        %v2015 = vsel %vm546, %v1989, %v1990
        %v2016 = vsel %vm546, %v1988, %v1989
        %v2017 = vsel %vm546, %v1987, %v1988
        %v2018 = vsel %vm546, %v2002, %v1987
        %v2019 = vsel %vm579, %v2018, 0.0
        %v2020 = vsel %vm580, %v2017, 0.0
        %v2021 = vsel %vm581, %v2016, 0.0
        %v2022 = vsel %vm582, %v2015, 0.0
        %v2023 = vsel %vm583, %v2014, 0.0
        %v2024 = vsel %vm584, %v2013, 0.0
        %v2025 = vsel %vm585, %v2012, 0.0
        %v2026 = vsel %vm586, %v2011, 0.0
        %v2027 = vsel %vm587, %v2010, 0.0
        %v2028 = vsel %vm588, %v2009, 0.0
        %v2029 = vsel %vm589, %v2008, 0.0
        %v2030 = vsel %vm590, %v2007, 0.0
        %v2031 = vsel %vm591, %v2006, 0.0
        %v2032 = vsel %vm592, %v2005, 0.0
        %v2033 = vsel %vm593, %v2004, 0.0
        %v2034 = vsel %vm594, %v2003, 0.0
        %v2035 = vpack.c.bf16 %v2020, %v2019
        %v2036 = vpack.c.bf16 %v2022, %v2021
        %v2037 = vpack.c.bf16 %v2024, %v2023
        %v2038 = vpack.c.bf16 %v2026, %v2025
        %v2039 = vpack.c.bf16 %v2028, %v2027
        %v2040 = vpack.c.bf16 %v2030, %v2029
        %v2041 = vpack.c.bf16 %v2032, %v2031
        %v2042 = vpack.c.bf16 %v2034, %v2033
        %v2043 = vpack.c.bf16 %v1903, %v1902
        %v2044 = vpack.c.bf16 %v1905, %v1904
        %v2045 = vpack.c.bf16 %v1907, %v1906
        %v2046 = vpack.c.bf16 %v1909, %v1908
        %v2047 = vpack.c.bf16 %v1911, %v1910
        %v2048 = vpack.c.bf16 %v1913, %v1912
        %v2049 = vpack.c.bf16 %v1915, %v1914
        %v2050 = vpack.c.bf16 %v1917, %v1916
        %2059 = vrot.lane.b32.xlu0 %v2035, 32
        %v2060 = vpop.permute.xlu0 %2059
        %2061 = vrot.lane.b32.xlu0 %v2036, 32
        %v2062 = vpop.permute.xlu0 %2061
        %2063 = vrot.lane.b32.xlu0 %v2037, 32
        %v2064 = vpop.permute.xlu0 %2063
        %2065 = vrot.lane.b32.xlu0 %v2038, 32
        %v2066 = vpop.permute.xlu0 %2065
        %2067 = vrot.lane.b32.xlu0 %v2039, 32
        %v2068 = vpop.permute.xlu0 %2067
        %2069 = vrot.lane.b32.xlu0 %v2040, 32
        %v2070 = vpop.permute.xlu0 %2069
        %2071 = vrot.lane.b32.xlu0 %v2041, 32
        %v2072 = vpop.permute.xlu0 %2071
        %2073 = vrot.lane.b32.xlu0 %v2042, 32
        %v2074 = vpop.permute.xlu0 %2073
        %2083 = vrot.lane.b32.xlu0 %v2043, 64
        %v2084 = vpop.permute.xlu0 %2083
        %2085 = vrot.lane.b32.xlu0 %v2044, 64
        %v2086 = vpop.permute.xlu0 %2085
        %2087 = vrot.lane.b32.xlu0 %v2045, 64
        %v2088 = vpop.permute.xlu0 %2087
        %2089 = vrot.lane.b32.xlu0 %v2046, 64
        %v2090 = vpop.permute.xlu0 %2089
        %2091 = vrot.lane.b32.xlu0 %v2047, 64
        %v2092 = vpop.permute.xlu0 %2091
        %2093 = vrot.lane.b32.xlu0 %v2048, 64
        %v2094 = vpop.permute.xlu0 %2093
        %2095 = vrot.lane.b32.xlu0 %v2049, 64
        %v2096 = vpop.permute.xlu0 %2095
        %2097 = vrot.lane.b32.xlu0 %v2050, 64
        %v2098 = vpop.permute.xlu0 %2097
        %v2101 = vsel %vm764, %v1979, %v2060
        %v2104 = vsel %vm764, %v1980, %v2062
        %v2107 = vsel %vm764, %v1981, %v2064
        %v2110 = vsel %vm764, %v1982, %v2066
        %v2113 = vsel %vm764, %v1983, %v2068
        %v2116 = vsel %vm764, %v1984, %v2070
        %v2119 = vsel %vm764, %v1985, %v2072
        %v2122 = vsel %vm764, %v1986, %v2074
        %v2124 = vsel %vm789, %v2101, %v2084
        %v2126 = vsel %vm789, %v2104, %v2086
        %v2128 = vsel %vm789, %v2107, %v2088
        %v2130 = vsel %vm789, %v2110, %v2090
        %v2132 = vsel %vm789, %v2113, %v2092
        %v2134 = vsel %vm789, %v2116, %v2094
        %v2136 = vsel %vm789, %v2119, %v2096
        %v2138 = vsel %vm789, %v2122, %v2098
        %v2139 = vld [vmem:[%s2 + $0x2] sm:$0x1]
        %v2140 = vlaneseq
        %v2141 = vshrl.u32 %v2140, 7
        %v2142 = vsub.s32 0, %v2141
        %v2143 = vrot.slane %v2139, %v2142
        %v2156 = vunpack.c.l.b16 %v1919
        %v2157 = vunpack.c.l.b16 %v1920
        %v2158 = vunpack.c.l.b16 %v1921
        %v2159 = vunpack.c.l.b16 %v1922
        %v2160 = vunpack.c.l.b16 %v1923
        %v2161 = vunpack.c.l.b16 %v1924
        %v2162 = vunpack.c.l.b16 %v1925
        %v2163 = vunpack.c.l.b16 %v1926
        %v2164 = vunpack.c.l.b16 %v1927
        %v2165 = vunpack.c.l.b16 %v1928
        %v2166 = vunpack.c.l.b16 %v1929
        %v2167 = vunpack.c.l.b16 %v1930
        %v2168 = vpack.c.b16 %v2157, %v2156
        %v2169 = vpack.c.b16 %v2159, %v2158
        %v2170 = vpack.c.b16 %v2161, %v2160
        %v2171 = vpack.c.b16 %v2163, %v2162
        %v2172 = vpack.c.b16 %v2165, %v2164
        %v2173 = vpack.c.b16 %v2167, %v2166
        %v2180 = vsel %vm847, %v2124, 0
        %v2182 = vsel %vm847, %v2126, 0
        %v2184 = vsel %vm847, %v2128, 0
        %v2186 = vsel %vm847, %v2130, 0
        %v2188 = vsel %vm847, %v2132, 0
        %v2190 = vsel %vm847, %v2134, 0
        %v2192 = vsel %vm847, %v2136, 0
        %v2194 = vsel %vm847, %v2138, 0
        %2196 = vmatprep.subr.bf16.mxu0 0
        %2197 = vmatpush1.bf16.msra.mxu0 %v2168
        %2198 = vmatprep.subr.bf16.mxu0 0
        %2199 = vmatpush1.bf16.msra.mxu0 %v2169
        %2200 = vmatprep.subr.bf16.mxu0 0
        %2201 = vmatpush1.bf16.msra.mxu0 %v2170
        %2202 = vmatprep.subr.bf16.mxu0 0
        %2203 = vmatpush1.bf16.msra.mxu0 %v2171
        %2204 = vmatprep.subr.bf16.mxu0 0
        %2205 = vmatpush1.bf16.msra.mxu0 %v2172
        %2206 = vmatprep.subr.bf16.mxu0 0
        %2207 = vmatpush1.bf16.msra.mxu0 %v2173
        %2208 = vmatprep.subr.bf16.mxu0 0
        %2209 = vmatpush1.bf16.msra.mxu0 0
        %2210 = vmatprep.subr.bf16.mxu0 0
        %2211 = vmatpush1.bf16.msra.mxu0 0
        %2212 = vmatprep.subr.bf16.mxu0 0
        %2213 = vmatpush1.bf16.msra.mxu0 0
        %2214 = vmatprep.subr.bf16.mxu0 0
        %2215 = vmatpush1.bf16.msra.mxu0 0
        %2216 = vmatprep.subr.bf16.mxu0 0
        %2217 = vmatpush1.bf16.msra.mxu0 0
        %2218 = vmatprep.subr.bf16.mxu0 0
        %2219 = vmatpush1.bf16.msra.mxu0 0
        %2220 = vmatprep.subr.bf16.mxu0 0
        %2221 = vmatpush1.bf16.msra.mxu0 0
        %2222 = vmatprep.subr.bf16.mxu0 0
        %2223 = vmatpush1.bf16.msra.mxu0 0
        %2224 = vmatprep.subr.bf16.mxu0 0
        %2225 = vmatpush1.bf16.msra.mxu0 0
        %2226 = vmatprep.subr.bf16.mxu0 0
        %2227 = vmatpush1.bf16.msra.mxu0 0
        %2228 = vmatprep.mubr.bf16.mxu0 0
        %2229 = vmatmul.mubr.bf16.gmra.mrb[0].mxu0 %v2180
        %v2230 = vpop.f32.mrb[0].mxu0
        %v2231 = vadd.f32 %v2143, %v2230
        %v2232 = vpop.f32.mrb[0].mxu0
        %v2233 = vpop.f32.mrb[0].mxu0
        %v2234 = vadd.f32 %v2143, %v2233
        %v2235 = vpop.f32.mrb[0].mxu0
        %2236 = vmatprep.mubr.bf16.mxu0 0
        %2237 = vmatmul.mubr.bf16.gmra.mrb[0].mxu0 %v2182
        %v2238 = vpop.f32.mrb[0].mxu0
        %v2239 = vadd.f32 %v2143, %v2238
        %v2240 = vpop.f32.mrb[0].mxu0
        %v2241 = vpop.f32.mrb[0].mxu0
        %v2242 = vadd.f32 %v2143, %v2241
        %v2243 = vpop.f32.mrb[0].mxu0
        %2244 = vmatprep.mubr.bf16.mxu0 0
        %2245 = vmatmul.mubr.bf16.gmra.mrb[0].mxu0 %v2184
        %v2246 = vpop.f32.mrb[0].mxu0
        %v2247 = vadd.f32 %v2143, %v2246
        %v2248 = vpop.f32.mrb[0].mxu0
        %v2249 = vpop.f32.mrb[0].mxu0
        %v2250 = vadd.f32 %v2143, %v2249
        %v2251 = vpop.f32.mrb[0].mxu0
        %2252 = vmatprep.mubr.bf16.mxu0 0
        %2253 = vmatmul.mubr.bf16.gmra.mrb[0].mxu0 %v2186
        %v2254 = vpop.f32.mrb[0].mxu0
        %v2255 = vadd.f32 %v2143, %v2254
        %v2256 = vpop.f32.mrb[0].mxu0
        %v2257 = vpop.f32.mrb[0].mxu0
        %v2258 = vadd.f32 %v2143, %v2257
        %v2259 = vpop.f32.mrb[0].mxu0
        %2260 = vmatprep.mubr.bf16.mxu0 0
        %2261 = vmatmul.mubr.bf16.gmra.mrb[0].mxu0 %v2188
        %v2262 = vpop.f32.mrb[0].mxu0
        %v2263 = vadd.f32 %v2143, %v2262
        %v2264 = vpop.f32.mrb[0].mxu0
        %v2265 = vpop.f32.mrb[0].mxu0
        %v2266 = vadd.f32 %v2143, %v2265
        %v2267 = vpop.f32.mrb[0].mxu0
        %2268 = vmatprep.mubr.bf16.mxu0 0
        %2269 = vmatmul.mubr.bf16.gmra.mrb[0].mxu0 %v2190
        %v2270 = vpop.f32.mrb[0].mxu0
        %v2271 = vadd.f32 %v2143, %v2270
        %v2272 = vpop.f32.mrb[0].mxu0
        %v2273 = vpop.f32.mrb[0].mxu0
        %v2274 = vadd.f32 %v2143, %v2273
        %v2275 = vpop.f32.mrb[0].mxu0
        %2276 = vmatprep.mubr.bf16.mxu0 0
        %2277 = vmatmul.mubr.bf16.gmra.mrb[0].mxu0 %v2192
        %v2278 = vpop.f32.mrb[0].mxu0
        %v2279 = vadd.f32 %v2143, %v2278
        %v2280 = vpop.f32.mrb[0].mxu0
        %v2281 = vpop.f32.mrb[0].mxu0
        %v2282 = vadd.f32 %v2143, %v2281
        %v2283 = vpop.f32.mrb[0].mxu0
        %2284 = vmatprep.mubr.bf16.mxu0 0
        %2285 = vmatmul.mubr.bf16.gmra.mrb[0].mxu0 %v2194
        %v2286 = vpop.f32.mrb[0].mxu0
        %v2287 = vadd.f32 %v2143, %v2286
        %v2288 = vpop.f32.mrb[0].mxu0
        %v2289 = vpop.f32.mrb[0].mxu0
        %v2290 = vadd.f32 %v2143, %v2289
        %v2291 = vpop.f32.mrb[0].mxu0
        %2292 = vdwg.mxu0
        %v2293 = vsel %vm764, %v2231, 0.0
        %2294 = vadd.xlane.f32.xlu0 %v2293
        %v2295 = vpop.xlane.xlu0 %2294
        %v2296 = vsel %vm764, %v2234, 0.0
        %2297 = vadd.xlane.f32.xlu0 %v2296
        %v2298 = vpop.xlane.xlu0 %2297
        %v2299 = vsel %vm764, %v2239, 0.0
        %2300 = vadd.xlane.f32.xlu0 %v2299
        %v2301 = vpop.xlane.xlu0 %2300
        %v2302 = vsel %vm764, %v2242, 0.0
        %2303 = vadd.xlane.f32.xlu0 %v2302
        %v2304 = vpop.xlane.xlu0 %2303
        %v2305 = vsel %vm764, %v2247, 0.0
        %2306 = vadd.xlane.f32.xlu0 %v2305
        %v2307 = vpop.xlane.xlu0 %2306
        %v2308 = vsel %vm764, %v2250, 0.0
        %2309 = vadd.xlane.f32.xlu0 %v2308
        %v2310 = vpop.xlane.xlu0 %2309
        %v2311 = vsel %vm764, %v2255, 0.0
        %2312 = vadd.xlane.f32.xlu0 %v2311
        %v2313 = vpop.xlane.xlu0 %2312
        %v2314 = vsel %vm764, %v2258, 0.0
        %2315 = vadd.xlane.f32.xlu0 %v2314
        %v2316 = vpop.xlane.xlu0 %2315
        %v2317 = vsel %vm764, %v2263, 0.0
        %2318 = vadd.xlane.f32.xlu0 %v2317
        %v2319 = vpop.xlane.xlu0 %2318
        %v2320 = vsel %vm764, %v2266, 0.0
        %2321 = vadd.xlane.f32.xlu0 %v2320
        %v2322 = vpop.xlane.xlu0 %2321
        %v2323 = vsel %vm764, %v2271, 0.0
        %2324 = vadd.xlane.f32.xlu0 %v2323
        %v2325 = vpop.xlane.xlu0 %2324
        %v2326 = vsel %vm764, %v2274, 0.0
        %2327 = vadd.xlane.f32.xlu0 %v2326
        %v2328 = vpop.xlane.xlu0 %2327
        %v2329 = vsel %vm764, %v2279, 0.0
        %2330 = vadd.xlane.f32.xlu0 %v2329
        %v2331 = vpop.xlane.xlu0 %2330
        %v2332 = vsel %vm764, %v2282, 0.0
        %2333 = vadd.xlane.f32.xlu0 %v2332
        %v2334 = vpop.xlane.xlu0 %2333
        %v2335 = vsel %vm764, %v2287, 0.0
        %2336 = vadd.xlane.f32.xlu0 %v2335
        %v2337 = vpop.xlane.xlu0 %2336
        %v2338 = vsel %vm764, %v2290, 0.0
        %2339 = vadd.xlane.f32.xlu0 %v2338
        %v2340 = vpop.xlane.xlu0 %2339
        %v2341 = vmul.f32 %v2295, %v1009
        %v2342 = vmul.f32 %v2298, %v1009
        %v2343 = vmul.f32 %v2301, %v1009
        %v2344 = vmul.f32 %v2304, %v1009
        %v2345 = vmul.f32 %v2307, %v1009
        %v2346 = vmul.f32 %v2310, %v1009
        %v2347 = vmul.f32 %v2313, %v1009
        %v2348 = vmul.f32 %v2316, %v1009
        %v2349 = vmul.f32 %v2319, %v1009
        %v2350 = vmul.f32 %v2322, %v1009
        %v2351 = vmul.f32 %v2325, %v1009
        %v2352 = vmul.f32 %v2328, %v1009
        %v2353 = vmul.f32 %v2331, %v1009
        %v2354 = vmul.f32 %v2334, %v1009
        %v2355 = vmul.f32 %v2337, %v1009
        %v2356 = vmul.f32 %v2340, %v1009
        %v2357 = vsub.f32 %v2231, %v2341
        %v2358 = vsub.f32 %v2234, %v2342
        %v2359 = vsub.f32 %v2239, %v2343
        %v2360 = vsub.f32 %v2242, %v2344
        %v2361 = vsub.f32 %v2247, %v2345
        %v2362 = vsub.f32 %v2250, %v2346
        %v2363 = vsub.f32 %v2255, %v2347
        %v2364 = vsub.f32 %v2258, %v2348
        %v2365 = vsub.f32 %v2263, %v2349
        %v2366 = vsub.f32 %v2266, %v2350
        %v2367 = vsub.f32 %v2271, %v2351
        %v2368 = vsub.f32 %v2274, %v2352
        %v2369 = vsub.f32 %v2279, %v2353
        %v2370 = vsub.f32 %v2282, %v2354
        %v2371 = vsub.f32 %v2287, %v2355
        %v2372 = vsub.f32 %v2290, %v2356
        %v2373 = vmul.f32 %v2357, %v2357
        %v2374 = vmul.f32 %v2358, %v2358
        %v2375 = vmul.f32 %v2359, %v2359
        %v2376 = vmul.f32 %v2360, %v2360
        %v2377 = vmul.f32 %v2361, %v2361
        %v2378 = vmul.f32 %v2362, %v2362
        %v2379 = vmul.f32 %v2363, %v2363
        %v2380 = vmul.f32 %v2364, %v2364
        %v2381 = vmul.f32 %v2365, %v2365
        %v2382 = vmul.f32 %v2366, %v2366
        %v2383 = vmul.f32 %v2367, %v2367
        %v2384 = vmul.f32 %v2368, %v2368
        %v2385 = vmul.f32 %v2369, %v2369
        %v2386 = vmul.f32 %v2370, %v2370
        %v2387 = vmul.f32 %v2371, %v2371
        %v2388 = vmul.f32 %v2372, %v2372
        %v2389 = vsel %vm764, %v2373, 0.0
        %2390 = vadd.xlane.f32.xlu0 %v2389
        %v2391 = vpop.xlane.xlu0 %2390
        %v2392 = vsel %vm764, %v2374, 0.0
        %2393 = vadd.xlane.f32.xlu0 %v2392
        %v2394 = vpop.xlane.xlu0 %2393
        %v2395 = vsel %vm764, %v2375, 0.0
        %2396 = vadd.xlane.f32.xlu0 %v2395
        %v2397 = vpop.xlane.xlu0 %2396
        %v2398 = vsel %vm764, %v2376, 0.0
        %2399 = vadd.xlane.f32.xlu0 %v2398
        %v2400 = vpop.xlane.xlu0 %2399
        %v2401 = vsel %vm764, %v2377, 0.0
        %2402 = vadd.xlane.f32.xlu0 %v2401
        %v2403 = vpop.xlane.xlu0 %2402
        %v2404 = vsel %vm764, %v2378, 0.0
        %2405 = vadd.xlane.f32.xlu0 %v2404
        %v2406 = vpop.xlane.xlu0 %2405
        %v2407 = vsel %vm764, %v2379, 0.0
        %2408 = vadd.xlane.f32.xlu0 %v2407
        %v2409 = vpop.xlane.xlu0 %2408
        %v2410 = vsel %vm764, %v2380, 0.0
        %2411 = vadd.xlane.f32.xlu0 %v2410
        %v2412 = vpop.xlane.xlu0 %2411
        %v2413 = vsel %vm764, %v2381, 0.0
        %2414 = vadd.xlane.f32.xlu0 %v2413
        %v2415 = vpop.xlane.xlu0 %2414
        %v2416 = vsel %vm764, %v2382, 0.0
        %2417 = vadd.xlane.f32.xlu0 %v2416
        %v2418 = vpop.xlane.xlu0 %2417
        %v2419 = vsel %vm764, %v2383, 0.0
        %2420 = vadd.xlane.f32.xlu0 %v2419
        %v2421 = vpop.xlane.xlu0 %2420
        %v2422 = vsel %vm764, %v2384, 0.0
        %2423 = vadd.xlane.f32.xlu0 %v2422
        %v2424 = vpop.xlane.xlu0 %2423
        %v2425 = vsel %vm764, %v2385, 0.0
        %2426 = vadd.xlane.f32.xlu0 %v2425
        %v2427 = vpop.xlane.xlu0 %2426
        %v2428 = vsel %vm764, %v2386, 0.0
        %2429 = vadd.xlane.f32.xlu0 %v2428
        %v2430 = vpop.xlane.xlu0 %2429
        %v2431 = vsel %vm764, %v2387, 0.0
        %2432 = vadd.xlane.f32.xlu0 %v2431
        %v2433 = vpop.xlane.xlu0 %2432
        %v2434 = vsel %vm764, %v2388, 0.0
        %2435 = vadd.xlane.f32.xlu0 %v2434
        %v2436 = vpop.xlane.xlu0 %2435
        %v2437 = vmul.f32 %v2391, %v1009
        %v2438 = vmul.f32 %v2394, %v1009
        %v2439 = vmul.f32 %v2397, %v1009
        %v2440 = vmul.f32 %v2400, %v1009
        %v2441 = vmul.f32 %v2403, %v1009
        %v2442 = vmul.f32 %v2406, %v1009
        %v2443 = vmul.f32 %v2409, %v1009
        %v2444 = vmul.f32 %v2412, %v1009
        %v2445 = vmul.f32 %v2415, %v1009
        %v2446 = vmul.f32 %v2418, %v1009
        %v2447 = vmul.f32 %v2421, %v1009
        %v2448 = vmul.f32 %v2424, %v1009
        %v2449 = vmul.f32 %v2427, %v1009
        %v2450 = vmul.f32 %v2430, %v1009
        %v2451 = vmul.f32 %v2433, %v1009
        %v2452 = vmul.f32 %v2436, %v1009
        %v2453 = vadd.f32 %v2437, 1e-08
        %v2454 = vadd.f32 %v2438, 1e-08
        %v2455 = vadd.f32 %v2439, 1e-08
        %v2456 = vadd.f32 %v2440, 1e-08
        %v2457 = vadd.f32 %v2441, 1e-08
        %v2458 = vadd.f32 %v2442, 1e-08
        %v2459 = vadd.f32 %v2443, 1e-08
        %v2460 = vadd.f32 %v2444, 1e-08
        %v2461 = vadd.f32 %v2445, 1e-08
        %v2462 = vadd.f32 %v2446, 1e-08
        %v2463 = vadd.f32 %v2447, 1e-08
        %v2464 = vadd.f32 %v2448, 1e-08
        %v2465 = vadd.f32 %v2449, 1e-08
        %v2466 = vadd.f32 %v2450, 1e-08
        %v2467 = vadd.f32 %v2451, 1e-08
        %v2468 = vadd.f32 %v2452, 1e-08
        %v2469 = vrsqrt.pop %v2453
        %v2470 = vrsqrt.pop %v2454
        %v2471 = vrsqrt.pop %v2455
        %v2472 = vrsqrt.pop %v2456
        %v2473 = vrsqrt.pop %v2457
        %v2474 = vrsqrt.pop %v2458
        %v2475 = vrsqrt.pop %v2459
        %v2476 = vrsqrt.pop %v2460
        %v2477 = vrsqrt.pop %v2461
        %v2478 = vrsqrt.pop %v2462
        %v2479 = vrsqrt.pop %v2463
        %v2480 = vrsqrt.pop %v2464
        %v2481 = vrsqrt.pop %v2465
        %v2482 = vrsqrt.pop %v2466
        %v2483 = vrsqrt.pop %v2467
        %v2484 = vrsqrt.pop %v2468
        %v2485 = vmul.f32 %v2357, %v2469
        %v2486 = vmul.f32 %v2358, %v2470
        %v2487 = vmul.f32 %v2359, %v2471
        %v2488 = vmul.f32 %v2360, %v2472
        %v2489 = vmul.f32 %v2361, %v2473
        %v2490 = vmul.f32 %v2362, %v2474
        %v2491 = vmul.f32 %v2363, %v2475
        %v2492 = vmul.f32 %v2364, %v2476
        %v2493 = vmul.f32 %v2365, %v2477
        %v2494 = vmul.f32 %v2366, %v2478
        %v2495 = vmul.f32 %v2367, %v2479
        %v2496 = vmul.f32 %v2368, %v2480
        %v2497 = vmul.f32 %v2369, %v2481
        %v2498 = vmul.f32 %v2370, %v2482
        %v2499 = vmul.f32 %v2371, %v2483
        %v2500 = vmul.f32 %v2372, %v2484
        %v2501 = vld [vmem:[%s3 + $0x2] sm:$0x1]
        %v2502 = vlaneseq
        %v2503 = vshrl.u32 %v2502, 7
        %v2504 = vsub.s32 0, %v2503
        %v2505 = vrot.slane %v2501, %v2504
        %v2506 = vmul.f32 %v2485, %v2505
        %v2507 = vmul.f32 %v2486, %v2505
        %v2508 = vmul.f32 %v2487, %v2505
        %v2509 = vmul.f32 %v2488, %v2505
        %v2510 = vmul.f32 %v2489, %v2505
        %v2511 = vmul.f32 %v2490, %v2505
        %v2512 = vmul.f32 %v2491, %v2505
        %v2513 = vmul.f32 %v2492, %v2505
        %v2514 = vmul.f32 %v2493, %v2505
        %v2515 = vmul.f32 %v2494, %v2505
        %v2516 = vmul.f32 %v2495, %v2505
        %v2517 = vmul.f32 %v2496, %v2505
        %v2518 = vmul.f32 %v2497, %v2505
        %v2519 = vmul.f32 %v2498, %v2505
        %v2520 = vmul.f32 %v2499, %v2505
        %v2521 = vmul.f32 %v2500, %v2505
        %v2522 = vld [vmem:[%s4 + $0x2] sm:$0x1]
        %v2523 = vlaneseq
        %v2524 = vshrl.u32 %v2523, 7
        %v2525 = vsub.s32 0, %v2524
        %v2526 = vrot.slane %v2522, %v2525
        %v2527 = vadd.f32 %v2506, %v2526
        %v2528 = vadd.f32 %v2507, %v2526
        %v2529 = vadd.f32 %v2508, %v2526
        %v2530 = vadd.f32 %v2509, %v2526
        %v2531 = vadd.f32 %v2510, %v2526
        %v2532 = vadd.f32 %v2511, %v2526
        %v2533 = vadd.f32 %v2512, %v2526
        %v2534 = vadd.f32 %v2513, %v2526
        %v2535 = vadd.f32 %v2514, %v2526
        %v2536 = vadd.f32 %v2515, %v2526
        %v2537 = vadd.f32 %v2516, %v2526
        %v2538 = vadd.f32 %v2517, %v2526
        %v2539 = vadd.f32 %v2518, %v2526
        %v2540 = vadd.f32 %v2519, %v2526
        %v2541 = vadd.f32 %v2520, %v2526
        %v2542 = vadd.f32 %v2521, %v2526
        %v2543 = vmax.f32 %v2527, 0.0
        %v2544 = vmax.f32 %v2528, 0.0
        %v2545 = vmax.f32 %v2529, 0.0
        %v2546 = vmax.f32 %v2530, 0.0
        %v2547 = vmax.f32 %v2531, 0.0
        %v2548 = vmax.f32 %v2532, 0.0
        %v2549 = vmax.f32 %v2533, 0.0
        %v2550 = vmax.f32 %v2534, 0.0
        %v2551 = vmax.f32 %v2535, 0.0
        %v2552 = vmax.f32 %v2536, 0.0
        %v2553 = vmax.f32 %v2537, 0.0
        %v2554 = vmax.f32 %v2538, 0.0
        %v2555 = vmax.f32 %v2539, 0.0
        %v2556 = vmax.f32 %v2540, 0.0
        %v2557 = vmax.f32 %v2541, 0.0
        %v2558 = vmax.f32 %v2542, 0.0
        %s2559 = scalar_lea.vmem %s1, 144
        %v2560 = vld [vmem:[%s2559] sm:$0xf]
        %v2561 = vld [vmem:[%s2559 + $0x4] sm:$0xf]
        %v2562 = vld [vmem:[%s2559 + $0x8] sm:$0xf]
        %v2563 = vld [vmem:[%s2559 + $0xc] sm:$0xf]
        %v2564 = vld [vmem:[%s2559 + $0x10] sm:$0xf]
        %v2565 = vld [vmem:[%s2559 + $0x14] sm:$0xf]
        %v2566 = vld [vmem:[%s2559 + $0x18] sm:$0xf]
        %v2567 = vld [vmem:[%s2559 + $0x1c] sm:$0xf]
        %v2568 = vld [vmem:[%s2559 + $0x20] sm:$0xf]
        %v2569 = vld [vmem:[%s2559 + $0x24] sm:$0xf]
        %v2570 = vld [vmem:[%s2559 + $0x28] sm:$0xf]
        %v2571 = vld [vmem:[%s2559 + $0x2c] sm:$0xf]
        %v2572 = vsel %vm502, 1, 0
        %v2573 = vsel %vm503, 1, 0
        %v2574 = vsel %vm504, 1, 0
        %v2575 = vsel %vm505, 1, 0
        %v2576 = vsel %vm506, 1, 0
        %v2577 = vsel %vm507, 1, 0
        %v2578 = vsel %vm508, 1, 0
        %v2579 = vsel %vm509, 1, 0
        %v2580 = vsel %vm510, 1, 0
        %v2581 = vsel %vm511, 1, 0
        %v2582 = vsel %vm512, 1, 0
        %v2583 = vsel %vm513, 1, 0
        %v2584 = vsel %vm514, 1, 0
        %v2585 = vsel %vm515, 1, 0
        %v2586 = vsel %vm516, 1, 0
        %v2587 = vsel %vm517, 1, 0
        %vm2588 = vcmp.eq.s32.totalorder %v2572, 1
        %vm2589 = vcmp.eq.s32.totalorder %v2573, 1
        %vm2590 = vcmp.eq.s32.totalorder %v2574, 1
        %vm2591 = vcmp.eq.s32.totalorder %v2575, 1
        %vm2592 = vcmp.eq.s32.totalorder %v2576, 1
        %vm2593 = vcmp.eq.s32.totalorder %v2577, 1
        %vm2594 = vcmp.eq.s32.totalorder %v2578, 1
        %vm2595 = vcmp.eq.s32.totalorder %v2579, 1
        %vm2596 = vcmp.eq.s32.totalorder %v2580, 1
        %vm2597 = vcmp.eq.s32.totalorder %v2581, 1
        %vm2598 = vcmp.eq.s32.totalorder %v2582, 1
        %vm2599 = vcmp.eq.s32.totalorder %v2583, 1
        %vm2600 = vcmp.eq.s32.totalorder %v2584, 1
        %vm2601 = vcmp.eq.s32.totalorder %v2585, 1
        %vm2602 = vcmp.eq.s32.totalorder %v2586, 1
        %vm2603 = vcmp.eq.s32.totalorder %v2587, 1
        %v2604 = vsel %vm2588, %v2558, 0.0
        %v2605 = vsel %vm2589, %v2543, 0.0
        %v2606 = vsel %vm2590, %v2544, 0.0
        %v2607 = vsel %vm2591, %v2545, 0.0
        %v2608 = vsel %vm2592, %v2546, 0.0
        %v2609 = vsel %vm2593, %v2547, 0.0
        %v2610 = vsel %vm2594, %v2548, 0.0
        %v2611 = vsel %vm2595, %v2549, 0.0
        %v2612 = vsel %vm2596, %v2550, 0.0
        %v2613 = vsel %vm2597, %v2551, 0.0
        %v2614 = vsel %vm2598, %v2552, 0.0
        %v2615 = vsel %vm2599, %v2553, 0.0
        %v2616 = vsel %vm2600, %v2554, 0.0
        %v2617 = vsel %vm2601, %v2555, 0.0
        %v2618 = vsel %vm2602, %v2556, 0.0
        %v2619 = vsel %vm2603, %v2557, 0.0
        %v2620 = vpack.c.bf16 %v2605, %v2604
        %v2621 = vpack.c.bf16 %v2607, %v2606
        %v2622 = vpack.c.bf16 %v2609, %v2608
        %v2623 = vpack.c.bf16 %v2611, %v2610
        %v2624 = vpack.c.bf16 %v2613, %v2612
        %v2625 = vpack.c.bf16 %v2615, %v2614
        %v2626 = vpack.c.bf16 %v2617, %v2616
        %v2627 = vpack.c.bf16 %v2619, %v2618
        %v2628 = vrot.slane %v2543, 4
        %v2629 = vrot.slane %v2544, 4
        %v2630 = vrot.slane %v2545, 4
        %v2631 = vrot.slane %v2546, 4
        %v2632 = vrot.slane %v2547, 4
        %v2633 = vrot.slane %v2548, 4
        %v2634 = vrot.slane %v2549, 4
        %v2635 = vrot.slane %v2550, 4
        %v2636 = vrot.slane %v2551, 4
        %v2637 = vrot.slane %v2552, 4
        %v2638 = vrot.slane %v2553, 4
        %v2639 = vrot.slane %v2554, 4
        %v2640 = vrot.slane %v2555, 4
        %v2641 = vrot.slane %v2556, 4
        %v2642 = vrot.slane %v2557, 4
        %v2643 = vrot.slane %v2558, 4
        %v2644 = vsel %vm1257, %v2642, %v2643
        %v2645 = vsel %vm1257, %v2641, %v2642
        %v2646 = vsel %vm1257, %v2640, %v2641
        %v2647 = vsel %vm1257, %v2639, %v2640
        %v2648 = vsel %vm1257, %v2638, %v2639
        %v2649 = vsel %vm1257, %v2637, %v2638
        %v2650 = vsel %vm1257, %v2636, %v2637
        %v2651 = vsel %vm1257, %v2635, %v2636
        %v2652 = vsel %vm1257, %v2634, %v2635
        %v2653 = vsel %vm1257, %v2633, %v2634
        %v2654 = vsel %vm1257, %v2632, %v2633
        %v2655 = vsel %vm1257, %v2631, %v2632
        %v2656 = vsel %vm1257, %v2630, %v2631
        %v2657 = vsel %vm1257, %v2629, %v2630
        %v2658 = vsel %vm1257, %v2628, %v2629
        %v2659 = vsel %vm1257, %v2643, %v2628
        %v2660 = vsel %vm1290, %v2659, 0.0
        %v2661 = vsel %vm1291, %v2658, 0.0
        %v2662 = vsel %vm1292, %v2657, 0.0
        %v2663 = vsel %vm1293, %v2656, 0.0
        %v2664 = vsel %vm1294, %v2655, 0.0
        %v2665 = vsel %vm1295, %v2654, 0.0
        %v2666 = vsel %vm1296, %v2653, 0.0
        %v2667 = vsel %vm1297, %v2652, 0.0
        %v2668 = vsel %vm1298, %v2651, 0.0
        %v2669 = vsel %vm1299, %v2650, 0.0
        %v2670 = vsel %vm1300, %v2649, 0.0
        %v2671 = vsel %vm1301, %v2648, 0.0
        %v2672 = vsel %vm1302, %v2647, 0.0
        %v2673 = vsel %vm1303, %v2646, 0.0
        %v2674 = vsel %vm1304, %v2645, 0.0
        %v2675 = vsel %vm1305, %v2644, 0.0
        %v2676 = vpack.c.bf16 %v2661, %v2660
        %v2677 = vpack.c.bf16 %v2663, %v2662
        %v2678 = vpack.c.bf16 %v2665, %v2664
        %v2679 = vpack.c.bf16 %v2667, %v2666
        %v2680 = vpack.c.bf16 %v2669, %v2668
        %v2681 = vpack.c.bf16 %v2671, %v2670
        %v2682 = vpack.c.bf16 %v2673, %v2672
        %v2683 = vpack.c.bf16 %v2675, %v2674
        %v2684 = vpack.c.bf16 %v2544, %v2543
        %v2685 = vpack.c.bf16 %v2546, %v2545
        %v2686 = vpack.c.bf16 %v2548, %v2547
        %v2687 = vpack.c.bf16 %v2550, %v2549
        %v2688 = vpack.c.bf16 %v2552, %v2551
        %v2689 = vpack.c.bf16 %v2554, %v2553
        %v2690 = vpack.c.bf16 %v2556, %v2555
        %v2691 = vpack.c.bf16 %v2558, %v2557
        %2700 = vrot.lane.b32.xlu0 %v2676, 32
        %v2701 = vpop.permute.xlu0 %2700
        %2702 = vrot.lane.b32.xlu0 %v2677, 32
        %v2703 = vpop.permute.xlu0 %2702
        %2704 = vrot.lane.b32.xlu0 %v2678, 32
        %v2705 = vpop.permute.xlu0 %2704
        %2706 = vrot.lane.b32.xlu0 %v2679, 32
        %v2707 = vpop.permute.xlu0 %2706
        %2708 = vrot.lane.b32.xlu0 %v2680, 32
        %v2709 = vpop.permute.xlu0 %2708
        %2710 = vrot.lane.b32.xlu0 %v2681, 32
        %v2711 = vpop.permute.xlu0 %2710
        %2712 = vrot.lane.b32.xlu0 %v2682, 32
        %v2713 = vpop.permute.xlu0 %2712
        %2714 = vrot.lane.b32.xlu0 %v2683, 32
        %v2715 = vpop.permute.xlu0 %2714
        %2724 = vrot.lane.b32.xlu0 %v2684, 64
        %v2725 = vpop.permute.xlu0 %2724
        %2726 = vrot.lane.b32.xlu0 %v2685, 64
        %v2727 = vpop.permute.xlu0 %2726
        %2728 = vrot.lane.b32.xlu0 %v2686, 64
        %v2729 = vpop.permute.xlu0 %2728
        %2730 = vrot.lane.b32.xlu0 %v2687, 64
        %v2731 = vpop.permute.xlu0 %2730
        %2732 = vrot.lane.b32.xlu0 %v2688, 64
        %v2733 = vpop.permute.xlu0 %2732
        %2734 = vrot.lane.b32.xlu0 %v2689, 64
        %v2735 = vpop.permute.xlu0 %2734
        %2736 = vrot.lane.b32.xlu0 %v2690, 64
        %v2737 = vpop.permute.xlu0 %2736
        %2738 = vrot.lane.b32.xlu0 %v2691, 64
        %v2739 = vpop.permute.xlu0 %2738
        %v2742 = vsel %vm764, %v2620, %v2701
        %v2745 = vsel %vm764, %v2621, %v2703
        %v2748 = vsel %vm764, %v2622, %v2705
        %v2751 = vsel %vm764, %v2623, %v2707
        %v2754 = vsel %vm764, %v2624, %v2709
        %v2757 = vsel %vm764, %v2625, %v2711
        %v2760 = vsel %vm764, %v2626, %v2713
        %v2763 = vsel %vm764, %v2627, %v2715
        %v2765 = vsel %vm789, %v2742, %v2725
        %v2767 = vsel %vm789, %v2745, %v2727
        %v2769 = vsel %vm789, %v2748, %v2729
        %v2771 = vsel %vm789, %v2751, %v2731
        %v2773 = vsel %vm789, %v2754, %v2733
        %v2775 = vsel %vm789, %v2757, %v2735
        %v2777 = vsel %vm789, %v2760, %v2737
        %v2779 = vsel %vm789, %v2763, %v2739
        %v2780 = vld [vmem:[%s2 + $0x3] sm:$0x1]
        %v2781 = vlaneseq
        %v2782 = vshrl.u32 %v2781, 7
        %v2783 = vsub.s32 0, %v2782
        %v2784 = vrot.slane %v2780, %v2783
        %v2797 = vunpack.c.l.b16 %v2560
        %v2798 = vunpack.c.l.b16 %v2561
        %v2799 = vunpack.c.l.b16 %v2562
        %v2800 = vunpack.c.l.b16 %v2563
        %v2801 = vunpack.c.l.b16 %v2564
        %v2802 = vunpack.c.l.b16 %v2565
        %v2803 = vunpack.c.l.b16 %v2566
        %v2804 = vunpack.c.l.b16 %v2567
        %v2805 = vunpack.c.l.b16 %v2568
        %v2806 = vunpack.c.l.b16 %v2569
        %v2807 = vunpack.c.l.b16 %v2570
        %v2808 = vunpack.c.l.b16 %v2571
        %v2809 = vpack.c.b16 %v2798, %v2797
        %v2810 = vpack.c.b16 %v2800, %v2799
        %v2811 = vpack.c.b16 %v2802, %v2801
        %v2812 = vpack.c.b16 %v2804, %v2803
        %v2813 = vpack.c.b16 %v2806, %v2805
        %v2814 = vpack.c.b16 %v2808, %v2807
        %v2821 = vsel %vm847, %v2765, 0
        %v2823 = vsel %vm847, %v2767, 0
        %v2825 = vsel %vm847, %v2769, 0
        %v2827 = vsel %vm847, %v2771, 0
        %v2829 = vsel %vm847, %v2773, 0
        %v2831 = vsel %vm847, %v2775, 0
        %v2833 = vsel %vm847, %v2777, 0
        %v2835 = vsel %vm847, %v2779, 0
        %2837 = vmatprep.subr.bf16.mxu0 0
        %2838 = vmatpush1.bf16.msra.mxu0 %v2809
        %2839 = vmatprep.subr.bf16.mxu0 0
        %2840 = vmatpush1.bf16.msra.mxu0 %v2810
        %2841 = vmatprep.subr.bf16.mxu0 0
        %2842 = vmatpush1.bf16.msra.mxu0 %v2811
        %2843 = vmatprep.subr.bf16.mxu0 0
        %2844 = vmatpush1.bf16.msra.mxu0 %v2812
        %2845 = vmatprep.subr.bf16.mxu0 0
        %2846 = vmatpush1.bf16.msra.mxu0 %v2813
        %2847 = vmatprep.subr.bf16.mxu0 0
        %2848 = vmatpush1.bf16.msra.mxu0 %v2814
        %2849 = vmatprep.subr.bf16.mxu0 0
        %2850 = vmatpush1.bf16.msra.mxu0 0
        %2851 = vmatprep.subr.bf16.mxu0 0
        %2852 = vmatpush1.bf16.msra.mxu0 0
        %2853 = vmatprep.subr.bf16.mxu0 0
        %2854 = vmatpush1.bf16.msra.mxu0 0
        %2855 = vmatprep.subr.bf16.mxu0 0
        %2856 = vmatpush1.bf16.msra.mxu0 0
        %2857 = vmatprep.subr.bf16.mxu0 0
        %2858 = vmatpush1.bf16.msra.mxu0 0
        %2859 = vmatprep.subr.bf16.mxu0 0
        %2860 = vmatpush1.bf16.msra.mxu0 0
        %2861 = vmatprep.subr.bf16.mxu0 0
        %2862 = vmatpush1.bf16.msra.mxu0 0
        %2863 = vmatprep.subr.bf16.mxu0 0
        %2864 = vmatpush1.bf16.msra.mxu0 0
        %2865 = vmatprep.subr.bf16.mxu0 0
        %2866 = vmatpush1.bf16.msra.mxu0 0
        %2867 = vmatprep.subr.bf16.mxu0 0
        %2868 = vmatpush1.bf16.msra.mxu0 0
        %2869 = vmatprep.mubr.bf16.mxu0 0
        %2870 = vmatmul.mubr.bf16.gmra.mrb[0].mxu0 %v2821
        %v2871 = vpop.f32.mrb[0].mxu0
        %v2872 = vadd.f32 %v2784, %v2871
        %v2873 = vpop.f32.mrb[0].mxu0
        %v2874 = vpop.f32.mrb[0].mxu0
        %v2875 = vadd.f32 %v2784, %v2874
        %v2876 = vpop.f32.mrb[0].mxu0
        %2877 = vmatprep.mubr.bf16.mxu0 0
        %2878 = vmatmul.mubr.bf16.gmra.mrb[0].mxu0 %v2823
        %v2879 = vpop.f32.mrb[0].mxu0
        %v2880 = vadd.f32 %v2784, %v2879
        %v2881 = vpop.f32.mrb[0].mxu0
        %v2882 = vpop.f32.mrb[0].mxu0
        %v2883 = vadd.f32 %v2784, %v2882
        %v2884 = vpop.f32.mrb[0].mxu0
        %2885 = vmatprep.mubr.bf16.mxu0 0
        %2886 = vmatmul.mubr.bf16.gmra.mrb[0].mxu0 %v2825
        %v2887 = vpop.f32.mrb[0].mxu0
        %v2888 = vadd.f32 %v2784, %v2887
        %v2889 = vpop.f32.mrb[0].mxu0
        %v2890 = vpop.f32.mrb[0].mxu0
        %v2891 = vadd.f32 %v2784, %v2890
        %v2892 = vpop.f32.mrb[0].mxu0
        %2893 = vmatprep.mubr.bf16.mxu0 0
        %2894 = vmatmul.mubr.bf16.gmra.mrb[0].mxu0 %v2827
        %v2895 = vpop.f32.mrb[0].mxu0
        %v2896 = vadd.f32 %v2784, %v2895
        %v2897 = vpop.f32.mrb[0].mxu0
        %v2898 = vpop.f32.mrb[0].mxu0
        %v2899 = vadd.f32 %v2784, %v2898
        %v2900 = vpop.f32.mrb[0].mxu0
        %2901 = vmatprep.mubr.bf16.mxu0 0
        %2902 = vmatmul.mubr.bf16.gmra.mrb[0].mxu0 %v2829
        %v2903 = vpop.f32.mrb[0].mxu0
        %v2904 = vadd.f32 %v2784, %v2903
        %v2905 = vpop.f32.mrb[0].mxu0
        %v2906 = vpop.f32.mrb[0].mxu0
        %v2907 = vadd.f32 %v2784, %v2906
        %v2908 = vpop.f32.mrb[0].mxu0
        %2909 = vmatprep.mubr.bf16.mxu0 0
        %2910 = vmatmul.mubr.bf16.gmra.mrb[0].mxu0 %v2831
        %v2911 = vpop.f32.mrb[0].mxu0
        %v2912 = vadd.f32 %v2784, %v2911
        %v2913 = vpop.f32.mrb[0].mxu0
        %v2914 = vpop.f32.mrb[0].mxu0
        %v2915 = vadd.f32 %v2784, %v2914
        %v2916 = vpop.f32.mrb[0].mxu0
        %2917 = vmatprep.mubr.bf16.mxu0 0
        %2918 = vmatmul.mubr.bf16.gmra.mrb[0].mxu0 %v2833
        %v2919 = vpop.f32.mrb[0].mxu0
        %v2920 = vadd.f32 %v2784, %v2919
        %v2921 = vpop.f32.mrb[0].mxu0
        %v2922 = vpop.f32.mrb[0].mxu0
        %v2923 = vadd.f32 %v2784, %v2922
        %v2924 = vpop.f32.mrb[0].mxu0
        %2925 = vmatprep.mubr.bf16.mxu0 0
        %2926 = vmatmul.mubr.bf16.gmra.mrb[0].mxu0 %v2835
        %v2927 = vpop.f32.mrb[0].mxu0
        %v2928 = vadd.f32 %v2784, %v2927
        %v2929 = vpop.f32.mrb[0].mxu0
        %v2930 = vpop.f32.mrb[0].mxu0
        %v2931 = vadd.f32 %v2784, %v2930
        %v2932 = vpop.f32.mrb[0].mxu0
        %2933 = vdwg.mxu0
        %v2934 = vsel %vm764, %v2872, 0.0
        %2935 = vadd.xlane.f32.xlu0 %v2934
        %v2936 = vpop.xlane.xlu0 %2935
        %v2937 = vsel %vm764, %v2875, 0.0
        %2938 = vadd.xlane.f32.xlu0 %v2937
        %v2939 = vpop.xlane.xlu0 %2938
        %v2940 = vsel %vm764, %v2880, 0.0
        %2941 = vadd.xlane.f32.xlu0 %v2940
        %v2942 = vpop.xlane.xlu0 %2941
        %v2943 = vsel %vm764, %v2883, 0.0
        %2944 = vadd.xlane.f32.xlu0 %v2943
        %v2945 = vpop.xlane.xlu0 %2944
        %v2946 = vsel %vm764, %v2888, 0.0
        %2947 = vadd.xlane.f32.xlu0 %v2946
        %v2948 = vpop.xlane.xlu0 %2947
        %v2949 = vsel %vm764, %v2891, 0.0
        %2950 = vadd.xlane.f32.xlu0 %v2949
        %v2951 = vpop.xlane.xlu0 %2950
        %v2952 = vsel %vm764, %v2896, 0.0
        %2953 = vadd.xlane.f32.xlu0 %v2952
        %v2954 = vpop.xlane.xlu0 %2953
        %v2955 = vsel %vm764, %v2899, 0.0
        %2956 = vadd.xlane.f32.xlu0 %v2955
        %v2957 = vpop.xlane.xlu0 %2956
        %v2958 = vsel %vm764, %v2904, 0.0
        %2959 = vadd.xlane.f32.xlu0 %v2958
        %v2960 = vpop.xlane.xlu0 %2959
        %v2961 = vsel %vm764, %v2907, 0.0
        %2962 = vadd.xlane.f32.xlu0 %v2961
        %v2963 = vpop.xlane.xlu0 %2962
        %v2964 = vsel %vm764, %v2912, 0.0
        %2965 = vadd.xlane.f32.xlu0 %v2964
        %v2966 = vpop.xlane.xlu0 %2965
        %v2967 = vsel %vm764, %v2915, 0.0
        %2968 = vadd.xlane.f32.xlu0 %v2967
        %v2969 = vpop.xlane.xlu0 %2968
        %v2970 = vsel %vm764, %v2920, 0.0
        %2971 = vadd.xlane.f32.xlu0 %v2970
        %v2972 = vpop.xlane.xlu0 %2971
        %v2973 = vsel %vm764, %v2923, 0.0
        %2974 = vadd.xlane.f32.xlu0 %v2973
        %v2975 = vpop.xlane.xlu0 %2974
        %v2976 = vsel %vm764, %v2928, 0.0
        %2977 = vadd.xlane.f32.xlu0 %v2976
        %v2978 = vpop.xlane.xlu0 %2977
        %v2979 = vsel %vm764, %v2931, 0.0
        %2980 = vadd.xlane.f32.xlu0 %v2979
        %v2981 = vpop.xlane.xlu0 %2980
        %v2982 = vmul.f32 %v2936, %v1009
        %v2983 = vmul.f32 %v2939, %v1009
        %v2984 = vmul.f32 %v2942, %v1009
        %v2985 = vmul.f32 %v2945, %v1009
        %v2986 = vmul.f32 %v2948, %v1009
        %v2987 = vmul.f32 %v2951, %v1009
        %v2988 = vmul.f32 %v2954, %v1009
        %v2989 = vmul.f32 %v2957, %v1009
        %v2990 = vmul.f32 %v2960, %v1009
        %v2991 = vmul.f32 %v2963, %v1009
        %v2992 = vmul.f32 %v2966, %v1009
        %v2993 = vmul.f32 %v2969, %v1009
        %v2994 = vmul.f32 %v2972, %v1009
        %v2995 = vmul.f32 %v2975, %v1009
        %v2996 = vmul.f32 %v2978, %v1009
        %v2997 = vmul.f32 %v2981, %v1009
        %v2998 = vsub.f32 %v2872, %v2982
        %v2999 = vsub.f32 %v2875, %v2983
        %v3000 = vsub.f32 %v2880, %v2984
        %v3001 = vsub.f32 %v2883, %v2985
        %v3002 = vsub.f32 %v2888, %v2986
        %v3003 = vsub.f32 %v2891, %v2987
        %v3004 = vsub.f32 %v2896, %v2988
        %v3005 = vsub.f32 %v2899, %v2989
        %v3006 = vsub.f32 %v2904, %v2990
        %v3007 = vsub.f32 %v2907, %v2991
        %v3008 = vsub.f32 %v2912, %v2992
        %v3009 = vsub.f32 %v2915, %v2993
        %v3010 = vsub.f32 %v2920, %v2994
        %v3011 = vsub.f32 %v2923, %v2995
        %v3012 = vsub.f32 %v2928, %v2996
        %v3013 = vsub.f32 %v2931, %v2997
        %v3014 = vmul.f32 %v2998, %v2998
        %v3015 = vmul.f32 %v2999, %v2999
        %v3016 = vmul.f32 %v3000, %v3000
        %v3017 = vmul.f32 %v3001, %v3001
        %v3018 = vmul.f32 %v3002, %v3002
        %v3019 = vmul.f32 %v3003, %v3003
        %v3020 = vmul.f32 %v3004, %v3004
        %v3021 = vmul.f32 %v3005, %v3005
        %v3022 = vmul.f32 %v3006, %v3006
        %v3023 = vmul.f32 %v3007, %v3007
        %v3024 = vmul.f32 %v3008, %v3008
        %v3025 = vmul.f32 %v3009, %v3009
        %v3026 = vmul.f32 %v3010, %v3010
        %v3027 = vmul.f32 %v3011, %v3011
        %v3028 = vmul.f32 %v3012, %v3012
        %v3029 = vmul.f32 %v3013, %v3013
        %v3030 = vsel %vm764, %v3014, 0.0
        %3031 = vadd.xlane.f32.xlu0 %v3030
        %v3032 = vpop.xlane.xlu0 %3031
        %v3033 = vsel %vm764, %v3015, 0.0
        %3034 = vadd.xlane.f32.xlu0 %v3033
        %v3035 = vpop.xlane.xlu0 %3034
        %v3036 = vsel %vm764, %v3016, 0.0
        %3037 = vadd.xlane.f32.xlu0 %v3036
        %v3038 = vpop.xlane.xlu0 %3037
        %v3039 = vsel %vm764, %v3017, 0.0
        %3040 = vadd.xlane.f32.xlu0 %v3039
        %v3041 = vpop.xlane.xlu0 %3040
        %v3042 = vsel %vm764, %v3018, 0.0
        %3043 = vadd.xlane.f32.xlu0 %v3042
        %v3044 = vpop.xlane.xlu0 %3043
        %v3045 = vsel %vm764, %v3019, 0.0
        %3046 = vadd.xlane.f32.xlu0 %v3045
        %v3047 = vpop.xlane.xlu0 %3046
        %v3048 = vsel %vm764, %v3020, 0.0
        %3049 = vadd.xlane.f32.xlu0 %v3048
        %v3050 = vpop.xlane.xlu0 %3049
        %v3051 = vsel %vm764, %v3021, 0.0
        %3052 = vadd.xlane.f32.xlu0 %v3051
        %v3053 = vpop.xlane.xlu0 %3052
        %v3054 = vsel %vm764, %v3022, 0.0
        %3055 = vadd.xlane.f32.xlu0 %v3054
        %v3056 = vpop.xlane.xlu0 %3055
        %v3057 = vsel %vm764, %v3023, 0.0
        %3058 = vadd.xlane.f32.xlu0 %v3057
        %v3059 = vpop.xlane.xlu0 %3058
        %v3060 = vsel %vm764, %v3024, 0.0
        %3061 = vadd.xlane.f32.xlu0 %v3060
        %v3062 = vpop.xlane.xlu0 %3061
        %v3063 = vsel %vm764, %v3025, 0.0
        %3064 = vadd.xlane.f32.xlu0 %v3063
        %v3065 = vpop.xlane.xlu0 %3064
        %v3066 = vsel %vm764, %v3026, 0.0
        %3067 = vadd.xlane.f32.xlu0 %v3066
        %v3068 = vpop.xlane.xlu0 %3067
        %v3069 = vsel %vm764, %v3027, 0.0
        %3070 = vadd.xlane.f32.xlu0 %v3069
        %v3071 = vpop.xlane.xlu0 %3070
        %v3072 = vsel %vm764, %v3028, 0.0
        %3073 = vadd.xlane.f32.xlu0 %v3072
        %v3074 = vpop.xlane.xlu0 %3073
        %v3075 = vsel %vm764, %v3029, 0.0
        %3076 = vadd.xlane.f32.xlu0 %v3075
        %v3077 = vpop.xlane.xlu0 %3076
        %v3078 = vmul.f32 %v3032, %v1009
        %v3079 = vmul.f32 %v3035, %v1009
        %v3080 = vmul.f32 %v3038, %v1009
        %v3081 = vmul.f32 %v3041, %v1009
        %v3082 = vmul.f32 %v3044, %v1009
        %v3083 = vmul.f32 %v3047, %v1009
        %v3084 = vmul.f32 %v3050, %v1009
        %v3085 = vmul.f32 %v3053, %v1009
        %v3086 = vmul.f32 %v3056, %v1009
        %v3087 = vmul.f32 %v3059, %v1009
        %v3088 = vmul.f32 %v3062, %v1009
        %v3089 = vmul.f32 %v3065, %v1009
        %v3090 = vmul.f32 %v3068, %v1009
        %v3091 = vmul.f32 %v3071, %v1009
        %v3092 = vmul.f32 %v3074, %v1009
        %v3093 = vmul.f32 %v3077, %v1009
        %v3094 = vadd.f32 %v3078, 1e-08
        %v3095 = vadd.f32 %v3079, 1e-08
        %v3096 = vadd.f32 %v3080, 1e-08
        %v3097 = vadd.f32 %v3081, 1e-08
        %v3098 = vadd.f32 %v3082, 1e-08
        %v3099 = vadd.f32 %v3083, 1e-08
        %v3100 = vadd.f32 %v3084, 1e-08
        %v3101 = vadd.f32 %v3085, 1e-08
        %v3102 = vadd.f32 %v3086, 1e-08
        %v3103 = vadd.f32 %v3087, 1e-08
        %v3104 = vadd.f32 %v3088, 1e-08
        %v3105 = vadd.f32 %v3089, 1e-08
        %v3106 = vadd.f32 %v3090, 1e-08
        %v3107 = vadd.f32 %v3091, 1e-08
        %v3108 = vadd.f32 %v3092, 1e-08
        %v3109 = vadd.f32 %v3093, 1e-08
        %v3110 = vrsqrt.pop %v3094
        %v3111 = vrsqrt.pop %v3095
        %v3112 = vrsqrt.pop %v3096
        %v3113 = vrsqrt.pop %v3097
        %v3114 = vrsqrt.pop %v3098
        %v3115 = vrsqrt.pop %v3099
        %v3116 = vrsqrt.pop %v3100
        %v3117 = vrsqrt.pop %v3101
        %v3118 = vrsqrt.pop %v3102
        %v3119 = vrsqrt.pop %v3103
        %v3120 = vrsqrt.pop %v3104
        %v3121 = vrsqrt.pop %v3105
        %v3122 = vrsqrt.pop %v3106
        %v3123 = vrsqrt.pop %v3107
        %v3124 = vrsqrt.pop %v3108
        %v3125 = vrsqrt.pop %v3109
        %v3126 = vmul.f32 %v2998, %v3110
        %v3127 = vmul.f32 %v2999, %v3111
        %v3128 = vmul.f32 %v3000, %v3112
        %v3129 = vmul.f32 %v3001, %v3113
        %v3130 = vmul.f32 %v3002, %v3114
        %v3131 = vmul.f32 %v3003, %v3115
        %v3132 = vmul.f32 %v3004, %v3116
        %v3133 = vmul.f32 %v3005, %v3117
        %v3134 = vmul.f32 %v3006, %v3118
        %v3135 = vmul.f32 %v3007, %v3119
        %v3136 = vmul.f32 %v3008, %v3120
        %v3137 = vmul.f32 %v3009, %v3121
        %v3138 = vmul.f32 %v3010, %v3122
        %v3139 = vmul.f32 %v3011, %v3123
        %v3140 = vmul.f32 %v3012, %v3124
        %v3141 = vmul.f32 %v3013, %v3125
        %v3142 = vld [vmem:[%s3 + $0x3] sm:$0x1]
        %v3143 = vlaneseq
        %v3144 = vshrl.u32 %v3143, 7
        %v3145 = vsub.s32 0, %v3144
        %v3146 = vrot.slane %v3142, %v3145
        %v3147 = vmul.f32 %v3126, %v3146
        %v3148 = vmul.f32 %v3127, %v3146
        %v3149 = vmul.f32 %v3128, %v3146
        %v3150 = vmul.f32 %v3129, %v3146
        %v3151 = vmul.f32 %v3130, %v3146
        %v3152 = vmul.f32 %v3131, %v3146
        %v3153 = vmul.f32 %v3132, %v3146
        %v3154 = vmul.f32 %v3133, %v3146
        %v3155 = vmul.f32 %v3134, %v3146
        %v3156 = vmul.f32 %v3135, %v3146
        %v3157 = vmul.f32 %v3136, %v3146
        %v3158 = vmul.f32 %v3137, %v3146
        %v3159 = vmul.f32 %v3138, %v3146
        %v3160 = vmul.f32 %v3139, %v3146
        %v3161 = vmul.f32 %v3140, %v3146
        %v3162 = vmul.f32 %v3141, %v3146
        %v3163 = vld [vmem:[%s4 + $0x3] sm:$0x1]
        %v3164 = vlaneseq
        %v3165 = vshrl.u32 %v3164, 7
        %v3166 = vsub.s32 0, %v3165
        %v3167 = vrot.slane %v3163, %v3166
        %v3168 = vadd.f32 %v3147, %v3167
        %v3169 = vadd.f32 %v3148, %v3167
        %v3170 = vadd.f32 %v3149, %v3167
        %v3171 = vadd.f32 %v3150, %v3167
        %v3172 = vadd.f32 %v3151, %v3167
        %v3173 = vadd.f32 %v3152, %v3167
        %v3174 = vadd.f32 %v3153, %v3167
        %v3175 = vadd.f32 %v3154, %v3167
        %v3176 = vadd.f32 %v3155, %v3167
        %v3177 = vadd.f32 %v3156, %v3167
        %v3178 = vadd.f32 %v3157, %v3167
        %v3179 = vadd.f32 %v3158, %v3167
        %v3180 = vadd.f32 %v3159, %v3167
        %v3181 = vadd.f32 %v3160, %v3167
        %v3182 = vadd.f32 %v3161, %v3167
        %v3183 = vadd.f32 %v3162, %v3167
        %v3184 = vmax.f32 %v3168, 0.0
        %v3185 = vmax.f32 %v3169, 0.0
        %v3186 = vmax.f32 %v3170, 0.0
        %v3187 = vmax.f32 %v3171, 0.0
        %v3188 = vmax.f32 %v3172, 0.0
        %v3189 = vmax.f32 %v3173, 0.0
        %v3190 = vmax.f32 %v3174, 0.0
        %v3191 = vmax.f32 %v3175, 0.0
        %v3192 = vmax.f32 %v3176, 0.0
        %v3193 = vmax.f32 %v3177, 0.0
        %v3194 = vmax.f32 %v3178, 0.0
        %v3195 = vmax.f32 %v3179, 0.0
        %v3196 = vmax.f32 %v3180, 0.0
        %v3197 = vmax.f32 %v3181, 0.0
        %v3198 = vmax.f32 %v3182, 0.0
        %v3199 = vmax.f32 %v3183, 0.0
        %v3200 = vadd.f32 %v3184, %v1902
        %v3201 = vadd.f32 %v3185, %v1903
        %v3202 = vadd.f32 %v3186, %v1904
        %v3203 = vadd.f32 %v3187, %v1905
        %v3204 = vadd.f32 %v3188, %v1906
        %v3205 = vadd.f32 %v3189, %v1907
        %v3206 = vadd.f32 %v3190, %v1908
        %v3207 = vadd.f32 %v3191, %v1909
        %v3208 = vadd.f32 %v3192, %v1910
        %v3209 = vadd.f32 %v3193, %v1911
        %v3210 = vadd.f32 %v3194, %v1912
        %v3211 = vadd.f32 %v3195, %v1913
        %v3212 = vadd.f32 %v3196, %v1914
        %v3213 = vadd.f32 %v3197, %v1915
        %v3214 = vadd.f32 %v3198, %v1916
        %v3215 = vadd.f32 %v3199, %v1917
        %s3216 = scalar_lea.vmem %s1, 192
        %v3217 = vld [vmem:[%s3216] sm:$0xf]
        %v3218 = vld [vmem:[%s3216 + $0x4] sm:$0xf]
        %v3219 = vld [vmem:[%s3216 + $0x8] sm:$0xf]
        %v3220 = vld [vmem:[%s3216 + $0xc] sm:$0xf]
        %v3221 = vld [vmem:[%s3216 + $0x10] sm:$0xf]
        %v3222 = vld [vmem:[%s3216 + $0x14] sm:$0xf]
        %v3223 = vld [vmem:[%s3216 + $0x18] sm:$0xf]
        %v3224 = vld [vmem:[%s3216 + $0x1c] sm:$0xf]
        %v3225 = vld [vmem:[%s3216 + $0x20] sm:$0xf]
        %v3226 = vld [vmem:[%s3216 + $0x24] sm:$0xf]
        %v3227 = vld [vmem:[%s3216 + $0x28] sm:$0xf]
        %v3228 = vld [vmem:[%s3216 + $0x2c] sm:$0xf]
        %v3229 = vsel %vm2588, %v3215, 0.0
        %v3230 = vsel %vm2589, %v3200, 0.0
        %v3231 = vsel %vm2590, %v3201, 0.0
        %v3232 = vsel %vm2591, %v3202, 0.0
        %v3233 = vsel %vm2592, %v3203, 0.0
        %v3234 = vsel %vm2593, %v3204, 0.0
        %v3235 = vsel %vm2594, %v3205, 0.0
        %v3236 = vsel %vm2595, %v3206, 0.0
        %v3237 = vsel %vm2596, %v3207, 0.0
        %v3238 = vsel %vm2597, %v3208, 0.0
        %v3239 = vsel %vm2598, %v3209, 0.0
        %v3240 = vsel %vm2599, %v3210, 0.0
        %v3241 = vsel %vm2600, %v3211, 0.0
        %v3242 = vsel %vm2601, %v3212, 0.0
        %v3243 = vsel %vm2602, %v3213, 0.0
        %v3244 = vsel %vm2603, %v3214, 0.0
        %v3245 = vpack.c.bf16 %v3230, %v3229
        %v3246 = vpack.c.bf16 %v3232, %v3231
        %v3247 = vpack.c.bf16 %v3234, %v3233
        %v3248 = vpack.c.bf16 %v3236, %v3235
        %v3249 = vpack.c.bf16 %v3238, %v3237
        %v3250 = vpack.c.bf16 %v3240, %v3239
        %v3251 = vpack.c.bf16 %v3242, %v3241
        %v3252 = vpack.c.bf16 %v3244, %v3243
        %v3253 = vrot.slane %v3200, 4
        %v3254 = vrot.slane %v3201, 4
        %v3255 = vrot.slane %v3202, 4
        %v3256 = vrot.slane %v3203, 4
        %v3257 = vrot.slane %v3204, 4
        %v3258 = vrot.slane %v3205, 4
        %v3259 = vrot.slane %v3206, 4
        %v3260 = vrot.slane %v3207, 4
        %v3261 = vrot.slane %v3208, 4
        %v3262 = vrot.slane %v3209, 4
        %v3263 = vrot.slane %v3210, 4
        %v3264 = vrot.slane %v3211, 4
        %v3265 = vrot.slane %v3212, 4
        %v3266 = vrot.slane %v3213, 4
        %v3267 = vrot.slane %v3214, 4
        %v3268 = vrot.slane %v3215, 4
        %v3269 = vsel %vm1257, %v3267, %v3268
        %v3270 = vsel %vm1257, %v3266, %v3267
        %v3271 = vsel %vm1257, %v3265, %v3266
        %v3272 = vsel %vm1257, %v3264, %v3265
        %v3273 = vsel %vm1257, %v3263, %v3264
        %v3274 = vsel %vm1257, %v3262, %v3263
        %v3275 = vsel %vm1257, %v3261, %v3262
        %v3276 = vsel %vm1257, %v3260, %v3261
        %v3277 = vsel %vm1257, %v3259, %v3260
        %v3278 = vsel %vm1257, %v3258, %v3259
        %v3279 = vsel %vm1257, %v3257, %v3258
        %v3280 = vsel %vm1257, %v3256, %v3257
        %v3281 = vsel %vm1257, %v3255, %v3256
        %v3282 = vsel %vm1257, %v3254, %v3255
        %v3283 = vsel %vm1257, %v3253, %v3254
        %v3284 = vsel %vm1257, %v3268, %v3253
        %v3285 = vsel %vm1290, %v3284, 0.0
        %v3286 = vsel %vm1291, %v3283, 0.0
        %v3287 = vsel %vm1292, %v3282, 0.0
        %v3288 = vsel %vm1293, %v3281, 0.0
        %v3289 = vsel %vm1294, %v3280, 0.0
        %v3290 = vsel %vm1295, %v3279, 0.0
        %v3291 = vsel %vm1296, %v3278, 0.0
        %v3292 = vsel %vm1297, %v3277, 0.0
        %v3293 = vsel %vm1298, %v3276, 0.0
        %v3294 = vsel %vm1299, %v3275, 0.0
        %v3295 = vsel %vm1300, %v3274, 0.0
        %v3296 = vsel %vm1301, %v3273, 0.0
        %v3297 = vsel %vm1302, %v3272, 0.0
        %v3298 = vsel %vm1303, %v3271, 0.0
        %v3299 = vsel %vm1304, %v3270, 0.0
        %v3300 = vsel %vm1305, %v3269, 0.0
        %v3301 = vpack.c.bf16 %v3286, %v3285
        %v3302 = vpack.c.bf16 %v3288, %v3287
        %v3303 = vpack.c.bf16 %v3290, %v3289
        %v3304 = vpack.c.bf16 %v3292, %v3291
        %v3305 = vpack.c.bf16 %v3294, %v3293
        %v3306 = vpack.c.bf16 %v3296, %v3295
        %v3307 = vpack.c.bf16 %v3298, %v3297
        %v3308 = vpack.c.bf16 %v3300, %v3299
        %v3309 = vpack.c.bf16 %v3201, %v3200
        %v3310 = vpack.c.bf16 %v3203, %v3202
        %v3311 = vpack.c.bf16 %v3205, %v3204
        %v3312 = vpack.c.bf16 %v3207, %v3206
        %v3313 = vpack.c.bf16 %v3209, %v3208
        %v3314 = vpack.c.bf16 %v3211, %v3210
        %v3315 = vpack.c.bf16 %v3213, %v3212
        %v3316 = vpack.c.bf16 %v3215, %v3214
        %3325 = vrot.lane.b32.xlu0 %v3301, 32
        %v3326 = vpop.permute.xlu0 %3325
        %3327 = vrot.lane.b32.xlu0 %v3302, 32
        %v3328 = vpop.permute.xlu0 %3327
        %3329 = vrot.lane.b32.xlu0 %v3303, 32
        %v3330 = vpop.permute.xlu0 %3329
        %3331 = vrot.lane.b32.xlu0 %v3304, 32
        %v3332 = vpop.permute.xlu0 %3331
        %3333 = vrot.lane.b32.xlu0 %v3305, 32
        %v3334 = vpop.permute.xlu0 %3333
        %3335 = vrot.lane.b32.xlu0 %v3306, 32
        %v3336 = vpop.permute.xlu0 %3335
        %3337 = vrot.lane.b32.xlu0 %v3307, 32
        %v3338 = vpop.permute.xlu0 %3337
        %3339 = vrot.lane.b32.xlu0 %v3308, 32
        %v3340 = vpop.permute.xlu0 %3339
        %3349 = vrot.lane.b32.xlu0 %v3309, 64
        %v3350 = vpop.permute.xlu0 %3349
        %3351 = vrot.lane.b32.xlu0 %v3310, 64
        %v3352 = vpop.permute.xlu0 %3351
        %3353 = vrot.lane.b32.xlu0 %v3311, 64
        %v3354 = vpop.permute.xlu0 %3353
        %3355 = vrot.lane.b32.xlu0 %v3312, 64
        %v3356 = vpop.permute.xlu0 %3355
        %3357 = vrot.lane.b32.xlu0 %v3313, 64
        %v3358 = vpop.permute.xlu0 %3357
        %3359 = vrot.lane.b32.xlu0 %v3314, 64
        %v3360 = vpop.permute.xlu0 %3359
        %3361 = vrot.lane.b32.xlu0 %v3315, 64
        %v3362 = vpop.permute.xlu0 %3361
        %3363 = vrot.lane.b32.xlu0 %v3316, 64
        %v3364 = vpop.permute.xlu0 %3363
        %v3367 = vsel %vm764, %v3245, %v3326
        %v3370 = vsel %vm764, %v3246, %v3328
        %v3373 = vsel %vm764, %v3247, %v3330
        %v3376 = vsel %vm764, %v3248, %v3332
        %v3379 = vsel %vm764, %v3249, %v3334
        %v3382 = vsel %vm764, %v3250, %v3336
        %v3385 = vsel %vm764, %v3251, %v3338
        %v3388 = vsel %vm764, %v3252, %v3340
        %v3390 = vsel %vm789, %v3367, %v3350
        %v3392 = vsel %vm789, %v3370, %v3352
        %v3394 = vsel %vm789, %v3373, %v3354
        %v3396 = vsel %vm789, %v3376, %v3356
        %v3398 = vsel %vm789, %v3379, %v3358
        %v3400 = vsel %vm789, %v3382, %v3360
        %v3402 = vsel %vm789, %v3385, %v3362
        %v3404 = vsel %vm789, %v3388, %v3364
        %v3405 = vld [vmem:[%s2 + $0x4] sm:$0x1]
        %v3406 = vlaneseq
        %v3407 = vshrl.u32 %v3406, 7
        %v3408 = vsub.s32 0, %v3407
        %v3409 = vrot.slane %v3405, %v3408
        %v3422 = vunpack.c.l.b16 %v3217
        %v3423 = vunpack.c.l.b16 %v3218
        %v3424 = vunpack.c.l.b16 %v3219
        %v3425 = vunpack.c.l.b16 %v3220
        %v3426 = vunpack.c.l.b16 %v3221
        %v3427 = vunpack.c.l.b16 %v3222
        %v3428 = vunpack.c.l.b16 %v3223
        %v3429 = vunpack.c.l.b16 %v3224
        %v3430 = vunpack.c.l.b16 %v3225
        %v3431 = vunpack.c.l.b16 %v3226
        %v3432 = vunpack.c.l.b16 %v3227
        %v3433 = vunpack.c.l.b16 %v3228
        %v3434 = vpack.c.b16 %v3423, %v3422
        %v3435 = vpack.c.b16 %v3425, %v3424
        %v3436 = vpack.c.b16 %v3427, %v3426
        %v3437 = vpack.c.b16 %v3429, %v3428
        %v3438 = vpack.c.b16 %v3431, %v3430
        %v3439 = vpack.c.b16 %v3433, %v3432
        %v3446 = vsel %vm847, %v3390, 0
        %v3448 = vsel %vm847, %v3392, 0
        %v3450 = vsel %vm847, %v3394, 0
        %v3452 = vsel %vm847, %v3396, 0
        %v3454 = vsel %vm847, %v3398, 0
        %v3456 = vsel %vm847, %v3400, 0
        %v3458 = vsel %vm847, %v3402, 0
        %v3460 = vsel %vm847, %v3404, 0
        %3462 = vmatprep.subr.bf16.mxu0 0
        %3463 = vmatpush1.bf16.msra.mxu0 %v3434
        %3464 = vmatprep.subr.bf16.mxu0 0
        %3465 = vmatpush1.bf16.msra.mxu0 %v3435
        %3466 = vmatprep.subr.bf16.mxu0 0
        %3467 = vmatpush1.bf16.msra.mxu0 %v3436
        %3468 = vmatprep.subr.bf16.mxu0 0
        %3469 = vmatpush1.bf16.msra.mxu0 %v3437
        %3470 = vmatprep.subr.bf16.mxu0 0
        %3471 = vmatpush1.bf16.msra.mxu0 %v3438
        %3472 = vmatprep.subr.bf16.mxu0 0
        %3473 = vmatpush1.bf16.msra.mxu0 %v3439
        %3474 = vmatprep.subr.bf16.mxu0 0
        %3475 = vmatpush1.bf16.msra.mxu0 0
        %3476 = vmatprep.subr.bf16.mxu0 0
        %3477 = vmatpush1.bf16.msra.mxu0 0
        %3478 = vmatprep.subr.bf16.mxu0 0
        %3479 = vmatpush1.bf16.msra.mxu0 0
        %3480 = vmatprep.subr.bf16.mxu0 0
        %3481 = vmatpush1.bf16.msra.mxu0 0
        %3482 = vmatprep.subr.bf16.mxu0 0
        %3483 = vmatpush1.bf16.msra.mxu0 0
        %3484 = vmatprep.subr.bf16.mxu0 0
        %3485 = vmatpush1.bf16.msra.mxu0 0
        %3486 = vmatprep.subr.bf16.mxu0 0
        %3487 = vmatpush1.bf16.msra.mxu0 0
        %3488 = vmatprep.subr.bf16.mxu0 0
        %3489 = vmatpush1.bf16.msra.mxu0 0
        %3490 = vmatprep.subr.bf16.mxu0 0
        %3491 = vmatpush1.bf16.msra.mxu0 0
        %3492 = vmatprep.subr.bf16.mxu0 0
        %3493 = vmatpush1.bf16.msra.mxu0 0
        %3494 = vmatprep.mubr.bf16.mxu0 0
        %3495 = vmatmul.mubr.bf16.gmra.mrb[0].mxu0 %v3446
        %v3496 = vpop.f32.mrb[0].mxu0
        %v3497 = vadd.f32 %v3409, %v3496
        %v3498 = vpop.f32.mrb[0].mxu0
        %v3499 = vpop.f32.mrb[0].mxu0
        %v3500 = vadd.f32 %v3409, %v3499
        %v3501 = vpop.f32.mrb[0].mxu0
        %3502 = vmatprep.mubr.bf16.mxu0 0
        %3503 = vmatmul.mubr.bf16.gmra.mrb[0].mxu0 %v3448
        %v3504 = vpop.f32.mrb[0].mxu0
        %v3505 = vadd.f32 %v3409, %v3504
        %v3506 = vpop.f32.mrb[0].mxu0
        %v3507 = vpop.f32.mrb[0].mxu0
        %v3508 = vadd.f32 %v3409, %v3507
        %v3509 = vpop.f32.mrb[0].mxu0
        %3510 = vmatprep.mubr.bf16.mxu0 0
        %3511 = vmatmul.mubr.bf16.gmra.mrb[0].mxu0 %v3450
        %v3512 = vpop.f32.mrb[0].mxu0
        %v3513 = vadd.f32 %v3409, %v3512
        %v3514 = vpop.f32.mrb[0].mxu0
        %v3515 = vpop.f32.mrb[0].mxu0
        %v3516 = vadd.f32 %v3409, %v3515
        %v3517 = vpop.f32.mrb[0].mxu0
        %3518 = vmatprep.mubr.bf16.mxu0 0
        %3519 = vmatmul.mubr.bf16.gmra.mrb[0].mxu0 %v3452
        %v3520 = vpop.f32.mrb[0].mxu0
        %v3521 = vadd.f32 %v3409, %v3520
        %v3522 = vpop.f32.mrb[0].mxu0
        %v3523 = vpop.f32.mrb[0].mxu0
        %v3524 = vadd.f32 %v3409, %v3523
        %v3525 = vpop.f32.mrb[0].mxu0
        %3526 = vmatprep.mubr.bf16.mxu0 0
        %3527 = vmatmul.mubr.bf16.gmra.mrb[0].mxu0 %v3454
        %v3528 = vpop.f32.mrb[0].mxu0
        %v3529 = vadd.f32 %v3409, %v3528
        %v3530 = vpop.f32.mrb[0].mxu0
        %v3531 = vpop.f32.mrb[0].mxu0
        %v3532 = vadd.f32 %v3409, %v3531
        %v3533 = vpop.f32.mrb[0].mxu0
        %3534 = vmatprep.mubr.bf16.mxu0 0
        %3535 = vmatmul.mubr.bf16.gmra.mrb[0].mxu0 %v3456
        %v3536 = vpop.f32.mrb[0].mxu0
        %v3537 = vadd.f32 %v3409, %v3536
        %v3538 = vpop.f32.mrb[0].mxu0
        %v3539 = vpop.f32.mrb[0].mxu0
        %v3540 = vadd.f32 %v3409, %v3539
        %v3541 = vpop.f32.mrb[0].mxu0
        %3542 = vmatprep.mubr.bf16.mxu0 0
        %3543 = vmatmul.mubr.bf16.gmra.mrb[0].mxu0 %v3458
        %v3544 = vpop.f32.mrb[0].mxu0
        %v3545 = vadd.f32 %v3409, %v3544
        %v3546 = vpop.f32.mrb[0].mxu0
        %v3547 = vpop.f32.mrb[0].mxu0
        %v3548 = vadd.f32 %v3409, %v3547
        %v3549 = vpop.f32.mrb[0].mxu0
        %3550 = vmatprep.mubr.bf16.mxu0 0
        %3551 = vmatmul.mubr.bf16.gmra.mrb[0].mxu0 %v3460
        %v3552 = vpop.f32.mrb[0].mxu0
        %v3553 = vadd.f32 %v3409, %v3552
        %v3554 = vpop.f32.mrb[0].mxu0
        %v3555 = vpop.f32.mrb[0].mxu0
        %v3556 = vadd.f32 %v3409, %v3555
        %v3557 = vpop.f32.mrb[0].mxu0
        %3558 = vdwg.mxu0
        %v3559 = vsel %vm764, %v3497, 0.0
        %3560 = vadd.xlane.f32.xlu0 %v3559
        %v3561 = vpop.xlane.xlu0 %3560
        %v3562 = vsel %vm764, %v3500, 0.0
        %3563 = vadd.xlane.f32.xlu0 %v3562
        %v3564 = vpop.xlane.xlu0 %3563
        %v3565 = vsel %vm764, %v3505, 0.0
        %3566 = vadd.xlane.f32.xlu0 %v3565
        %v3567 = vpop.xlane.xlu0 %3566
        %v3568 = vsel %vm764, %v3508, 0.0
        %3569 = vadd.xlane.f32.xlu0 %v3568
        %v3570 = vpop.xlane.xlu0 %3569
        %v3571 = vsel %vm764, %v3513, 0.0
        %3572 = vadd.xlane.f32.xlu0 %v3571
        %v3573 = vpop.xlane.xlu0 %3572
        %v3574 = vsel %vm764, %v3516, 0.0
        %3575 = vadd.xlane.f32.xlu0 %v3574
        %v3576 = vpop.xlane.xlu0 %3575
        %v3577 = vsel %vm764, %v3521, 0.0
        %3578 = vadd.xlane.f32.xlu0 %v3577
        %v3579 = vpop.xlane.xlu0 %3578
        %v3580 = vsel %vm764, %v3524, 0.0
        %3581 = vadd.xlane.f32.xlu0 %v3580
        %v3582 = vpop.xlane.xlu0 %3581
        %v3583 = vsel %vm764, %v3529, 0.0
        %3584 = vadd.xlane.f32.xlu0 %v3583
        %v3585 = vpop.xlane.xlu0 %3584
        %v3586 = vsel %vm764, %v3532, 0.0
        %3587 = vadd.xlane.f32.xlu0 %v3586
        %v3588 = vpop.xlane.xlu0 %3587
        %v3589 = vsel %vm764, %v3537, 0.0
        %3590 = vadd.xlane.f32.xlu0 %v3589
        %v3591 = vpop.xlane.xlu0 %3590
        %v3592 = vsel %vm764, %v3540, 0.0
        %3593 = vadd.xlane.f32.xlu0 %v3592
        %v3594 = vpop.xlane.xlu0 %3593
        %v3595 = vsel %vm764, %v3545, 0.0
        %3596 = vadd.xlane.f32.xlu0 %v3595
        %v3597 = vpop.xlane.xlu0 %3596
        %v3598 = vsel %vm764, %v3548, 0.0
        %3599 = vadd.xlane.f32.xlu0 %v3598
        %v3600 = vpop.xlane.xlu0 %3599
        %v3601 = vsel %vm764, %v3553, 0.0
        %3602 = vadd.xlane.f32.xlu0 %v3601
        %v3603 = vpop.xlane.xlu0 %3602
        %v3604 = vsel %vm764, %v3556, 0.0
        %3605 = vadd.xlane.f32.xlu0 %v3604
        %v3606 = vpop.xlane.xlu0 %3605
        %v3607 = vmul.f32 %v3561, %v1009
        %v3608 = vmul.f32 %v3564, %v1009
        %v3609 = vmul.f32 %v3567, %v1009
        %v3610 = vmul.f32 %v3570, %v1009
        %v3611 = vmul.f32 %v3573, %v1009
        %v3612 = vmul.f32 %v3576, %v1009
        %v3613 = vmul.f32 %v3579, %v1009
        %v3614 = vmul.f32 %v3582, %v1009
        %v3615 = vmul.f32 %v3585, %v1009
        %v3616 = vmul.f32 %v3588, %v1009
        %v3617 = vmul.f32 %v3591, %v1009
        %v3618 = vmul.f32 %v3594, %v1009
        %v3619 = vmul.f32 %v3597, %v1009
        %v3620 = vmul.f32 %v3600, %v1009
        %v3621 = vmul.f32 %v3603, %v1009
        %v3622 = vmul.f32 %v3606, %v1009
        %v3623 = vsub.f32 %v3497, %v3607
        %v3624 = vsub.f32 %v3500, %v3608
        %v3625 = vsub.f32 %v3505, %v3609
        %v3626 = vsub.f32 %v3508, %v3610
        %v3627 = vsub.f32 %v3513, %v3611
        %v3628 = vsub.f32 %v3516, %v3612
        %v3629 = vsub.f32 %v3521, %v3613
        %v3630 = vsub.f32 %v3524, %v3614
        %v3631 = vsub.f32 %v3529, %v3615
        %v3632 = vsub.f32 %v3532, %v3616
        %v3633 = vsub.f32 %v3537, %v3617
        %v3634 = vsub.f32 %v3540, %v3618
        %v3635 = vsub.f32 %v3545, %v3619
        %v3636 = vsub.f32 %v3548, %v3620
        %v3637 = vsub.f32 %v3553, %v3621
        %v3638 = vsub.f32 %v3556, %v3622
        %v3639 = vmul.f32 %v3623, %v3623
        %v3640 = vmul.f32 %v3624, %v3624
        %v3641 = vmul.f32 %v3625, %v3625
        %v3642 = vmul.f32 %v3626, %v3626
        %v3643 = vmul.f32 %v3627, %v3627
        %v3644 = vmul.f32 %v3628, %v3628
        %v3645 = vmul.f32 %v3629, %v3629
        %v3646 = vmul.f32 %v3630, %v3630
        %v3647 = vmul.f32 %v3631, %v3631
        %v3648 = vmul.f32 %v3632, %v3632
        %v3649 = vmul.f32 %v3633, %v3633
        %v3650 = vmul.f32 %v3634, %v3634
        %v3651 = vmul.f32 %v3635, %v3635
        %v3652 = vmul.f32 %v3636, %v3636
        %v3653 = vmul.f32 %v3637, %v3637
        %v3654 = vmul.f32 %v3638, %v3638
        %v3655 = vsel %vm764, %v3639, 0.0
        %3656 = vadd.xlane.f32.xlu0 %v3655
        %v3657 = vpop.xlane.xlu0 %3656
        %v3658 = vsel %vm764, %v3640, 0.0
        %3659 = vadd.xlane.f32.xlu0 %v3658
        %v3660 = vpop.xlane.xlu0 %3659
        %v3661 = vsel %vm764, %v3641, 0.0
        %3662 = vadd.xlane.f32.xlu0 %v3661
        %v3663 = vpop.xlane.xlu0 %3662
        %v3664 = vsel %vm764, %v3642, 0.0
        %3665 = vadd.xlane.f32.xlu0 %v3664
        %v3666 = vpop.xlane.xlu0 %3665
        %v3667 = vsel %vm764, %v3643, 0.0
        %3668 = vadd.xlane.f32.xlu0 %v3667
        %v3669 = vpop.xlane.xlu0 %3668
        %v3670 = vsel %vm764, %v3644, 0.0
        %3671 = vadd.xlane.f32.xlu0 %v3670
        %v3672 = vpop.xlane.xlu0 %3671
        %v3673 = vsel %vm764, %v3645, 0.0
        %3674 = vadd.xlane.f32.xlu0 %v3673
        %v3675 = vpop.xlane.xlu0 %3674
        %v3676 = vsel %vm764, %v3646, 0.0
        %3677 = vadd.xlane.f32.xlu0 %v3676
        %v3678 = vpop.xlane.xlu0 %3677
        %v3679 = vsel %vm764, %v3647, 0.0
        %3680 = vadd.xlane.f32.xlu0 %v3679
        %v3681 = vpop.xlane.xlu0 %3680
        %v3682 = vsel %vm764, %v3648, 0.0
        %3683 = vadd.xlane.f32.xlu0 %v3682
        %v3684 = vpop.xlane.xlu0 %3683
        %v3685 = vsel %vm764, %v3649, 0.0
        %3686 = vadd.xlane.f32.xlu0 %v3685
        %v3687 = vpop.xlane.xlu0 %3686
        %v3688 = vsel %vm764, %v3650, 0.0
        %3689 = vadd.xlane.f32.xlu0 %v3688
        %v3690 = vpop.xlane.xlu0 %3689
        %v3691 = vsel %vm764, %v3651, 0.0
        %3692 = vadd.xlane.f32.xlu0 %v3691
        %v3693 = vpop.xlane.xlu0 %3692
        %v3694 = vsel %vm764, %v3652, 0.0
        %3695 = vadd.xlane.f32.xlu0 %v3694
        %v3696 = vpop.xlane.xlu0 %3695
        %v3697 = vsel %vm764, %v3653, 0.0
        %3698 = vadd.xlane.f32.xlu0 %v3697
        %v3699 = vpop.xlane.xlu0 %3698
        %v3700 = vsel %vm764, %v3654, 0.0
        %3701 = vadd.xlane.f32.xlu0 %v3700
        %v3702 = vpop.xlane.xlu0 %3701
        %v3703 = vmul.f32 %v3657, %v1009
        %v3704 = vmul.f32 %v3660, %v1009
        %v3705 = vmul.f32 %v3663, %v1009
        %v3706 = vmul.f32 %v3666, %v1009
        %v3707 = vmul.f32 %v3669, %v1009
        %v3708 = vmul.f32 %v3672, %v1009
        %v3709 = vmul.f32 %v3675, %v1009
        %v3710 = vmul.f32 %v3678, %v1009
        %v3711 = vmul.f32 %v3681, %v1009
        %v3712 = vmul.f32 %v3684, %v1009
        %v3713 = vmul.f32 %v3687, %v1009
        %v3714 = vmul.f32 %v3690, %v1009
        %v3715 = vmul.f32 %v3693, %v1009
        %v3716 = vmul.f32 %v3696, %v1009
        %v3717 = vmul.f32 %v3699, %v1009
        %v3718 = vmul.f32 %v3702, %v1009
        %v3719 = vadd.f32 %v3703, 1e-08
        %v3720 = vadd.f32 %v3704, 1e-08
        %v3721 = vadd.f32 %v3705, 1e-08
        %v3722 = vadd.f32 %v3706, 1e-08
        %v3723 = vadd.f32 %v3707, 1e-08
        %v3724 = vadd.f32 %v3708, 1e-08
        %v3725 = vadd.f32 %v3709, 1e-08
        %v3726 = vadd.f32 %v3710, 1e-08
        %v3727 = vadd.f32 %v3711, 1e-08
        %v3728 = vadd.f32 %v3712, 1e-08
        %v3729 = vadd.f32 %v3713, 1e-08
        %v3730 = vadd.f32 %v3714, 1e-08
        %v3731 = vadd.f32 %v3715, 1e-08
        %v3732 = vadd.f32 %v3716, 1e-08
        %v3733 = vadd.f32 %v3717, 1e-08
        %v3734 = vadd.f32 %v3718, 1e-08
        %v3735 = vrsqrt.pop %v3719
        %v3736 = vrsqrt.pop %v3720
        %v3737 = vrsqrt.pop %v3721
        %v3738 = vrsqrt.pop %v3722
        %v3739 = vrsqrt.pop %v3723
        %v3740 = vrsqrt.pop %v3724
        %v3741 = vrsqrt.pop %v3725
        %v3742 = vrsqrt.pop %v3726
        %v3743 = vrsqrt.pop %v3727
        %v3744 = vrsqrt.pop %v3728
        %v3745 = vrsqrt.pop %v3729
        %v3746 = vrsqrt.pop %v3730
        %v3747 = vrsqrt.pop %v3731
        %v3748 = vrsqrt.pop %v3732
        %v3749 = vrsqrt.pop %v3733
        %v3750 = vrsqrt.pop %v3734
        %v3751 = vmul.f32 %v3623, %v3735
        %v3752 = vmul.f32 %v3624, %v3736
        %v3753 = vmul.f32 %v3625, %v3737
        %v3754 = vmul.f32 %v3626, %v3738
        %v3755 = vmul.f32 %v3627, %v3739
        %v3756 = vmul.f32 %v3628, %v3740
        %v3757 = vmul.f32 %v3629, %v3741
        %v3758 = vmul.f32 %v3630, %v3742
        %v3759 = vmul.f32 %v3631, %v3743
        %v3760 = vmul.f32 %v3632, %v3744
        %v3761 = vmul.f32 %v3633, %v3745
        %v3762 = vmul.f32 %v3634, %v3746
        %v3763 = vmul.f32 %v3635, %v3747
        %v3764 = vmul.f32 %v3636, %v3748
        %v3765 = vmul.f32 %v3637, %v3749
        %v3766 = vmul.f32 %v3638, %v3750
        %v3767 = vld [vmem:[%s3 + $0x4] sm:$0x1]
        %v3768 = vlaneseq
        %v3769 = vshrl.u32 %v3768, 7
        %v3770 = vsub.s32 0, %v3769
        %v3771 = vrot.slane %v3767, %v3770
        %v3772 = vmul.f32 %v3751, %v3771
        %v3773 = vmul.f32 %v3752, %v3771
        %v3774 = vmul.f32 %v3753, %v3771
        %v3775 = vmul.f32 %v3754, %v3771
        %v3776 = vmul.f32 %v3755, %v3771
        %v3777 = vmul.f32 %v3756, %v3771
        %v3778 = vmul.f32 %v3757, %v3771
        %v3779 = vmul.f32 %v3758, %v3771
        %v3780 = vmul.f32 %v3759, %v3771
        %v3781 = vmul.f32 %v3760, %v3771
        %v3782 = vmul.f32 %v3761, %v3771
        %v3783 = vmul.f32 %v3762, %v3771
        %v3784 = vmul.f32 %v3763, %v3771
        %v3785 = vmul.f32 %v3764, %v3771
        %v3786 = vmul.f32 %v3765, %v3771
        %v3787 = vmul.f32 %v3766, %v3771
        %v3788 = vld [vmem:[%s4 + $0x4] sm:$0x1]
        %v3789 = vlaneseq
        %v3790 = vshrl.u32 %v3789, 7
        %v3791 = vsub.s32 0, %v3790
        %v3792 = vrot.slane %v3788, %v3791
        %v3793 = vadd.f32 %v3772, %v3792
        %v3794 = vadd.f32 %v3773, %v3792
        %v3795 = vadd.f32 %v3774, %v3792
        %v3796 = vadd.f32 %v3775, %v3792
        %v3797 = vadd.f32 %v3776, %v3792
        %v3798 = vadd.f32 %v3777, %v3792
        %v3799 = vadd.f32 %v3778, %v3792
        %v3800 = vadd.f32 %v3779, %v3792
        %v3801 = vadd.f32 %v3780, %v3792
        %v3802 = vadd.f32 %v3781, %v3792
        %v3803 = vadd.f32 %v3782, %v3792
        %v3804 = vadd.f32 %v3783, %v3792
        %v3805 = vadd.f32 %v3784, %v3792
        %v3806 = vadd.f32 %v3785, %v3792
        %v3807 = vadd.f32 %v3786, %v3792
        %v3808 = vadd.f32 %v3787, %v3792
        %v3809 = vmax.f32 %v3793, 0.0
        %v3810 = vmax.f32 %v3794, 0.0
        %v3811 = vmax.f32 %v3795, 0.0
        %v3812 = vmax.f32 %v3796, 0.0
        %v3813 = vmax.f32 %v3797, 0.0
        %v3814 = vmax.f32 %v3798, 0.0
        %v3815 = vmax.f32 %v3799, 0.0
        %v3816 = vmax.f32 %v3800, 0.0
        %v3817 = vmax.f32 %v3801, 0.0
        %v3818 = vmax.f32 %v3802, 0.0
        %v3819 = vmax.f32 %v3803, 0.0
        %v3820 = vmax.f32 %v3804, 0.0
        %v3821 = vmax.f32 %v3805, 0.0
        %v3822 = vmax.f32 %v3806, 0.0
        %v3823 = vmax.f32 %v3807, 0.0
        %v3824 = vmax.f32 %v3808, 0.0
        %s3825 = scalar_lea.vmem %s1, 240
        %v3826 = vld [vmem:[%s3825 + $0x10] sm:$0xf]
        %v3827 = vld [vmem:[%s3825 + $0x14] sm:$0xf]
        %v3828 = vld [vmem:[%s3825 + $0x18] sm:$0xf]
        %v3829 = vld [vmem:[%s3825 + $0x1c] sm:$0xf]
        %v3830 = vld [vmem:[%s3825 + $0x20] sm:$0xf]
        %v3831 = vld [vmem:[%s3825 + $0x24] sm:$0xf]
        %v3832 = vld [vmem:[%s3825 + $0x28] sm:$0xf]
        %v3833 = vld [vmem:[%s3825 + $0x2c] sm:$0xf]
        %v3834 = vsel %vm2588, %v3824, 0.0
        %v3835 = vsel %vm2589, %v3809, 0.0
        %v3836 = vsel %vm2590, %v3810, 0.0
        %v3837 = vsel %vm2591, %v3811, 0.0
        %v3838 = vsel %vm2592, %v3812, 0.0
        %v3839 = vsel %vm2593, %v3813, 0.0
        %v3840 = vsel %vm2594, %v3814, 0.0
        %v3841 = vsel %vm2595, %v3815, 0.0
        %v3842 = vsel %vm2596, %v3816, 0.0
        %v3843 = vsel %vm2597, %v3817, 0.0
        %v3844 = vsel %vm2598, %v3818, 0.0
        %v3845 = vsel %vm2599, %v3819, 0.0
        %v3846 = vsel %vm2600, %v3820, 0.0
        %v3847 = vsel %vm2601, %v3821, 0.0
        %v3848 = vsel %vm2602, %v3822, 0.0
        %v3849 = vsel %vm2603, %v3823, 0.0
        %v3850 = vpack.c.bf16 %v3835, %v3834
        %v3851 = vpack.c.bf16 %v3837, %v3836
        %v3852 = vpack.c.bf16 %v3839, %v3838
        %v3853 = vpack.c.bf16 %v3841, %v3840
        %v3854 = vpack.c.bf16 %v3843, %v3842
        %v3855 = vpack.c.bf16 %v3845, %v3844
        %v3856 = vpack.c.bf16 %v3847, %v3846
        %v3857 = vpack.c.bf16 %v3849, %v3848
        %v3858 = vpack.c.bf16 %v3810, %v3809
        %v3859 = vpack.c.bf16 %v3812, %v3811
        %v3860 = vpack.c.bf16 %v3814, %v3813
        %v3861 = vpack.c.bf16 %v3816, %v3815
        %v3862 = vpack.c.bf16 %v3818, %v3817
        %v3863 = vpack.c.bf16 %v3820, %v3819
        %v3864 = vpack.c.bf16 %v3822, %v3821
        %v3865 = vpack.c.bf16 %v3824, %v3823
        %3874 = vrot.lane.b32.xlu0 %v3858, 32
        %v3875 = vpop.permute.xlu0 %3874
        %3876 = vrot.lane.b32.xlu0 %v3859, 32
        %v3877 = vpop.permute.xlu0 %3876
        %3878 = vrot.lane.b32.xlu0 %v3860, 32
        %v3879 = vpop.permute.xlu0 %3878
        %3880 = vrot.lane.b32.xlu0 %v3861, 32
        %v3881 = vpop.permute.xlu0 %3880
        %3882 = vrot.lane.b32.xlu0 %v3862, 32
        %v3883 = vpop.permute.xlu0 %3882
        %3884 = vrot.lane.b32.xlu0 %v3863, 32
        %v3885 = vpop.permute.xlu0 %3884
        %3886 = vrot.lane.b32.xlu0 %v3864, 32
        %v3887 = vpop.permute.xlu0 %3886
        %3888 = vrot.lane.b32.xlu0 %v3865, 32
        %v3889 = vpop.permute.xlu0 %3888
        %v3892 = vsel %vm764, %v3850, %v3875
        %v3895 = vsel %vm764, %v3851, %v3877
        %v3898 = vsel %vm764, %v3852, %v3879
        %v3901 = vsel %vm764, %v3853, %v3881
        %v3904 = vsel %vm764, %v3854, %v3883
        %v3907 = vsel %vm764, %v3855, %v3885
        %v3910 = vsel %vm764, %v3856, %v3887
        %v3913 = vsel %vm764, %v3857, %v3889
        %v3914 = vld [vmem:[%s2 + $0x5] sm:$0x1]
        %v3915 = vlaneseq
        %v3916 = vshrl.u32 %v3915, 7
        %v3917 = vsub.s32 0, %v3916
        %v3918 = vrot.slane %v3914, %v3917
        %v3927 = vunpack.c.l.b16 %v3826
        %v3928 = vunpack.c.l.b16 %v3827
        %v3929 = vunpack.c.l.b16 %v3828
        %v3930 = vunpack.c.l.b16 %v3829
        %v3931 = vunpack.c.l.b16 %v3830
        %v3932 = vunpack.c.l.b16 %v3831
        %v3933 = vunpack.c.l.b16 %v3832
        %v3934 = vunpack.c.l.b16 %v3833
        %v3935 = vpack.c.b16 %v3928, %v3927
        %v3936 = vpack.c.b16 %v3930, %v3929
        %v3937 = vpack.c.b16 %v3932, %v3931
        %v3938 = vpack.c.b16 %v3934, %v3933
        %v3943 = vsel %vm789, %v3892, 0
        %v3945 = vsel %vm789, %v3895, 0
        %v3947 = vsel %vm789, %v3898, 0
        %v3949 = vsel %vm789, %v3901, 0
        %v3951 = vsel %vm789, %v3904, 0
        %v3953 = vsel %vm789, %v3907, 0
        %v3955 = vsel %vm789, %v3910, 0
        %v3957 = vsel %vm789, %v3913, 0
        %3959 = vmatprep.subr.bf16.mxu0 0
        %3960 = vmatpush1.bf16.msra.mxu0 %v3935
        %3961 = vmatprep.subr.bf16.mxu0 0
        %3962 = vmatpush1.bf16.msra.mxu0 %v3936
        %3963 = vmatprep.subr.bf16.mxu0 0
        %3964 = vmatpush1.bf16.msra.mxu0 %v3937
        %3965 = vmatprep.subr.bf16.mxu0 0
        %3966 = vmatpush1.bf16.msra.mxu0 %v3938
        %3967 = vmatprep.subr.bf16.mxu0 0
        %3968 = vmatpush1.bf16.msra.mxu0 0
        %3969 = vmatprep.subr.bf16.mxu0 0
        %3970 = vmatpush1.bf16.msra.mxu0 0
        %3971 = vmatprep.subr.bf16.mxu0 0
        %3972 = vmatpush1.bf16.msra.mxu0 0
        %3973 = vmatprep.subr.bf16.mxu0 0
        %3974 = vmatpush1.bf16.msra.mxu0 0
        %3975 = vmatprep.subr.bf16.mxu0 0
        %3976 = vmatpush1.bf16.msra.mxu0 0
        %3977 = vmatprep.subr.bf16.mxu0 0
        %3978 = vmatpush1.bf16.msra.mxu0 0
        %3979 = vmatprep.subr.bf16.mxu0 0
        %3980 = vmatpush1.bf16.msra.mxu0 0
        %3981 = vmatprep.subr.bf16.mxu0 0
        %3982 = vmatpush1.bf16.msra.mxu0 0
        %3983 = vmatprep.subr.bf16.mxu0 0
        %3984 = vmatpush1.bf16.msra.mxu0 0
        %3985 = vmatprep.subr.bf16.mxu0 0
        %3986 = vmatpush1.bf16.msra.mxu0 0
        %3987 = vmatprep.subr.bf16.mxu0 0
        %3988 = vmatpush1.bf16.msra.mxu0 0
        %3989 = vmatprep.subr.bf16.mxu0 0
        %3990 = vmatpush1.bf16.msra.mxu0 0
        %3991 = vmatprep.mubr.bf16.mxu0 0
        %3992 = vmatmul.mubr.bf16.gmra.mrb[0].mxu0 %v3943
        %v3993 = vpop.f32.mrb[0].mxu0
        %v3994 = vpop.f32.mrb[0].mxu0
        %v3995 = vpop.f32.mrb[0].mxu0
        %v3996 = vadd.f32 %v3918, %v3995
        %v3997 = vpop.f32.mrb[0].mxu0
        %3998 = vmatprep.mubr.bf16.mxu0 0
        %3999 = vmatmul.mubr.bf16.gmra.mrb[0].mxu0 %v3945
        %v4000 = vpop.f32.mrb[0].mxu0
        %v4001 = vpop.f32.mrb[0].mxu0
        %v4002 = vpop.f32.mrb[0].mxu0
        %v4003 = vadd.f32 %v3918, %v4002
        %v4004 = vpop.f32.mrb[0].mxu0
        %4005 = vmatprep.mubr.bf16.mxu0 0
        %4006 = vmatmul.mubr.bf16.gmra.mrb[0].mxu0 %v3947
        %v4007 = vpop.f32.mrb[0].mxu0
        %v4008 = vpop.f32.mrb[0].mxu0
        %v4009 = vpop.f32.mrb[0].mxu0
        %v4010 = vadd.f32 %v3918, %v4009
        %v4011 = vpop.f32.mrb[0].mxu0
        %4012 = vmatprep.mubr.bf16.mxu0 0
        %4013 = vmatmul.mubr.bf16.gmra.mrb[0].mxu0 %v3949
        %v4014 = vpop.f32.mrb[0].mxu0
        %v4015 = vpop.f32.mrb[0].mxu0
        %v4016 = vpop.f32.mrb[0].mxu0
        %v4017 = vadd.f32 %v3918, %v4016
        %v4018 = vpop.f32.mrb[0].mxu0
        %4019 = vmatprep.mubr.bf16.mxu0 0
        %4020 = vmatmul.mubr.bf16.gmra.mrb[0].mxu0 %v3951
        %v4021 = vpop.f32.mrb[0].mxu0
        %v4022 = vpop.f32.mrb[0].mxu0
        %v4023 = vpop.f32.mrb[0].mxu0
        %v4024 = vadd.f32 %v3918, %v4023
        %v4025 = vpop.f32.mrb[0].mxu0
        %4026 = vmatprep.mubr.bf16.mxu0 0
        %4027 = vmatmul.mubr.bf16.gmra.mrb[0].mxu0 %v3953
        %v4028 = vpop.f32.mrb[0].mxu0
        %v4029 = vpop.f32.mrb[0].mxu0
        %v4030 = vpop.f32.mrb[0].mxu0
        %v4031 = vadd.f32 %v3918, %v4030
        %v4032 = vpop.f32.mrb[0].mxu0
        %4033 = vmatprep.mubr.bf16.mxu0 0
        %4034 = vmatmul.mubr.bf16.gmra.mrb[0].mxu0 %v3955
        %v4035 = vpop.f32.mrb[0].mxu0
        %v4036 = vpop.f32.mrb[0].mxu0
        %v4037 = vpop.f32.mrb[0].mxu0
        %v4038 = vadd.f32 %v3918, %v4037
        %v4039 = vpop.f32.mrb[0].mxu0
        %4040 = vmatprep.mubr.bf16.mxu0 0
        %4041 = vmatmul.mubr.bf16.gmra.mrb[0].mxu0 %v3957
        %v4042 = vpop.f32.mrb[0].mxu0
        %v4043 = vpop.f32.mrb[0].mxu0
        %v4044 = vpop.f32.mrb[0].mxu0
        %v4045 = vadd.f32 %v3918, %v4044
        %v4046 = vpop.f32.mrb[0].mxu0
        %4047 = vdwg.mxu0
        %v4048 = vsel %vm764, %v3996, 0.0
        %4049 = vadd.xlane.f32.xlu0 %v4048
        %v4050 = vpop.xlane.xlu0 %4049
        %v4051 = vsel %vm764, %v4003, 0.0
        %4052 = vadd.xlane.f32.xlu0 %v4051
        %v4053 = vpop.xlane.xlu0 %4052
        %v4054 = vsel %vm764, %v4010, 0.0
        %4055 = vadd.xlane.f32.xlu0 %v4054
        %v4056 = vpop.xlane.xlu0 %4055
        %v4057 = vsel %vm764, %v4017, 0.0
        %4058 = vadd.xlane.f32.xlu0 %v4057
        %v4059 = vpop.xlane.xlu0 %4058
        %v4060 = vsel %vm764, %v4024, 0.0
        %4061 = vadd.xlane.f32.xlu0 %v4060
        %v4062 = vpop.xlane.xlu0 %4061
        %v4063 = vsel %vm764, %v4031, 0.0
        %4064 = vadd.xlane.f32.xlu0 %v4063
        %v4065 = vpop.xlane.xlu0 %4064
        %v4066 = vsel %vm764, %v4038, 0.0
        %4067 = vadd.xlane.f32.xlu0 %v4066
        %v4068 = vpop.xlane.xlu0 %4067
        %v4069 = vsel %vm764, %v4045, 0.0
        %4070 = vadd.xlane.f32.xlu0 %v4069
        %v4071 = vpop.xlane.xlu0 %4070
        %v4072 = vmul.f32 %v4050, %v1009
        %v4073 = vmul.f32 %v4053, %v1009
        %v4074 = vmul.f32 %v4056, %v1009
        %v4075 = vmul.f32 %v4059, %v1009
        %v4076 = vmul.f32 %v4062, %v1009
        %v4077 = vmul.f32 %v4065, %v1009
        %v4078 = vmul.f32 %v4068, %v1009
        %v4079 = vmul.f32 %v4071, %v1009
        %v4080 = vsub.f32 %v3996, %v4072
        %v4081 = vsub.f32 %v4003, %v4073
        %v4082 = vsub.f32 %v4010, %v4074
        %v4083 = vsub.f32 %v4017, %v4075
        %v4084 = vsub.f32 %v4024, %v4076
        %v4085 = vsub.f32 %v4031, %v4077
        %v4086 = vsub.f32 %v4038, %v4078
        %v4087 = vsub.f32 %v4045, %v4079
        %v4088 = vmul.f32 %v4080, %v4080
        %v4089 = vmul.f32 %v4081, %v4081
        %v4090 = vmul.f32 %v4082, %v4082
        %v4091 = vmul.f32 %v4083, %v4083
        %v4092 = vmul.f32 %v4084, %v4084
        %v4093 = vmul.f32 %v4085, %v4085
        %v4094 = vmul.f32 %v4086, %v4086
        %v4095 = vmul.f32 %v4087, %v4087
        %v4096 = vsel %vm764, %v4088, 0.0
        %4097 = vadd.xlane.f32.xlu0 %v4096
        %v4098 = vpop.xlane.xlu0 %4097
        %v4099 = vsel %vm764, %v4089, 0.0
        %4100 = vadd.xlane.f32.xlu0 %v4099
        %v4101 = vpop.xlane.xlu0 %4100
        %v4102 = vsel %vm764, %v4090, 0.0
        %4103 = vadd.xlane.f32.xlu0 %v4102
        %v4104 = vpop.xlane.xlu0 %4103
        %v4105 = vsel %vm764, %v4091, 0.0
        %4106 = vadd.xlane.f32.xlu0 %v4105
        %v4107 = vpop.xlane.xlu0 %4106
        %v4108 = vsel %vm764, %v4092, 0.0
        %4109 = vadd.xlane.f32.xlu0 %v4108
        %v4110 = vpop.xlane.xlu0 %4109
        %v4111 = vsel %vm764, %v4093, 0.0
        %4112 = vadd.xlane.f32.xlu0 %v4111
        %v4113 = vpop.xlane.xlu0 %4112
        %v4114 = vsel %vm764, %v4094, 0.0
        %4115 = vadd.xlane.f32.xlu0 %v4114
        %v4116 = vpop.xlane.xlu0 %4115
        %v4117 = vsel %vm764, %v4095, 0.0
        %4118 = vadd.xlane.f32.xlu0 %v4117
        %v4119 = vpop.xlane.xlu0 %4118
        %v4120 = vmul.f32 %v4098, %v1009
        %v4121 = vmul.f32 %v4101, %v1009
        %v4122 = vmul.f32 %v4104, %v1009
        %v4123 = vmul.f32 %v4107, %v1009
        %v4124 = vmul.f32 %v4110, %v1009
        %v4125 = vmul.f32 %v4113, %v1009
        %v4126 = vmul.f32 %v4116, %v1009
        %v4127 = vmul.f32 %v4119, %v1009
        %v4128 = vadd.f32 %v4120, 1e-08
        %v4129 = vadd.f32 %v4121, 1e-08
        %v4130 = vadd.f32 %v4122, 1e-08
        %v4131 = vadd.f32 %v4123, 1e-08
        %v4132 = vadd.f32 %v4124, 1e-08
        %v4133 = vadd.f32 %v4125, 1e-08
        %v4134 = vadd.f32 %v4126, 1e-08
        %v4135 = vadd.f32 %v4127, 1e-08
        %v4136 = vrsqrt.pop %v4128
        %v4137 = vrsqrt.pop %v4129
        %v4138 = vrsqrt.pop %v4130
        %v4139 = vrsqrt.pop %v4131
        %v4140 = vrsqrt.pop %v4132
        %v4141 = vrsqrt.pop %v4133
        %v4142 = vrsqrt.pop %v4134
        %v4143 = vrsqrt.pop %v4135
        %v4144 = vmul.f32 %v4080, %v4136
        %v4145 = vmul.f32 %v4081, %v4137
        %v4146 = vmul.f32 %v4082, %v4138
        %v4147 = vmul.f32 %v4083, %v4139
        %v4148 = vmul.f32 %v4084, %v4140
        %v4149 = vmul.f32 %v4085, %v4141
        %v4150 = vmul.f32 %v4086, %v4142
        %v4151 = vmul.f32 %v4087, %v4143
        %v4152 = vld [vmem:[%s3 + $0x5] sm:$0x1]
        %v4153 = vlaneseq
        %v4154 = vshrl.u32 %v4153, 7
        %v4155 = vsub.s32 0, %v4154
        %v4156 = vrot.slane %v4152, %v4155
        %v4157 = vmul.f32 %v4144, %v4156
        %v4158 = vmul.f32 %v4145, %v4156
        %v4159 = vmul.f32 %v4146, %v4156
        %v4160 = vmul.f32 %v4147, %v4156
        %v4161 = vmul.f32 %v4148, %v4156
        %v4162 = vmul.f32 %v4149, %v4156
        %v4163 = vmul.f32 %v4150, %v4156
        %v4164 = vmul.f32 %v4151, %v4156
        %v4165 = vld [vmem:[%s4 + $0x5] sm:$0x1]
        %v4166 = vlaneseq
        %v4167 = vshrl.u32 %v4166, 7
        %v4168 = vsub.s32 0, %v4167
        %v4169 = vrot.slane %v4165, %v4168
        %v4170 = vadd.f32 %v4157, %v4169
        %v4171 = vadd.f32 %v4158, %v4169
        %v4172 = vadd.f32 %v4159, %v4169
        %v4173 = vadd.f32 %v4160, %v4169
        %v4174 = vadd.f32 %v4161, %v4169
        %v4175 = vadd.f32 %v4162, %v4169
        %v4176 = vadd.f32 %v4163, %v4169
        %v4177 = vadd.f32 %v4164, %v4169
        %v4178 = vmax.f32 %v4170, 0.0
        %v4179 = vmax.f32 %v4171, 0.0
        %v4180 = vmax.f32 %v4172, 0.0
        %v4181 = vmax.f32 %v4173, 0.0
        %v4182 = vmax.f32 %v4174, 0.0
        %v4183 = vmax.f32 %v4175, 0.0
        %v4184 = vmax.f32 %v4176, 0.0
        %v4185 = vmax.f32 %v4177, 0.0
        %v4186 = vadd.f32 %v4178, %v3201
        %v4187 = vadd.f32 %v4179, %v3203
        %v4188 = vadd.f32 %v4180, %v3205
        %v4189 = vadd.f32 %v4181, %v3207
        %v4190 = vadd.f32 %v4182, %v3209
        %v4191 = vadd.f32 %v4183, %v3211
        %v4192 = vadd.f32 %v4184, %v3213
        %v4193 = vadd.f32 %v4185, %v3215
        %v4202 = vrot.slane %v4187, 7
        %v4203 = vrot.slane %v4188, 6
        %vm4204 = vcmask 1041409
        %v4205 = vsel %vm4204, %v4203, %v4202
        %v4206 = vrot.slane %v4189, 5
        %vm4207 = vcmask 1042434
        %v4208 = vsel %vm4207, %v4206, %v4205
        %v4209 = vrot.slane %v4190, 4
        %vm4210 = vcmask 1043459
        %v4211 = vsel %vm4210, %v4209, %v4208
        %v4212 = vrot.slane %v4191, 3
        %vm4213 = vcmask 1044484
        %v4214 = vsel %vm4213, %v4212, %v4211
        %v4215 = vrot.slane %v4192, 2
        %vm4216 = vcmask 1045509
        %v4217 = vsel %vm4216, %v4215, %v4214
        %v4218 = vrot.slane %v4193, 1
        %vm4219 = vcmask 1046534
        %v4220 = vsel %vm4219, %v4218, %v4217
        %vm4223 = vcmask 261127
        %4224 = vst.msk [vmem:[%s220 - $0x7] sm:$0x80] %vm4223, %v4186
        %vm4225 = vcmask 260096
        %4226 = vst.msk [vmem:[%s220 + $0x1] sm:$0x7f] %vm4225, %v4220
        %s4227 = sand.u32 %s137, 1
        %s4228 = scalar_lea.sflag [#allocation3], %s4227
        %s4229 = sand.u32 %s137, 1
        %s4230 = smul.addr %s4229, 8
        %s4231 = scalar_lea.vmem [#allocation2], %s4230
        // Predicated region
        $region41: #{tpu_custom_call.1} parent=39 // pred_check
          %p4232 = pneg %p147
        $region42: #{tpu_custom_call.1} parent=39 // pred_check_branch
          %4234 = sbr.rel (%p4232) target = $region44
        $region43: #{tpu_custom_call.1} parent=39 // pred_region
          %s4236 = ssub.s32 128, 128
          %4237 = vsyncadd %s4228, %s4236
          %s4238 = smul.addr %s19, 128
          %s4239 = scalar_lea.hbm %s5, %s4238
          %s4241 = sshll.u32 %s4231, 4
          %s4242 = int_to_ptr.vmem [resolvable:$true] %s4241
          %4244 = dma.vmem_to_hbm [thread:$0]  %s4242, 128, %s4239, %s4228
        $region44: #{tpu_custom_call.1} parent=39 // pred_fallthru
          _
      $region40: #{tpu_custom_call.1} parent=5 // pred_fallthru
        _
      %p4245 = scmp.le.s32.totalorder 2, %s14
      // Predicated region
      $region45: #{tpu_custom_call.1} parent=5 // pred_check
        %p4246 = pneg %p4245
      $region46: #{tpu_custom_call.1} parent=5 // pred_check_branch
        %4248 = sbr.rel (%p4246) target = $region48
      $region47: #{tpu_custom_call.1} parent=5 // pred_region
        %s4249 = ssub.s32 %s14, 2
        // Predicated region
        $region49: #{tpu_custom_call.1} parent=47 // pred_check
          %p4250 = pneg %p153
        $region50: #{tpu_custom_call.1} parent=47 // pred_check_branch
          %4252 = sbr.rel (%p4250) target = $region52
        $region51: #{tpu_custom_call.1} parent=47 // pred_region
          %s4253 = sand.u32 %s138, 1
          %s4254 = scalar_lea.sflag [#allocation3], %s4253
          %s4255 = sand.u32 %s138, 1
          %s4256 = smul.addr %s4255, 8
          %s4257 = scalar_lea.vmem [#allocation2], %s4256
          %4258 = dma.done %s4254, 128
        $region52: #{tpu_custom_call.1} parent=47 // pred_fallthru
          _
      $region48: #{tpu_custom_call.1} parent=5 // pred_fallthru
        _
    $region6: #{tpu_custom_call.1} parent=1 // loop_footer
      %s18 = sadd.s32 1, %s14
    $region7: #{tpu_custom_call.1} parent=1 // loop_footer_branch
      %13 = sbr.rel target = $region3
    $region8: #{tpu_custom_call.1} parent=1 // loop_exit
      _
    %4259 = vsyncpa [#allocation3], 1
    %s4260 = scalar_lea.sflag [#allocation3], 1
    %4261 = vsyncpa %s4260, 1

</llo_original>
